<compile_context>
chip_gen: v6e
topology: v6e:2x2x1
jax: 0.10.0
libtpu: 0.0.40
codegen_flags: <defaults>
</compile_context>

<pallas_src>
import functools
import math

import jax
import jax.numpy as jnp
from jax import lax
from jax.experimental import pallas as pl
from jax.experimental.pallas import tpu as pltpu


# ----------------------------- Fused Pallas kernel --------------------------

def make_gru_model_kernel(num_layers):
    """Build the fused GRU + FC kernel.

    Ref layout (inputs, then output, then scratch):
      x2d                      (T*B, D)     f32  time-major, flattened
      per layer l: w_ih[l]     (3, D_l, H)  bf16 gates (r, z, n) on the leading axis
                   w_hh[l]     (3, H, H)    bf16
                   b_gi[l]     (3, 1, H)    f32  r/z: b_ih+b_hh folded; n: b_ih only
                   b_hn[l]     (1, H)       f32  b_hh of the n gate
      w_fc                     (H, O)       bf16
      b_fc                     (1, O)       f32
      out                      (B, O)       f32
      scratch gi_r/gi_z/gi_n   (T*B, H)     f32  hoisted layer-0 input projection
    """

    def kernel(*args):
        n_in = 1 + 4 * num_layers + 2
        x_ref = args[0]
        layer_refs = [tuple(args[1 + 4 * l: 1 + 4 * (l + 1)]) for l in range(num_layers)]
        wfc_ref, bfc_ref = args[n_in - 2], args[n_in - 1]
        out_ref = args[n_in]
        gi_r_ref, gi_z_ref, gi_n_ref = args[n_in + 1: n_in + 4]

        B = out_ref.shape[0]
        TB = x_ref.shape[0]
        T = TB // B
        H = layer_refs[0][1].shape[-1]

        def bdot(a, b):
            # bf16 MXU inputs, f32 accumulation (elementwise math stays f32).
            return jnp.dot(a.astype(jnp.bfloat16), b.astype(jnp.bfloat16),
                           preferred_element_type=jnp.float32)

        # ---- Hoisted layer-0 input projection: one matmul per gate, whole sequence ----
        x2d = x_ref[...]                               # (T*B, D)
        w_ih0, _, b_gi0, _ = layer_refs[0]
        gi_r_ref[...] = bdot(x2d, w_ih0[0]) + b_gi0[0]
        gi_z_ref[...] = bdot(x2d, w_ih0[1]) + b_gi0[1]
        gi_n_ref[...] = bdot(x2d, w_ih0[2]) + b_gi0[2]

        # Hoist the (tiny) recurrent weights / biases out of the time loop.
        w_hh = [[layer_refs[l][1][g] for g in range(3)] for l in range(num_layers)]
        b_hn = [layer_refs[l][3][...] for l in range(num_layers)]
        w_ih = [None] + [[layer_refs[l][0][g] for g in range(3)] for l in range(1, num_layers)]
        b_gi = [None] + [[layer_refs[l][2][g] for g in range(3)] for l in range(1, num_layers)]

        def gru_cell(h_prev, gi_r, gi_z, gi_n, w_hh_l, b_hn_l):
            gh_r = bdot(h_prev, w_hh_l[0])
            gh_z = bdot(h_prev, w_hh_l[1])
            gh_n = bdot(h_prev, w_hh_l[2]) + b_hn_l
            r = jax.nn.sigmoid(gi_r + gh_r)            # f32 (VPU/EUP)
            z = jax.nn.sigmoid(gi_z + gh_z)
            n = jnp.tanh(gi_n + r * gh_n)
            return (1.0 - z) * n + z * h_prev

        def step(t, hs):
            hs = list(hs)
            off = t * B
            g_r = gi_r_ref[pl.ds(off, B), :]
            g_z = gi_z_ref[pl.ds(off, B), :]
            g_n = gi_n_ref[pl.ds(off, B), :]
            hs[0] = gru_cell(hs[0], g_r, g_z, g_n, w_hh[0], b_hn[0])
            for l in range(1, num_layers):
                u = hs[l - 1]                          # inter-layer dropout: identity (eval)
                g_r = bdot(u, w_ih[l][0]) + b_gi[l][0]
                g_z = bdot(u, w_ih[l][1]) + b_gi[l][1]
                g_n = bdot(u, w_ih[l][2]) + b_gi[l][2]
                hs[l] = gru_cell(hs[l], g_r, g_z, g_n, w_hh[l], b_hn[l])
            return tuple(hs)

        hs0 = tuple(jnp.zeros((B, H), jnp.float32) for _ in range(num_layers))
        hs = lax.fori_loop(0, T, step, hs0, unroll=True)

        # ---- Fused FC head on the last time step (self.dropout = identity in eval) ----
        out_ref[...] = bdot(hs[-1], wfc_ref[...]) + bfc_ref[...]

    return kernel


# ----------------------------- Wrapper ---------------------------------------

def make_gru_forward(num_layers):
    kernel = make_gru_model_kernel(num_layers)

    @jax.jit
    def forward(x, kparams):
        B, T, D = x.shape
        H = kparams["l0"]["w_hh"].shape[-1]
        O = kparams["fc"]["w"].shape[-1]
        # batch_first -> time-major flattened input: a one-off tiny (T*B*D*4 B) relayout
        # in the wrapper so every per-step access in the kernel is a contiguous slice
        # (the kernel itself gets x exactly once — no per-step slab DMAs).
        x2d = jnp.transpose(x, (1, 0, 2)).reshape(T * B, D)

        args = [x2d]
        for l in range(num_layers):
            p = kparams[f"l{l}"]
            args += [p["w_ih"], p["w_hh"], p["b_gi"], p["b_hn"]]
        args += [kparams["fc"]["w"], kparams["fc"]["b"]]

        return pl.pallas_call(
            kernel,
            out_shape=jax.ShapeDtypeStruct((B, O), jnp.float32),
            # No grid: single invocation, all operands whole-array resident in VMEM,
            # recurrence runs as an in-kernel (unrolled) fori_loop.
            scratch_shapes=[pltpu.VMEM((T * B, H), jnp.float32) for _ in range(3)],
        )(*args)

    return forward


# ----------------------------- Parameters ------------------------------------

def init_params(key, input_dim, hidden_dim, num_layers, output_dim):
    """PyTorch-style U(-1/sqrt(H), 1/sqrt(H)) init; gates packed (r, z, n) on a leading axis."""
    params = {}
    bound = 1.0 / math.sqrt(hidden_dim)
    for layer in range(num_layers):
        in_dim = input_dim if layer == 0 else hidden_dim
        key, k1, k2, k3, k4 = jax.random.split(key, 5)
        params[f"gru_l{layer}"] = {
            "w_ih": jax.random.uniform(k1, (3, in_dim, hidden_dim), jnp.float32, -bound, bound),
            "w_hh": jax.random.uniform(k2, (3, hidden_dim, hidden_dim), jnp.float32, -bound, bound),
            "b_ih": jax.random.uniform(k3, (3, 1, hidden_dim), jnp.float32, -bound, bound),
            "b_hh": jax.random.uniform(k4, (3, 1, hidden_dim), jnp.float32, -bound, bound),
        }
    key, k1, k2 = jax.random.split(key, 3)
    params["fc"] = {
        "w": jax.random.uniform(k1, (hidden_dim, output_dim), jnp.float32, -bound, bound),
        "b": jax.random.uniform(k2, (1, output_dim), jnp.float32, -bound, bound),
    }
    return params


def prep_kernel_params(params, num_layers, matmul_dtype=jnp.bfloat16):
    """Kernel-side layout: bf16 MXU weights, biases pre-folded.

    r/z gates: the two PyTorch biases always appear as b_ih + b_hh inside the sigmoid,
    so fold them into the (hoisted) input-projection bias.  n gate: b_hh_n must stay
    inside the r * (h @ W_hn + b_hn) term, so it is kept separate.
    """
    kp = {}
    for layer in range(num_layers):
        p = params[f"gru_l{layer}"]
        b_gi = jnp.concatenate(
            [p["b_ih"][0:1] + p["b_hh"][0:1],
             p["b_ih"][1:2] + p["b_hh"][1:2],
             p["b_ih"][2:3]], axis=0)                      # (3, 1, H) f32
        kp[f"l{layer}"] = {
            "w_ih": p["w_ih"].astype(matmul_dtype),
            "w_hh": p["w_hh"].astype(matmul_dtype),
            "b_gi": b_gi,
            "b_hn": p["b_hh"][2],                          # (1, H) f32
        }
    kp["fc"] = {"w": params["fc"]["w"].astype(matmul_dtype), "b": params["fc"]["b"]}
    return kp


# ----------------------------- Pure-JAX reference ----------------------------

def gru_model_reference(x, params, num_layers):
    """Standard PyTorch GRU equations (unfused biases), same bf16-matmul / f32-accumulate
    numerics as the kernel."""
    def bdot(a, b):
        return jnp.dot(a.astype(jnp.bfloat16), b.astype(jnp.bfloat16),
                       preferred_element_type=jnp.float32)

    B = x.shape[0]
    seq = jnp.transpose(x, (1, 0, 2))                      # (T, B, D) time-major
    for layer in range(num_layers):
        p = params[f"gru_l{layer}"]
        w_ih, w_hh, b_ih, b_hh = p["w_ih"], p["w_hh"], p["b_ih"], p["b_hh"]
        H = w_hh.shape[-1]

        def step(h, x_t, w_ih=w_ih, w_hh=w_hh, b_ih=b_ih, b_hh=b_hh):
            gi = [bdot(x_t, w_ih[g]) + b_ih[g] for g in range(3)]
            gh = [bdot(h, w_hh[g]) + b_hh[g] for g in range(3)]
            r = jax.nn.sigmoid(gi[0] + gh[0])
            z = jax.nn.sigmoid(gi[1] + gh[1])
            n = jnp.tanh(gi[2] + r * gh[2])
            h_new = (1.0 - z) * n + z * h
            return h_new, h_new

        h0 = jnp.zeros((B, H), jnp.float32)
        _, seq = lax.scan(step, h0, seq)
    return bdot(seq[-1], params["fc"]["w"]) + params["fc"]["b"]


# ----------------------------- Main -------------------------------------------

if __name__ == "__main__":
    batch, seq_len, input_dim = 2, 8, 4
    hidden_dim, num_layers, output_dim = 32, 2, 1

    key = jax.random.PRNGKey(0)
    key, xk = jax.random.split(key)
    x = jax.random.normal(xk, (batch, seq_len, input_dim), jnp.float32)

    params = init_params(key, input_dim, hidden_dim, num_layers, output_dim)
    kparams = prep_kernel_params(params, num_layers)

    forward = make_gru_forward(num_layers)
    out = jax.block_until_ready(forward(x, kparams))

    ref = gru_model_reference(x, params, num_layers)
    assert out.shape == (batch, output_dim), out.shape
    max_err = float(jnp.max(jnp.abs(out - ref)))
    assert max_err < 2e-3, (max_err, out, ref)

    print("KERNEL_OK")
</pallas_src>

<mosaic_0001>
module attributes {stable_mosaic.version = 11 : i64} {
  func.func @kernel(%arg0: memref<16x4xf32, #tpu.memory_space<vmem>>, %arg1: memref<3x4x32xbf16, #tpu.memory_space<vmem>>, %arg2: memref<3x32x32xbf16, #tpu.memory_space<vmem>>, %arg3: memref<3x1x32xf32, #tpu.memory_space<vmem>>, %arg4: memref<1x32xf32, #tpu.memory_space<vmem>>, %arg5: memref<3x32x32xbf16, #tpu.memory_space<vmem>>, %arg6: memref<3x32x32xbf16, #tpu.memory_space<vmem>>, %arg7: memref<3x1x32xf32, #tpu.memory_space<vmem>>, %arg8: memref<1x32xf32, #tpu.memory_space<vmem>>, %arg9: memref<32x1xbf16, #tpu.memory_space<vmem>>, %arg10: memref<1x1xf32, #tpu.memory_space<vmem>>, %arg11: memref<2x1xf32, #tpu.memory_space<vmem>>, %arg12: memref<16x32xf32, #tpu.memory_space<vmem>>, %arg13: memref<16x32xf32, #tpu.memory_space<vmem>>, %arg14: memref<16x32xf32, #tpu.memory_space<vmem>>) attributes {dimension_semantics = [], scalar_prefetch = 0 : i64, scratch_operands = 3 : i64, tpu.core_type = #tpu.core_type<tc>} {
    %c0 = arith.constant 0 : index
    %c0_0 = arith.constant 0 : index
    %0 = vector.load %arg0[%c0, %c0_0] : memref<16x4xf32, #tpu.memory_space<vmem>>, vector<16x4xf32>
    %c0_1 = arith.constant 0 : index
    %c0_2 = arith.constant 0 : index
    %c0_3 = arith.constant 0 : index
    %1 = vector.load %arg1[%c0_1, %c0_2, %c0_3] : memref<3x4x32xbf16, #tpu.memory_space<vmem>>, vector<1x4x32xbf16>
    %2 = vector.shape_cast %1 : vector<1x4x32xbf16> to vector<4x32xbf16>
    %3 = arith.truncf %0 : vector<16x4xf32> to vector<16x4xbf16>
    %cst = arith.constant dense<0.000000e+00> : vector<16x32xf32>
    %4 = tpu.matmul %3, %2, %cst {dimension_numbers = #tpu.dot_dimension_numbers<[1], [0], [0], [1], [0, 0, 1, 1], [], []>} : vector<16x4xbf16>, vector<4x32xbf16>, vector<16x32xf32> -> vector<16x32xf32>
    %c0_4 = arith.constant 0 : index
    %c0_5 = arith.constant 0 : index
    %c0_6 = arith.constant 0 : index
    %5 = vector.load %arg3[%c0_4, %c0_5, %c0_6] : memref<3x1x32xf32, #tpu.memory_space<vmem>>, vector<1x1x32xf32>
    %6 = vector.shape_cast %5 : vector<1x1x32xf32> to vector<1x32xf32>
    %7 = vector.broadcast %6 : vector<1x32xf32> to vector<16x32xf32>
    %8 = arith.addf %4, %7 : vector<16x32xf32>
    %c0_7 = arith.constant 0 : index
    %c0_8 = arith.constant 0 : index
    %9 = vector.load %arg12[%c0_7, %c0_8] : memref<16x32xf32, #tpu.memory_space<vmem>>, vector<16x32xf32>
    tpu.vector_store %arg12[%c0_7, %c0_8], %8 {strides = array<i32>} : memref<16x32xf32, #tpu.memory_space<vmem>>, vector<16x32xf32>,
    %c1 = arith.constant 1 : index
    %c0_9 = arith.constant 0 : index
    %c0_10 = arith.constant 0 : index
    %10 = vector.load %arg1[%c1, %c0_9, %c0_10] : memref<3x4x32xbf16, #tpu.memory_space<vmem>>, vector<1x4x32xbf16>
    %11 = vector.shape_cast %10 : vector<1x4x32xbf16> to vector<4x32xbf16>
    %12 = arith.truncf %0 : vector<16x4xf32> to vector<16x4xbf16>
    %cst_11 = arith.constant dense<0.000000e+00> : vector<16x32xf32>
    %13 = tpu.matmul %12, %11, %cst_11 {dimension_numbers = #tpu.dot_dimension_numbers<[1], [0], [0], [1], [0, 0, 1, 1], [], []>} : vector<16x4xbf16>, vector<4x32xbf16>, vector<16x32xf32> -> vector<16x32xf32>
    %c1_12 = arith.constant 1 : index
    %c0_13 = arith.constant 0 : index
    %c0_14 = arith.constant 0 : index
    %14 = vector.load %arg3[%c1_12, %c0_13, %c0_14] : memref<3x1x32xf32, #tpu.memory_space<vmem>>, vector<1x1x32xf32>
    %15 = vector.shape_cast %14 : vector<1x1x32xf32> to vector<1x32xf32>
    %16 = vector.broadcast %15 : vector<1x32xf32> to vector<16x32xf32>
    %17 = arith.addf %13, %16 : vector<16x32xf32>
    %c0_15 = arith.constant 0 : index
    %c0_16 = arith.constant 0 : index
    %18 = vector.load %arg13[%c0_15, %c0_16] : memref<16x32xf32, #tpu.memory_space<vmem>>, vector<16x32xf32>
    tpu.vector_store %arg13[%c0_15, %c0_16], %17 {strides = array<i32>} : memref<16x32xf32, #tpu.memory_space<vmem>>, vector<16x32xf32>,
    %c2 = arith.constant 2 : index
    %c0_17 = arith.constant 0 : index
    %c0_18 = arith.constant 0 : index
    %19 = vector.load %arg1[%c2, %c0_17, %c0_18] : memref<3x4x32xbf16, #tpu.memory_space<vmem>>, vector<1x4x32xbf16>
    %20 = vector.shape_cast %19 : vector<1x4x32xbf16> to vector<4x32xbf16>
    %21 = arith.truncf %0 : vector<16x4xf32> to vector<16x4xbf16>
    %cst_19 = arith.constant dense<0.000000e+00> : vector<16x32xf32>
    %22 = tpu.matmul %21, %20, %cst_19 {dimension_numbers = #tpu.dot_dimension_numbers<[1], [0], [0], [1], [0, 0, 1, 1], [], []>} : vector<16x4xbf16>, vector<4x32xbf16>, vector<16x32xf32> -> vector<16x32xf32>
    %c2_20 = arith.constant 2 : index
    %c0_21 = arith.constant 0 : index
    %c0_22 = arith.constant 0 : index
    %23 = vector.load %arg3[%c2_20, %c0_21, %c0_22] : memref<3x1x32xf32, #tpu.memory_space<vmem>>, vector<1x1x32xf32>
    %24 = vector.shape_cast %23 : vector<1x1x32xf32> to vector<1x32xf32>
    %25 = vector.broadcast %24 : vector<1x32xf32> to vector<16x32xf32>
    %26 = arith.addf %22, %25 : vector<16x32xf32>
    %c0_23 = arith.constant 0 : index
    %c0_24 = arith.constant 0 : index
    %27 = vector.load %arg14[%c0_23, %c0_24] : memref<16x32xf32, #tpu.memory_space<vmem>>, vector<16x32xf32>
    tpu.vector_store %arg14[%c0_23, %c0_24], %26 {strides = array<i32>} : memref<16x32xf32, #tpu.memory_space<vmem>>, vector<16x32xf32>,
    %c0_25 = arith.constant 0 : index
    %c0_26 = arith.constant 0 : index
    %c0_27 = arith.constant 0 : index
    %28 = vector.load %arg2[%c0_25, %c0_26, %c0_27] : memref<3x32x32xbf16, #tpu.memory_space<vmem>>, vector<1x32x32xbf16>
    %29 = vector.shape_cast %28 : vector<1x32x32xbf16> to vector<32x32xbf16>
    %c1_28 = arith.constant 1 : index
    %c0_29 = arith.constant 0 : index
    %c0_30 = arith.constant 0 : index
    %30 = vector.load %arg2[%c1_28, %c0_29, %c0_30] : memref<3x32x32xbf16, #tpu.memory_space<vmem>>, vector<1x32x32xbf16>
    %31 = vector.shape_cast %30 : vector<1x32x32xbf16> to vector<32x32xbf16>
    %c2_31 = arith.constant 2 : index
    %c0_32 = arith.constant 0 : index
    %c0_33 = arith.constant 0 : index
    %32 = vector.load %arg2[%c2_31, %c0_32, %c0_33] : memref<3x32x32xbf16, #tpu.memory_space<vmem>>, vector<1x32x32xbf16>
    %33 = vector.shape_cast %32 : vector<1x32x32xbf16> to vector<32x32xbf16>
    %c0_34 = arith.constant 0 : index
    %c0_35 = arith.constant 0 : index
    %c0_36 = arith.constant 0 : index
    %34 = vector.load %arg6[%c0_34, %c0_35, %c0_36] : memref<3x32x32xbf16, #tpu.memory_space<vmem>>, vector<1x32x32xbf16>
    %35 = vector.shape_cast %34 : vector<1x32x32xbf16> to vector<32x32xbf16>
    %c1_37 = arith.constant 1 : index
    %c0_38 = arith.constant 0 : index
    %c0_39 = arith.constant 0 : index
    %36 = vector.load %arg6[%c1_37, %c0_38, %c0_39] : memref<3x32x32xbf16, #tpu.memory_space<vmem>>, vector<1x32x32xbf16>
    %37 = vector.shape_cast %36 : vector<1x32x32xbf16> to vector<32x32xbf16>
    %c2_40 = arith.constant 2 : index
    %c0_41 = arith.constant 0 : index
    %c0_42 = arith.constant 0 : index
    %38 = vector.load %arg6[%c2_40, %c0_41, %c0_42] : memref<3x32x32xbf16, #tpu.memory_space<vmem>>, vector<1x32x32xbf16>
    %39 = vector.shape_cast %38 : vector<1x32x32xbf16> to vector<32x32xbf16>
    %c0_43 = arith.constant 0 : index
    %c0_44 = arith.constant 0 : index
    %40 = vector.load %arg4[%c0_43, %c0_44] : memref<1x32xf32, #tpu.memory_space<vmem>>, vector<1x32xf32>
    %c0_45 = arith.constant 0 : index
    %c0_46 = arith.constant 0 : index
    %41 = vector.load %arg8[%c0_45, %c0_46] : memref<1x32xf32, #tpu.memory_space<vmem>>, vector<1x32xf32>
    %c0_47 = arith.constant 0 : index
    %c0_48 = arith.constant 0 : index
    %c0_49 = arith.constant 0 : index
    %42 = vector.load %arg5[%c0_47, %c0_48, %c0_49] : memref<3x32x32xbf16, #tpu.memory_space<vmem>>, vector<1x32x32xbf16>
    %43 = vector.shape_cast %42 : vector<1x32x32xbf16> to vector<32x32xbf16>
    %c1_50 = arith.constant 1 : index
    %c0_51 = arith.constant 0 : index
    %c0_52 = arith.constant 0 : index
    %44 = vector.load %arg5[%c1_50, %c0_51, %c0_52] : memref<3x32x32xbf16, #tpu.memory_space<vmem>>, vector<1x32x32xbf16>
    %45 = vector.shape_cast %44 : vector<1x32x32xbf16> to vector<32x32xbf16>
    %c2_53 = arith.constant 2 : index
    %c0_54 = arith.constant 0 : index
    %c0_55 = arith.constant 0 : index
    %46 = vector.load %arg5[%c2_53, %c0_54, %c0_55] : memref<3x32x32xbf16, #tpu.memory_space<vmem>>, vector<1x32x32xbf16>
    %47 = vector.shape_cast %46 : vector<1x32x32xbf16> to vector<32x32xbf16>
    %c0_56 = arith.constant 0 : index
    %c0_57 = arith.constant 0 : index
    %c0_58 = arith.constant 0 : index
    %48 = vector.load %arg7[%c0_56, %c0_57, %c0_58] : memref<3x1x32xf32, #tpu.memory_space<vmem>>, vector<1x1x32xf32>
    %49 = vector.shape_cast %48 : vector<1x1x32xf32> to vector<1x32xf32>
    %c1_59 = arith.constant 1 : index
    %c0_60 = arith.constant 0 : index
    %c0_61 = arith.constant 0 : index
    %50 = vector.load %arg7[%c1_59, %c0_60, %c0_61] : memref<3x1x32xf32, #tpu.memory_space<vmem>>, vector<1x1x32xf32>
    %51 = vector.shape_cast %50 : vector<1x1x32xf32> to vector<1x32xf32>
    %c2_62 = arith.constant 2 : index
    %c0_63 = arith.constant 0 : index
    %c0_64 = arith.constant 0 : index
    %52 = vector.load %arg7[%c2_62, %c0_63, %c0_64] : memref<3x1x32xf32, #tpu.memory_space<vmem>>, vector<1x1x32xf32>
    %53 = vector.shape_cast %52 : vector<1x1x32xf32> to vector<1x32xf32>
    %cst_65 = arith.constant 0.000000e+00 : f32
    %54 = vector.broadcast %cst_65 : f32 to vector<2x32xf32>
    %cst_66 = arith.constant 0.000000e+00 : f32
    %55 = vector.broadcast %cst_66 : f32 to vector<2x32xf32>
    %c0_i32 = arith.constant 0 : i32
    %c2_i32 = arith.constant 2 : i32
    %56 = arith.muli %c0_i32, %c2_i32 : i32
    %57 = arith.index_cast %56 : i32 to index
    %c0_67 = arith.constant 0 : index
    %58 = vector.load %arg12[%57, %c0_67] : memref<16x32xf32, #tpu.memory_space<vmem>>, vector<2x32xf32>
    %59 = arith.index_cast %56 : i32 to index
    %c0_68 = arith.constant 0 : index
    %60 = vector.load %arg13[%59, %c0_68] : memref<16x32xf32, #tpu.memory_space<vmem>>, vector<2x32xf32>
    %61 = arith.index_cast %56 : i32 to index
    %c0_69 = arith.constant 0 : index
    %62 = vector.load %arg14[%61, %c0_69] : memref<16x32xf32, #tpu.memory_space<vmem>>, vector<2x32xf32>
    %63 = arith.truncf %54 : vector<2x32xf32> to vector<2x32xbf16>
    %cst_70 = arith.constant dense<0.000000e+00> : vector<2x32xf32>
    %64 = tpu.matmul %63, %29, %cst_70 {dimension_numbers = #tpu.dot_dimension_numbers<[1], [0], [0], [1], [0, 0, 1, 1], [], []>} : vector<2x32xbf16>, vector<32x32xbf16>, vector<2x32xf32> -> vector<2x32xf32>
    %65 = arith.truncf %54 : vector<2x32xf32> to vector<2x32xbf16>
    %cst_71 = arith.constant dense<0.000000e+00> : vector<2x32xf32>
    %66 = tpu.matmul %65, %31, %cst_71 {dimension_numbers = #tpu.dot_dimension_numbers<[1], [0], [0], [1], [0, 0, 1, 1], [], []>} : vector<2x32xbf16>, vector<32x32xbf16>, vector<2x32xf32> -> vector<2x32xf32>
    %67 = arith.truncf %54 : vector<2x32xf32> to vector<2x32xbf16>
    %cst_72 = arith.constant dense<0.000000e+00> : vector<2x32xf32>
    %68 = tpu.matmul %67, %33, %cst_72 {dimension_numbers = #tpu.dot_dimension_numbers<[1], [0], [0], [1], [0, 0, 1, 1], [], []>} : vector<2x32xbf16>, vector<32x32xbf16>, vector<2x32xf32> -> vector<2x32xf32>
    %69 = vector.broadcast %40 : vector<1x32xf32> to vector<2x32xf32>
    %70 = arith.addf %68, %69 : vector<2x32xf32>
    %71 = arith.addf %58, %64 : vector<2x32xf32>
    %72 = arith.negf %71 : vector<2x32xf32>
    %73 = math.exp %72 : vector<2x32xf32>
    %cst_73 = arith.constant 1.000000e+00 : f32
    %74 = vector.broadcast %cst_73 : f32 to vector<2x32xf32>
    %75 = arith.addf %74, %73 : vector<2x32xf32>
    %76 = arith.divf %74, %75 : vector<2x32xf32>
    %77 = arith.addf %60, %66 : vector<2x32xf32>
    %78 = arith.negf %77 : vector<2x32xf32>
    %79 = math.exp %78 : vector<2x32xf32>
    %cst_74 = arith.constant 1.000000e+00 : f32
    %80 = vector.broadcast %cst_74 : f32 to vector<2x32xf32>
    %81 = arith.addf %80, %79 : vector<2x32xf32>
    %82 = arith.divf %80, %81 : vector<2x32xf32>
    %83 = arith.mulf %76, %70 : vector<2x32xf32>
    %84 = arith.addf %62, %83 : vector<2x32xf32>
    %85 = math.tanh %84 : vector<2x32xf32>
    %cst_75 = arith.constant 1.000000e+00 : f32
    %86 = vector.broadcast %cst_75 : f32 to vector<2x32xf32>
    %87 = arith.subf %86, %82 : vector<2x32xf32>
    %88 = arith.mulf %87, %85 : vector<2x32xf32>
    %89 = arith.mulf %82, %54 : vector<2x32xf32>
    %90 = arith.addf %88, %89 : vector<2x32xf32>
    %91 = arith.truncf %90 : vector<2x32xf32> to vector<2x32xbf16>
    %cst_76 = arith.constant dense<0.000000e+00> : vector<2x32xf32>
    %92 = tpu.matmul %91, %43, %cst_76 {dimension_numbers = #tpu.dot_dimension_numbers<[1], [0], [0], [1], [0, 0, 1, 1], [], []>} : vector<2x32xbf16>, vector<32x32xbf16>, vector<2x32xf32> -> vector<2x32xf32>
    %93 = vector.broadcast %49 : vector<1x32xf32> to vector<2x32xf32>
    %94 = arith.addf %92, %93 : vector<2x32xf32>
    %95 = arith.truncf %90 : vector<2x32xf32> to vector<2x32xbf16>
    %cst_77 = arith.constant dense<0.000000e+00> : vector<2x32xf32>
    %96 = tpu.matmul %95, %45, %cst_77 {dimension_numbers = #tpu.dot_dimension_numbers<[1], [0], [0], [1], [0, 0, 1, 1], [], []>} : vector<2x32xbf16>, vector<32x32xbf16>, vector<2x32xf32> -> vector<2x32xf32>
    %97 = vector.broadcast %51 : vector<1x32xf32> to vector<2x32xf32>
    %98 = arith.addf %96, %97 : vector<2x32xf32>
    %99 = arith.truncf %90 : vector<2x32xf32> to vector<2x32xbf16>
    %cst_78 = arith.constant dense<0.000000e+00> : vector<2x32xf32>
    %100 = tpu.matmul %99, %47, %cst_78 {dimension_numbers = #tpu.dot_dimension_numbers<[1], [0], [0], [1], [0, 0, 1, 1], [], []>} : vector<2x32xbf16>, vector<32x32xbf16>, vector<2x32xf32> -> vector<2x32xf32>
    %101 = vector.broadcast %53 : vector<1x32xf32> to vector<2x32xf32>
    %102 = arith.addf %100, %101 : vector<2x32xf32>
    %103 = arith.truncf %55 : vector<2x32xf32> to vector<2x32xbf16>
    %cst_79 = arith.constant dense<0.000000e+00> : vector<2x32xf32>
    %104 = tpu.matmul %103, %35, %cst_79 {dimension_numbers = #tpu.dot_dimension_numbers<[1], [0], [0], [1], [0, 0, 1, 1], [], []>} : vector<2x32xbf16>, vector<32x32xbf16>, vector<2x32xf32> -> vector<2x32xf32>
    %105 = arith.truncf %55 : vector<2x32xf32> to vector<2x32xbf16>
    %cst_80 = arith.constant dense<0.000000e+00> : vector<2x32xf32>
    %106 = tpu.matmul %105, %37, %cst_80 {dimension_numbers = #tpu.dot_dimension_numbers<[1], [0], [0], [1], [0, 0, 1, 1], [], []>} : vector<2x32xbf16>, vector<32x32xbf16>, vector<2x32xf32> -> vector<2x32xf32>
    %107 = arith.truncf %55 : vector<2x32xf32> to vector<2x32xbf16>
    %cst_81 = arith.constant dense<0.000000e+00> : vector<2x32xf32>
    %108 = tpu.matmul %107, %39, %cst_81 {dimension_numbers = #tpu.dot_dimension_numbers<[1], [0], [0], [1], [0, 0, 1, 1], [], []>} : vector<2x32xbf16>, vector<32x32xbf16>, vector<2x32xf32> -> vector<2x32xf32>
    %109 = vector.broadcast %41 : vector<1x32xf32> to vector<2x32xf32>
    %110 = arith.addf %108, %109 : vector<2x32xf32>
    %111 = arith.addf %94, %104 : vector<2x32xf32>
    %112 = arith.negf %111 : vector<2x32xf32>
    %113 = math.exp %112 : vector<2x32xf32>
    %cst_82 = arith.constant 1.000000e+00 : f32
    %114 = vector.broadcast %cst_82 : f32 to vector<2x32xf32>
    %115 = arith.addf %114, %113 : vector<2x32xf32>
    %116 = arith.divf %114, %115 : vector<2x32xf32>
    %117 = arith.addf %98, %106 : vector<2x32xf32>
    %118 = arith.negf %117 : vector<2x32xf32>
    %119 = math.exp %118 : vector<2x32xf32>
    %cst_83 = arith.constant 1.000000e+00 : f32
    %120 = vector.broadcast %cst_83 : f32 to vector<2x32xf32>
    %121 = arith.addf %120, %119 : vector<2x32xf32>
    %122 = arith.divf %120, %121 : vector<2x32xf32>
    %123 = arith.mulf %116, %110 : vector<2x32xf32>
    %124 = arith.addf %102, %123 : vector<2x32xf32>
    %125 = math.tanh %124 : vector<2x32xf32>
    %cst_84 = arith.constant 1.000000e+00 : f32
    %126 = vector.broadcast %cst_84 : f32 to vector<2x32xf32>
    %127 = arith.subf %126, %122 : vector<2x32xf32>
    %128 = arith.mulf %127, %125 : vector<2x32xf32>
    %129 = arith.mulf %122, %55 : vector<2x32xf32>
    %130 = arith.addf %128, %129 : vector<2x32xf32>
    %c1_i32 = arith.constant 1 : i32
    %c2_i32_85 = arith.constant 2 : i32
    %131 = arith.muli %c1_i32, %c2_i32_85 : i32
    %132 = arith.index_cast %131 : i32 to index
    %c0_86 = arith.constant 0 : index
    %133 = vector.load %arg12[%132, %c0_86] : memref<16x32xf32, #tpu.memory_space<vmem>>, vector<2x32xf32>
    %134 = arith.index_cast %131 : i32 to index
    %c0_87 = arith.constant 0 : index
    %135 = vector.load %arg13[%134, %c0_87] : memref<16x32xf32, #tpu.memory_space<vmem>>, vector<2x32xf32>
    %136 = arith.index_cast %131 : i32 to index
    %c0_88 = arith.constant 0 : index
    %137 = vector.load %arg14[%136, %c0_88] : memref<16x32xf32, #tpu.memory_space<vmem>>, vector<2x32xf32>
    %138 = arith.truncf %90 : vector<2x32xf32> to vector<2x32xbf16>
    %cst_89 = arith.constant dense<0.000000e+00> : vector<2x32xf32>
    %139 = tpu.matmul %138, %29, %cst_89 {dimension_numbers = #tpu.dot_dimension_numbers<[1], [0], [0], [1], [0, 0, 1, 1], [], []>} : vector<2x32xbf16>, vector<32x32xbf16>, vector<2x32xf32> -> vector<2x32xf32>
    %140 = arith.truncf %90 : vector<2x32xf32> to vector<2x32xbf16>
    %cst_90 = arith.constant dense<0.000000e+00> : vector<2x32xf32>
    %141 = tpu.matmul %140, %31, %cst_90 {dimension_numbers = #tpu.dot_dimension_numbers<[1], [0], [0], [1], [0, 0, 1, 1], [], []>} : vector<2x32xbf16>, vector<32x32xbf16>, vector<2x32xf32> -> vector<2x32xf32>
    %142 = arith.truncf %90 : vector<2x32xf32> to vector<2x32xbf16>
    %cst_91 = arith.constant dense<0.000000e+00> : vector<2x32xf32>
    %143 = tpu.matmul %142, %33, %cst_91 {dimension_numbers = #tpu.dot_dimension_numbers<[1], [0], [0], [1], [0, 0, 1, 1], [], []>} : vector<2x32xbf16>, vector<32x32xbf16>, vector<2x32xf32> -> vector<2x32xf32>
    %144 = vector.broadcast %40 : vector<1x32xf32> to vector<2x32xf32>
    %145 = arith.addf %143, %144 : vector<2x32xf32>
    %146 = arith.addf %133, %139 : vector<2x32xf32>
    %147 = arith.negf %146 : vector<2x32xf32>
    %148 = math.exp %147 : vector<2x32xf32>
    %cst_92 = arith.constant 1.000000e+00 : f32
    %149 = vector.broadcast %cst_92 : f32 to vector<2x32xf32>
    %150 = arith.addf %149, %148 : vector<2x32xf32>
    %151 = arith.divf %149, %150 : vector<2x32xf32>
    %152 = arith.addf %135, %141 : vector<2x32xf32>
    %153 = arith.negf %152 : vector<2x32xf32>
    %154 = math.exp %153 : vector<2x32xf32>
    %cst_93 = arith.constant 1.000000e+00 : f32
    %155 = vector.broadcast %cst_93 : f32 to vector<2x32xf32>
    %156 = arith.addf %155, %154 : vector<2x32xf32>
    %157 = arith.divf %155, %156 : vector<2x32xf32>
    %158 = arith.mulf %151, %145 : vector<2x32xf32>
    %159 = arith.addf %137, %158 : vector<2x32xf32>
    %160 = math.tanh %159 : vector<2x32xf32>
    %cst_94 = arith.constant 1.000000e+00 : f32
    %161 = vector.broadcast %cst_94 : f32 to vector<2x32xf32>
    %162 = arith.subf %161, %157 : vector<2x32xf32>
    %163 = arith.mulf %162, %160 : vector<2x32xf32>
    %164 = arith.mulf %157, %90 : vector<2x32xf32>
    %165 = arith.addf %163, %164 : vector<2x32xf32>
    %166 = arith.truncf %165 : vector<2x32xf32> to vector<2x32xbf16>
    %cst_95 = arith.constant dense<0.000000e+00> : vector<2x32xf32>
    %167 = tpu.matmul %166, %43, %cst_95 {dimension_numbers = #tpu.dot_dimension_numbers<[1], [0], [0], [1], [0, 0, 1, 1], [], []>} : vector<2x32xbf16>, vector<32x32xbf16>, vector<2x32xf32> -> vector<2x32xf32>
    %168 = vector.broadcast %49 : vector<1x32xf32> to vector<2x32xf32>
    %169 = arith.addf %167, %168 : vector<2x32xf32>
    %170 = arith.truncf %165 : vector<2x32xf32> to vector<2x32xbf16>
    %cst_96 = arith.constant dense<0.000000e+00> : vector<2x32xf32>
    %171 = tpu.matmul %170, %45, %cst_96 {dimension_numbers = #tpu.dot_dimension_numbers<[1], [0], [0], [1], [0, 0, 1, 1], [], []>} : vector<2x32xbf16>, vector<32x32xbf16>, vector<2x32xf32> -> vector<2x32xf32>
    %172 = vector.broadcast %51 : vector<1x32xf32> to vector<2x32xf32>
    %173 = arith.addf %171, %172 : vector<2x32xf32>
    %174 = arith.truncf %165 : vector<2x32xf32> to vector<2x32xbf16>
    %cst_97 = arith.constant dense<0.000000e+00> : vector<2x32xf32>
    %175 = tpu.matmul %174, %47, %cst_97 {dimension_numbers = #tpu.dot_dimension_numbers<[1], [0], [0], [1], [0, 0, 1, 1], [], []>} : vector<2x32xbf16>, vector<32x32xbf16>, vector<2x32xf32> -> vector<2x32xf32>
    %176 = vector.broadcast %53 : vector<1x32xf32> to vector<2x32xf32>
    %177 = arith.addf %175, %176 : vector<2x32xf32>
    %178 = arith.truncf %130 : vector<2x32xf32> to vector<2x32xbf16>
    %cst_98 = arith.constant dense<0.000000e+00> : vector<2x32xf32>
    %179 = tpu.matmul %178, %35, %cst_98 {dimension_numbers = #tpu.dot_dimension_numbers<[1], [0], [0], [1], [0, 0, 1, 1], [], []>} : vector<2x32xbf16>, vector<32x32xbf16>, vector<2x32xf32> -> vector<2x32xf32>
    %180 = arith.truncf %130 : vector<2x32xf32> to vector<2x32xbf16>
    %cst_99 = arith.constant dense<0.000000e+00> : vector<2x32xf32>
    %181 = tpu.matmul %180, %37, %cst_99 {dimension_numbers = #tpu.dot_dimension_numbers<[1], [0], [0], [1], [0, 0, 1, 1], [], []>} : vector<2x32xbf16>, vector<32x32xbf16>, vector<2x32xf32> -> vector<2x32xf32>
    %182 = arith.truncf %130 : vector<2x32xf32> to vector<2x32xbf16>
    %cst_100 = arith.constant dense<0.000000e+00> : vector<2x32xf32>
    %183 = tpu.matmul %182, %39, %cst_100 {dimension_numbers = #tpu.dot_dimension_numbers<[1], [0], [0], [1], [0, 0, 1, 1], [], []>} : vector<2x32xbf16>, vector<32x32xbf16>, vector<2x32xf32> -> vector<2x32xf32>
    %184 = vector.broadcast %41 : vector<1x32xf32> to vector<2x32xf32>
    %185 = arith.addf %183, %184 : vector<2x32xf32>
    %186 = arith.addf %169, %179 : vector<2x32xf32>
    %187 = arith.negf %186 : vector<2x32xf32>
    %188 = math.exp %187 : vector<2x32xf32>
    %cst_101 = arith.constant 1.000000e+00 : f32
    %189 = vector.broadcast %cst_101 : f32 to vector<2x32xf32>
    %190 = arith.addf %189, %188 : vector<2x32xf32>
    %191 = arith.divf %189, %190 : vector<2x32xf32>
    %192 = arith.addf %173, %181 : vector<2x32xf32>
    %193 = arith.negf %192 : vector<2x32xf32>
    %194 = math.exp %193 : vector<2x32xf32>
    %cst_102 = arith.constant 1.000000e+00 : f32
    %195 = vector.broadcast %cst_102 : f32 to vector<2x32xf32>
    %196 = arith.addf %195, %194 : vector<2x32xf32>
    %197 = arith.divf %195, %196 : vector<2x32xf32>
    %198 = arith.mulf %191, %185 : vector<2x32xf32>
    %199 = arith.addf %177, %198 : vector<2x32xf32>
    %200 = math.tanh %199 : vector<2x32xf32>
    %cst_103 = arith.constant 1.000000e+00 : f32
    %201 = vector.broadcast %cst_103 : f32 to vector<2x32xf32>
    %202 = arith.subf %201, %197 : vector<2x32xf32>
    %203 = arith.mulf %202, %200 : vector<2x32xf32>
    %204 = arith.mulf %197, %130 : vector<2x32xf32>
    %205 = arith.addf %203, %204 : vector<2x32xf32>
    %c2_i32_104 = arith.constant 2 : i32
    %c2_i32_105 = arith.constant 2 : i32
    %206 = arith.muli %c2_i32_104, %c2_i32_105 : i32
    %207 = arith.index_cast %206 : i32 to index
    %c0_106 = arith.constant 0 : index
    %208 = vector.load %arg12[%207, %c0_106] : memref<16x32xf32, #tpu.memory_space<vmem>>, vector<2x32xf32>
    %209 = arith.index_cast %206 : i32 to index
    %c0_107 = arith.constant 0 : index
    %210 = vector.load %arg13[%209, %c0_107] : memref<16x32xf32, #tpu.memory_space<vmem>>, vector<2x32xf32>
    %211 = arith.index_cast %206 : i32 to index
    %c0_108 = arith.constant 0 : index
    %212 = vector.load %arg14[%211, %c0_108] : memref<16x32xf32, #tpu.memory_space<vmem>>, vector<2x32xf32>
    %213 = arith.truncf %165 : vector<2x32xf32> to vector<2x32xbf16>
    %cst_109 = arith.constant dense<0.000000e+00> : vector<2x32xf32>
    %214 = tpu.matmul %213, %29, %cst_109 {dimension_numbers = #tpu.dot_dimension_numbers<[1], [0], [0], [1], [0, 0, 1, 1], [], []>} : vector<2x32xbf16>, vector<32x32xbf16>, vector<2x32xf32> -> vector<2x32xf32>
    %215 = arith.truncf %165 : vector<2x32xf32> to vector<2x32xbf16>
    %cst_110 = arith.constant dense<0.000000e+00> : vector<2x32xf32>
    %216 = tpu.matmul %215, %31, %cst_110 {dimension_numbers = #tpu.dot_dimension_numbers<[1], [0], [0], [1], [0, 0, 1, 1], [], []>} : vector<2x32xbf16>, vector<32x32xbf16>, vector<2x32xf32> -> vector<2x32xf32>
    %217 = arith.truncf %165 : vector<2x32xf32> to vector<2x32xbf16>
    %cst_111 = arith.constant dense<0.000000e+00> : vector<2x32xf32>
    %218 = tpu.matmul %217, %33, %cst_111 {dimension_numbers = #tpu.dot_dimension_numbers<[1], [0], [0], [1], [0, 0, 1, 1], [], []>} : vector<2x32xbf16>, vector<32x32xbf16>, vector<2x32xf32> -> vector<2x32xf32>
    %219 = vector.broadcast %40 : vector<1x32xf32> to vector<2x32xf32>
    %220 = arith.addf %218, %219 : vector<2x32xf32>
    %221 = arith.addf %208, %214 : vector<2x32xf32>
    %222 = arith.negf %221 : vector<2x32xf32>
    %223 = math.exp %222 : vector<2x32xf32>
    %cst_112 = arith.constant 1.000000e+00 : f32
    %224 = vector.broadcast %cst_112 : f32 to vector<2x32xf32>
    %225 = arith.addf %224, %223 : vector<2x32xf32>
    %226 = arith.divf %224, %225 : vector<2x32xf32>
    %227 = arith.addf %210, %216 : vector<2x32xf32>
    %228 = arith.negf %227 : vector<2x32xf32>
    %229 = math.exp %228 : vector<2x32xf32>
    %cst_113 = arith.constant 1.000000e+00 : f32
    %230 = vector.broadcast %cst_113 : f32 to vector<2x32xf32>
    %231 = arith.addf %230, %229 : vector<2x32xf32>
    %232 = arith.divf %230, %231 : vector<2x32xf32>
    %233 = arith.mulf %226, %220 : vector<2x32xf32>
    %234 = arith.addf %212, %233 : vector<2x32xf32>
    %235 = math.tanh %234 : vector<2x32xf32>
    %cst_114 = arith.constant 1.000000e+00 : f32
    %236 = vector.broadcast %cst_114 : f32 to vector<2x32xf32>
    %237 = arith.subf %236, %232 : vector<2x32xf32>
    %238 = arith.mulf %237, %235 : vector<2x32xf32>
    %239 = arith.mulf %232, %165 : vector<2x32xf32>
    %240 = arith.addf %238, %239 : vector<2x32xf32>
    %241 = arith.truncf %240 : vector<2x32xf32> to vector<2x32xbf16>
    %cst_115 = arith.constant dense<0.000000e+00> : vector<2x32xf32>
    %242 = tpu.matmul %241, %43, %cst_115 {dimension_numbers = #tpu.dot_dimension_numbers<[1], [0], [0], [1], [0, 0, 1, 1], [], []>} : vector<2x32xbf16>, vector<32x32xbf16>, vector<2x32xf32> -> vector<2x32xf32>
    %243 = vector.broadcast %49 : vector<1x32xf32> to vector<2x32xf32>
    %244 = arith.addf %242, %243 : vector<2x32xf32>
    %245 = arith.truncf %240 : vector<2x32xf32> to vector<2x32xbf16>
    %cst_116 = arith.constant dense<0.000000e+00> : vector<2x32xf32>
    %246 = tpu.matmul %245, %45, %cst_116 {dimension_numbers = #tpu.dot_dimension_numbers<[1], [0], [0], [1], [0, 0, 1, 1], [], []>} : vector<2x32xbf16>, vector<32x32xbf16>, vector<2x32xf32> -> vector<2x32xf32>
    %247 = vector.broadcast %51 : vector<1x32xf32> to vector<2x32xf32>
    %248 = arith.addf %246, %247 : vector<2x32xf32>
    %249 = arith.truncf %240 : vector<2x32xf32> to vector<2x32xbf16>
    %cst_117 = arith.constant dense<0.000000e+00> : vector<2x32xf32>
    %250 = tpu.matmul %249, %47, %cst_117 {dimension_numbers = #tpu.dot_dimension_numbers<[1], [0], [0], [1], [0, 0, 1, 1], [], []>} : vector<2x32xbf16>, vector<32x32xbf16>, vector<2x32xf32> -> vector<2x32xf32>
    %251 = vector.broadcast %53 : vector<1x32xf32> to vector<2x32xf32>
    %252 = arith.addf %250, %251 : vector<2x32xf32>
    %253 = arith.truncf %205 : vector<2x32xf32> to vector<2x32xbf16>
    %cst_118 = arith.constant dense<0.000000e+00> : vector<2x32xf32>
    %254 = tpu.matmul %253, %35, %cst_118 {dimension_numbers = #tpu.dot_dimension_numbers<[1], [0], [0], [1], [0, 0, 1, 1], [], []>} : vector<2x32xbf16>, vector<32x32xbf16>, vector<2x32xf32> -> vector<2x32xf32>
    %255 = arith.truncf %205 : vector<2x32xf32> to vector<2x32xbf16>
    %cst_119 = arith.constant dense<0.000000e+00> : vector<2x32xf32>
    %256 = tpu.matmul %255, %37, %cst_119 {dimension_numbers = #tpu.dot_dimension_numbers<[1], [0], [0], [1], [0, 0, 1, 1], [], []>} : vector<2x32xbf16>, vector<32x32xbf16>, vector<2x32xf32> -> vector<2x32xf32>
    %257 = arith.truncf %205 : vector<2x32xf32> to vector<2x32xbf16>
    %cst_120 = arith.constant dense<0.000000e+00> : vector<2x32xf32>
    %258 = tpu.matmul %257, %39, %cst_120 {dimension_numbers = #tpu.dot_dimension_numbers<[1], [0], [0], [1], [0, 0, 1, 1], [], []>} : vector<2x32xbf16>, vector<32x32xbf16>, vector<2x32xf32> -> vector<2x32xf32>
    %259 = vector.broadcast %41 : vector<1x32xf32> to vector<2x32xf32>
    %260 = arith.addf %258, %259 : vector<2x32xf32>
    %261 = arith.addf %244, %254 : vector<2x32xf32>
    %262 = arith.negf %261 : vector<2x32xf32>
    %263 = math.exp %262 : vector<2x32xf32>
    %cst_121 = arith.constant 1.000000e+00 : f32
    %264 = vector.broadcast %cst_121 : f32 to vector<2x32xf32>
    %265 = arith.addf %264, %263 : vector<2x32xf32>
    %266 = arith.divf %264, %265 : vector<2x32xf32>
    %267 = arith.addf %248, %256 : vector<2x32xf32>
    %268 = arith.negf %267 : vector<2x32xf32>
    %269 = math.exp %268 : vector<2x32xf32>
    %cst_122 = arith.constant 1.000000e+00 : f32
    %270 = vector.broadcast %cst_122 : f32 to vector<2x32xf32>
    %271 = arith.addf %270, %269 : vector<2x32xf32>
    %272 = arith.divf %270, %271 : vector<2x32xf32>
    %273 = arith.mulf %266, %260 : vector<2x32xf32>
    %274 = arith.addf %252, %273 : vector<2x32xf32>
    %275 = math.tanh %274 : vector<2x32xf32>
    %cst_123 = arith.constant 1.000000e+00 : f32
    %276 = vector.broadcast %cst_123 : f32 to vector<2x32xf32>
    %277 = arith.subf %276, %272 : vector<2x32xf32>
    %278 = arith.mulf %277, %275 : vector<2x32xf32>
    %279 = arith.mulf %272, %205 : vector<2x32xf32>
    %280 = arith.addf %278, %279 : vector<2x32xf32>
    %c3_i32 = arith.constant 3 : i32
    %c2_i32_124 = arith.constant 2 : i32
    %281 = arith.muli %c3_i32, %c2_i32_124 : i32
    %282 = arith.index_cast %281 : i32 to index
    %c0_125 = arith.constant 0 : index
    %283 = vector.load %arg12[%282, %c0_125] : memref<16x32xf32, #tpu.memory_space<vmem>>, vector<2x32xf32>
    %284 = arith.index_cast %281 : i32 to index
    %c0_126 = arith.constant 0 : index
    %285 = vector.load %arg13[%284, %c0_126] : memref<16x32xf32, #tpu.memory_space<vmem>>, vector<2x32xf32>
    %286 = arith.index_cast %281 : i32 to index
    %c0_127 = arith.constant 0 : index
    %287 = vector.load %arg14[%286, %c0_127] : memref<16x32xf32, #tpu.memory_space<vmem>>, vector<2x32xf32>
    %288 = arith.truncf %240 : vector<2x32xf32> to vector<2x32xbf16>
    %cst_128 = arith.constant dense<0.000000e+00> : vector<2x32xf32>
    %289 = tpu.matmul %288, %29, %cst_128 {dimension_numbers = #tpu.dot_dimension_numbers<[1], [0], [0], [1], [0, 0, 1, 1], [], []>} : vector<2x32xbf16>, vector<32x32xbf16>, vector<2x32xf32> -> vector<2x32xf32>
    %290 = arith.truncf %240 : vector<2x32xf32> to vector<2x32xbf16>
    %cst_129 = arith.constant dense<0.000000e+00> : vector<2x32xf32>
    %291 = tpu.matmul %290, %31, %cst_129 {dimension_numbers = #tpu.dot_dimension_numbers<[1], [0], [0], [1], [0, 0, 1, 1], [], []>} : vector<2x32xbf16>, vector<32x32xbf16>, vector<2x32xf32> -> vector<2x32xf32>
    %292 = arith.truncf %240 : vector<2x32xf32> to vector<2x32xbf16>
    %cst_130 = arith.constant dense<0.000000e+00> : vector<2x32xf32>
    %293 = tpu.matmul %292, %33, %cst_130 {dimension_numbers = #tpu.dot_dimension_numbers<[1], [0], [0], [1], [0, 0, 1, 1], [], []>} : vector<2x32xbf16>, vector<32x32xbf16>, vector<2x32xf32> -> vector<2x32xf32>
    %294 = vector.broadcast %40 : vector<1x32xf32> to vector<2x32xf32>
    %295 = arith.addf %293, %294 : vector<2x32xf32>
    %296 = arith.addf %283, %289 : vector<2x32xf32>
    %297 = arith.negf %296 : vector<2x32xf32>
    %298 = math.exp %297 : vector<2x32xf32>
    %cst_131 = arith.constant 1.000000e+00 : f32
    %299 = vector.broadcast %cst_131 : f32 to vector<2x32xf32>
    %300 = arith.addf %299, %298 : vector<2x32xf32>
    %301 = arith.divf %299, %300 : vector<2x32xf32>
    %302 = arith.addf %285, %291 : vector<2x32xf32>
    %303 = arith.negf %302 : vector<2x32xf32>
    %304 = math.exp %303 : vector<2x32xf32>
    %cst_132 = arith.constant 1.000000e+00 : f32
    %305 = vector.broadcast %cst_132 : f32 to vector<2x32xf32>
    %306 = arith.addf %305, %304 : vector<2x32xf32>
    %307 = arith.divf %305, %306 : vector<2x32xf32>
    %308 = arith.mulf %301, %295 : vector<2x32xf32>
    %309 = arith.addf %287, %308 : vector<2x32xf32>
    %310 = math.tanh %309 : vector<2x32xf32>
    %cst_133 = arith.constant 1.000000e+00 : f32
    %311 = vector.broadcast %cst_133 : f32 to vector<2x32xf32>
    %312 = arith.subf %311, %307 : vector<2x32xf32>
    %313 = arith.mulf %312, %310 : vector<2x32xf32>
    %314 = arith.mulf %307, %240 : vector<2x32xf32>
    %315 = arith.addf %313, %314 : vector<2x32xf32>
    %316 = arith.truncf %315 : vector<2x32xf32> to vector<2x32xbf16>
    %cst_134 = arith.constant dense<0.000000e+00> : vector<2x32xf32>
    %317 = tpu.matmul %316, %43, %cst_134 {dimension_numbers = #tpu.dot_dimension_numbers<[1], [0], [0], [1], [0, 0, 1, 1], [], []>} : vector<2x32xbf16>, vector<32x32xbf16>, vector<2x32xf32> -> vector<2x32xf32>
    %318 = vector.broadcast %49 : vector<1x32xf32> to vector<2x32xf32>
    %319 = arith.addf %317, %318 : vector<2x32xf32>
    %320 = arith.truncf %315 : vector<2x32xf32> to vector<2x32xbf16>
    %cst_135 = arith.constant dense<0.000000e+00> : vector<2x32xf32>
    %321 = tpu.matmul %320, %45, %cst_135 {dimension_numbers = #tpu.dot_dimension_numbers<[1], [0], [0], [1], [0, 0, 1, 1], [], []>} : vector<2x32xbf16>, vector<32x32xbf16>, vector<2x32xf32> -> vector<2x32xf32>
    %322 = vector.broadcast %51 : vector<1x32xf32> to vector<2x32xf32>
    %323 = arith.addf %321, %322 : vector<2x32xf32>
    %324 = arith.truncf %315 : vector<2x32xf32> to vector<2x32xbf16>
    %cst_136 = arith.constant dense<0.000000e+00> : vector<2x32xf32>
    %325 = tpu.matmul %324, %47, %cst_136 {dimension_numbers = #tpu.dot_dimension_numbers<[1], [0], [0], [1], [0, 0, 1, 1], [], []>} : vector<2x32xbf16>, vector<32x32xbf16>, vector<2x32xf32> -> vector<2x32xf32>
    %326 = vector.broadcast %53 : vector<1x32xf32> to vector<2x32xf32>
    %327 = arith.addf %325, %326 : vector<2x32xf32>
    %328 = arith.truncf %280 : vector<2x32xf32> to vector<2x32xbf16>
    %cst_137 = arith.constant dense<0.000000e+00> : vector<2x32xf32>
    %329 = tpu.matmul %328, %35, %cst_137 {dimension_numbers = #tpu.dot_dimension_numbers<[1], [0], [0], [1], [0, 0, 1, 1], [], []>} : vector<2x32xbf16>, vector<32x32xbf16>, vector<2x32xf32> -> vector<2x32xf32>
    %330 = arith.truncf %280 : vector<2x32xf32> to vector<2x32xbf16>
    %cst_138 = arith.constant dense<0.000000e+00> : vector<2x32xf32>
    %331 = tpu.matmul %330, %37, %cst_138 {dimension_numbers = #tpu.dot_dimension_numbers<[1], [0], [0], [1], [0, 0, 1, 1], [], []>} : vector<2x32xbf16>, vector<32x32xbf16>, vector<2x32xf32> -> vector<2x32xf32>
    %332 = arith.truncf %280 : vector<2x32xf32> to vector<2x32xbf16>
    %cst_139 = arith.constant dense<0.000000e+00> : vector<2x32xf32>
    %333 = tpu.matmul %332, %39, %cst_139 {dimension_numbers = #tpu.dot_dimension_numbers<[1], [0], [0], [1], [0, 0, 1, 1], [], []>} : vector<2x32xbf16>, vector<32x32xbf16>, vector<2x32xf32> -> vector<2x32xf32>
    %334 = vector.broadcast %41 : vector<1x32xf32> to vector<2x32xf32>
    %335 = arith.addf %333, %334 : vector<2x32xf32>
    %336 = arith.addf %319, %329 : vector<2x32xf32>
    %337 = arith.negf %336 : vector<2x32xf32>
    %338 = math.exp %337 : vector<2x32xf32>
    %cst_140 = arith.constant 1.000000e+00 : f32
    %339 = vector.broadcast %cst_140 : f32 to vector<2x32xf32>
    %340 = arith.addf %339, %338 : vector<2x32xf32>
    %341 = arith.divf %339, %340 : vector<2x32xf32>
    %342 = arith.addf %323, %331 : vector<2x32xf32>
    %343 = arith.negf %342 : vector<2x32xf32>
    %344 = math.exp %343 : vector<2x32xf32>
    %cst_141 = arith.constant 1.000000e+00 : f32
    %345 = vector.broadcast %cst_141 : f32 to vector<2x32xf32>
    %346 = arith.addf %345, %344 : vector<2x32xf32>
    %347 = arith.divf %345, %346 : vector<2x32xf32>
    %348 = arith.mulf %341, %335 : vector<2x32xf32>
    %349 = arith.addf %327, %348 : vector<2x32xf32>
    %350 = math.tanh %349 : vector<2x32xf32>
    %cst_142 = arith.constant 1.000000e+00 : f32
    %351 = vector.broadcast %cst_142 : f32 to vector<2x32xf32>
    %352 = arith.subf %351, %347 : vector<2x32xf32>
    %353 = arith.mulf %352, %350 : vector<2x32xf32>
    %354 = arith.mulf %347, %280 : vector<2x32xf32>
    %355 = arith.addf %353, %354 : vector<2x32xf32>
    %c4_i32 = arith.constant 4 : i32
    %c2_i32_143 = arith.constant 2 : i32
    %356 = arith.muli %c4_i32, %c2_i32_143 : i32
    %357 = arith.index_cast %356 : i32 to index
    %c0_144 = arith.constant 0 : index
    %358 = vector.load %arg12[%357, %c0_144] : memref<16x32xf32, #tpu.memory_space<vmem>>, vector<2x32xf32>
    %359 = arith.index_cast %356 : i32 to index
    %c0_145 = arith.constant 0 : index
    %360 = vector.load %arg13[%359, %c0_145] : memref<16x32xf32, #tpu.memory_space<vmem>>, vector<2x32xf32>
    %361 = arith.index_cast %356 : i32 to index
    %c0_146 = arith.constant 0 : index
    %362 = vector.load %arg14[%361, %c0_146] : memref<16x32xf32, #tpu.memory_space<vmem>>, vector<2x32xf32>
    %363 = arith.truncf %315 : vector<2x32xf32> to vector<2x32xbf16>
    %cst_147 = arith.constant dense<0.000000e+00> : vector<2x32xf32>
    %364 = tpu.matmul %363, %29, %cst_147 {dimension_numbers = #tpu.dot_dimension_numbers<[1], [0], [0], [1], [0, 0, 1, 1], [], []>} : vector<2x32xbf16>, vector<32x32xbf16>, vector<2x32xf32> -> vector<2x32xf32>
    %365 = arith.truncf %315 : vector<2x32xf32> to vector<2x32xbf16>
    %cst_148 = arith.constant dense<0.000000e+00> : vector<2x32xf32>
    %366 = tpu.matmul %365, %31, %cst_148 {dimension_numbers = #tpu.dot_dimension_numbers<[1], [0], [0], [1], [0, 0, 1, 1], [], []>} : vector<2x32xbf16>, vector<32x32xbf16>, vector<2x32xf32> -> vector<2x32xf32>
    %367 = arith.truncf %315 : vector<2x32xf32> to vector<2x32xbf16>
    %cst_149 = arith.constant dense<0.000000e+00> : vector<2x32xf32>
    %368 = tpu.matmul %367, %33, %cst_149 {dimension_numbers = #tpu.dot_dimension_numbers<[1], [0], [0], [1], [0, 0, 1, 1], [], []>} : vector<2x32xbf16>, vector<32x32xbf16>, vector<2x32xf32> -> vector<2x32xf32>
    %369 = vector.broadcast %40 : vector<1x32xf32> to vector<2x32xf32>
    %370 = arith.addf %368, %369 : vector<2x32xf32>
    %371 = arith.addf %358, %364 : vector<2x32xf32>
    %372 = arith.negf %371 : vector<2x32xf32>
    %373 = math.exp %372 : vector<2x32xf32>
    %cst_150 = arith.constant 1.000000e+00 : f32
    %374 = vector.broadcast %cst_150 : f32 to vector<2x32xf32>
    %375 = arith.addf %374, %373 : vector<2x32xf32>
    %376 = arith.divf %374, %375 : vector<2x32xf32>
    %377 = arith.addf %360, %366 : vector<2x32xf32>
    %378 = arith.negf %377 : vector<2x32xf32>
    %379 = math.exp %378 : vector<2x32xf32>
    %cst_151 = arith.constant 1.000000e+00 : f32
    %380 = vector.broadcast %cst_151 : f32 to vector<2x32xf32>
    %381 = arith.addf %380, %379 : vector<2x32xf32>
    %382 = arith.divf %380, %381 : vector<2x32xf32>
    %383 = arith.mulf %376, %370 : vector<2x32xf32>
    %384 = arith.addf %362, %383 : vector<2x32xf32>
    %385 = math.tanh %384 : vector<2x32xf32>
    %cst_152 = arith.constant 1.000000e+00 : f32
    %386 = vector.broadcast %cst_152 : f32 to vector<2x32xf32>
    %387 = arith.subf %386, %382 : vector<2x32xf32>
    %388 = arith.mulf %387, %385 : vector<2x32xf32>
    %389 = arith.mulf %382, %315 : vector<2x32xf32>
    %390 = arith.addf %388, %389 : vector<2x32xf32>
    %391 = arith.truncf %390 : vector<2x32xf32> to vector<2x32xbf16>
    %cst_153 = arith.constant dense<0.000000e+00> : vector<2x32xf32>
    %392 = tpu.matmul %391, %43, %cst_153 {dimension_numbers = #tpu.dot_dimension_numbers<[1], [0], [0], [1], [0, 0, 1, 1], [], []>} : vector<2x32xbf16>, vector<32x32xbf16>, vector<2x32xf32> -> vector<2x32xf32>
    %393 = vector.broadcast %49 : vector<1x32xf32> to vector<2x32xf32>
    %394 = arith.addf %392, %393 : vector<2x32xf32>
    %395 = arith.truncf %390 : vector<2x32xf32> to vector<2x32xbf16>
    %cst_154 = arith.constant dense<0.000000e+00> : vector<2x32xf32>
    %396 = tpu.matmul %395, %45, %cst_154 {dimension_numbers = #tpu.dot_dimension_numbers<[1], [0], [0], [1], [0, 0, 1, 1], [], []>} : vector<2x32xbf16>, vector<32x32xbf16>, vector<2x32xf32> -> vector<2x32xf32>
    %397 = vector.broadcast %51 : vector<1x32xf32> to vector<2x32xf32>
    %398 = arith.addf %396, %397 : vector<2x32xf32>
    %399 = arith.truncf %390 : vector<2x32xf32> to vector<2x32xbf16>
    %cst_155 = arith.constant dense<0.000000e+00> : vector<2x32xf32>
    %400 = tpu.matmul %399, %47, %cst_155 {dimension_numbers = #tpu.dot_dimension_numbers<[1], [0], [0], [1], [0, 0, 1, 1], [], []>} : vector<2x32xbf16>, vector<32x32xbf16>, vector<2x32xf32> -> vector<2x32xf32>
    %401 = vector.broadcast %53 : vector<1x32xf32> to vector<2x32xf32>
    %402 = arith.addf %400, %401 : vector<2x32xf32>
    %403 = arith.truncf %355 : vector<2x32xf32> to vector<2x32xbf16>
    %cst_156 = arith.constant dense<0.000000e+00> : vector<2x32xf32>
    %404 = tpu.matmul %403, %35, %cst_156 {dimension_numbers = #tpu.dot_dimension_numbers<[1], [0], [0], [1], [0, 0, 1, 1], [], []>} : vector<2x32xbf16>, vector<32x32xbf16>, vector<2x32xf32> -> vector<2x32xf32>
    %405 = arith.truncf %355 : vector<2x32xf32> to vector<2x32xbf16>
    %cst_157 = arith.constant dense<0.000000e+00> : vector<2x32xf32>
    %406 = tpu.matmul %405, %37, %cst_157 {dimension_numbers = #tpu.dot_dimension_numbers<[1], [0], [0], [1], [0, 0, 1, 1], [], []>} : vector<2x32xbf16>, vector<32x32xbf16>, vector<2x32xf32> -> vector<2x32xf32>
    %407 = arith.truncf %355 : vector<2x32xf32> to vector<2x32xbf16>
    %cst_158 = arith.constant dense<0.000000e+00> : vector<2x32xf32>
    %408 = tpu.matmul %407, %39, %cst_158 {dimension_numbers = #tpu.dot_dimension_numbers<[1], [0], [0], [1], [0, 0, 1, 1], [], []>} : vector<2x32xbf16>, vector<32x32xbf16>, vector<2x32xf32> -> vector<2x32xf32>
    %409 = vector.broadcast %41 : vector<1x32xf32> to vector<2x32xf32>
    %410 = arith.addf %408, %409 : vector<2x32xf32>
    %411 = arith.addf %394, %404 : vector<2x32xf32>
    %412 = arith.negf %411 : vector<2x32xf32>
    %413 = math.exp %412 : vector<2x32xf32>
    %cst_159 = arith.constant 1.000000e+00 : f32
    %414 = vector.broadcast %cst_159 : f32 to vector<2x32xf32>
    %415 = arith.addf %414, %413 : vector<2x32xf32>
    %416 = arith.divf %414, %415 : vector<2x32xf32>
    %417 = arith.addf %398, %406 : vector<2x32xf32>
    %418 = arith.negf %417 : vector<2x32xf32>
    %419 = math.exp %418 : vector<2x32xf32>
    %cst_160 = arith.constant 1.000000e+00 : f32
    %420 = vector.broadcast %cst_160 : f32 to vector<2x32xf32>
    %421 = arith.addf %420, %419 : vector<2x32xf32>
    %422 = arith.divf %420, %421 : vector<2x32xf32>
    %423 = arith.mulf %416, %410 : vector<2x32xf32>
    %424 = arith.addf %402, %423 : vector<2x32xf32>
    %425 = math.tanh %424 : vector<2x32xf32>
    %cst_161 = arith.constant 1.000000e+00 : f32
    %426 = vector.broadcast %cst_161 : f32 to vector<2x32xf32>
    %427 = arith.subf %426, %422 : vector<2x32xf32>
    %428 = arith.mulf %427, %425 : vector<2x32xf32>
    %429 = arith.mulf %422, %355 : vector<2x32xf32>
    %430 = arith.addf %428, %429 : vector<2x32xf32>
    %c5_i32 = arith.constant 5 : i32
    %c2_i32_162 = arith.constant 2 : i32
    %431 = arith.muli %c5_i32, %c2_i32_162 : i32
    %432 = arith.index_cast %431 : i32 to index
    %c0_163 = arith.constant 0 : index
    %433 = vector.load %arg12[%432, %c0_163] : memref<16x32xf32, #tpu.memory_space<vmem>>, vector<2x32xf32>
    %434 = arith.index_cast %431 : i32 to index
    %c0_164 = arith.constant 0 : index
    %435 = vector.load %arg13[%434, %c0_164] : memref<16x32xf32, #tpu.memory_space<vmem>>, vector<2x32xf32>
    %436 = arith.index_cast %431 : i32 to index
    %c0_165 = arith.constant 0 : index
    %437 = vector.load %arg14[%436, %c0_165] : memref<16x32xf32, #tpu.memory_space<vmem>>, vector<2x32xf32>
    %438 = arith.truncf %390 : vector<2x32xf32> to vector<2x32xbf16>
    %cst_166 = arith.constant dense<0.000000e+00> : vector<2x32xf32>
    %439 = tpu.matmul %438, %29, %cst_166 {dimension_numbers = #tpu.dot_dimension_numbers<[1], [0], [0], [1], [0, 0, 1, 1], [], []>} : vector<2x32xbf16>, vector<32x32xbf16>, vector<2x32xf32> -> vector<2x32xf32>
    %440 = arith.truncf %390 : vector<2x32xf32> to vector<2x32xbf16>
    %cst_167 = arith.constant dense<0.000000e+00> : vector<2x32xf32>
    %441 = tpu.matmul %440, %31, %cst_167 {dimension_numbers = #tpu.dot_dimension_numbers<[1], [0], [0], [1], [0, 0, 1, 1], [], []>} : vector<2x32xbf16>, vector<32x32xbf16>, vector<2x32xf32> -> vector<2x32xf32>
    %442 = arith.truncf %390 : vector<2x32xf32> to vector<2x32xbf16>
    %cst_168 = arith.constant dense<0.000000e+00> : vector<2x32xf32>
    %443 = tpu.matmul %442, %33, %cst_168 {dimension_numbers = #tpu.dot_dimension_numbers<[1], [0], [0], [1], [0, 0, 1, 1], [], []>} : vector<2x32xbf16>, vector<32x32xbf16>, vector<2x32xf32> -> vector<2x32xf32>
    %444 = vector.broadcast %40 : vector<1x32xf32> to vector<2x32xf32>
    %445 = arith.addf %443, %444 : vector<2x32xf32>
    %446 = arith.addf %433, %439 : vector<2x32xf32>
    %447 = arith.negf %446 : vector<2x32xf32>
    %448 = math.exp %447 : vector<2x32xf32>
    %cst_169 = arith.constant 1.000000e+00 : f32
    %449 = vector.broadcast %cst_169 : f32 to vector<2x32xf32>
    %450 = arith.addf %449, %448 : vector<2x32xf32>
    %451 = arith.divf %449, %450 : vector<2x32xf32>
    %452 = arith.addf %435, %441 : vector<2x32xf32>
    %453 = arith.negf %452 : vector<2x32xf32>
    %454 = math.exp %453 : vector<2x32xf32>
    %cst_170 = arith.constant 1.000000e+00 : f32
    %455 = vector.broadcast %cst_170 : f32 to vector<2x32xf32>
    %456 = arith.addf %455, %454 : vector<2x32xf32>
    %457 = arith.divf %455, %456 : vector<2x32xf32>
    %458 = arith.mulf %451, %445 : vector<2x32xf32>
    %459 = arith.addf %437, %458 : vector<2x32xf32>
    %460 = math.tanh %459 : vector<2x32xf32>
    %cst_171 = arith.constant 1.000000e+00 : f32
    %461 = vector.broadcast %cst_171 : f32 to vector<2x32xf32>
    %462 = arith.subf %461, %457 : vector<2x32xf32>
    %463 = arith.mulf %462, %460 : vector<2x32xf32>
    %464 = arith.mulf %457, %390 : vector<2x32xf32>
    %465 = arith.addf %463, %464 : vector<2x32xf32>
    %466 = arith.truncf %465 : vector<2x32xf32> to vector<2x32xbf16>
    %cst_172 = arith.constant dense<0.000000e+00> : vector<2x32xf32>
    %467 = tpu.matmul %466, %43, %cst_172 {dimension_numbers = #tpu.dot_dimension_numbers<[1], [0], [0], [1], [0, 0, 1, 1], [], []>} : vector<2x32xbf16>, vector<32x32xbf16>, vector<2x32xf32> -> vector<2x32xf32>
    %468 = vector.broadcast %49 : vector<1x32xf32> to vector<2x32xf32>
    %469 = arith.addf %467, %468 : vector<2x32xf32>
    %470 = arith.truncf %465 : vector<2x32xf32> to vector<2x32xbf16>
    %cst_173 = arith.constant dense<0.000000e+00> : vector<2x32xf32>
    %471 = tpu.matmul %470, %45, %cst_173 {dimension_numbers = #tpu.dot_dimension_numbers<[1], [0], [0], [1], [0, 0, 1, 1], [], []>} : vector<2x32xbf16>, vector<32x32xbf16>, vector<2x32xf32> -> vector<2x32xf32>
    %472 = vector.broadcast %51 : vector<1x32xf32> to vector<2x32xf32>
    %473 = arith.addf %471, %472 : vector<2x32xf32>
    %474 = arith.truncf %465 : vector<2x32xf32> to vector<2x32xbf16>
    %cst_174 = arith.constant dense<0.000000e+00> : vector<2x32xf32>
    %475 = tpu.matmul %474, %47, %cst_174 {dimension_numbers = #tpu.dot_dimension_numbers<[1], [0], [0], [1], [0, 0, 1, 1], [], []>} : vector<2x32xbf16>, vector<32x32xbf16>, vector<2x32xf32> -> vector<2x32xf32>
    %476 = vector.broadcast %53 : vector<1x32xf32> to vector<2x32xf32>
    %477 = arith.addf %475, %476 : vector<2x32xf32>
    %478 = arith.truncf %430 : vector<2x32xf32> to vector<2x32xbf16>
    %cst_175 = arith.constant dense<0.000000e+00> : vector<2x32xf32>
    %479 = tpu.matmul %478, %35, %cst_175 {dimension_numbers = #tpu.dot_dimension_numbers<[1], [0], [0], [1], [0, 0, 1, 1], [], []>} : vector<2x32xbf16>, vector<32x32xbf16>, vector<2x32xf32> -> vector<2x32xf32>
    %480 = arith.truncf %430 : vector<2x32xf32> to vector<2x32xbf16>
    %cst_176 = arith.constant dense<0.000000e+00> : vector<2x32xf32>
    %481 = tpu.matmul %480, %37, %cst_176 {dimension_numbers = #tpu.dot_dimension_numbers<[1], [0], [0], [1], [0, 0, 1, 1], [], []>} : vector<2x32xbf16>, vector<32x32xbf16>, vector<2x32xf32> -> vector<2x32xf32>
    %482 = arith.truncf %430 : vector<2x32xf32> to vector<2x32xbf16>
    %cst_177 = arith.constant dense<0.000000e+00> : vector<2x32xf32>
    %483 = tpu.matmul %482, %39, %cst_177 {dimension_numbers = #tpu.dot_dimension_numbers<[1], [0], [0], [1], [0, 0, 1, 1], [], []>} : vector<2x32xbf16>, vector<32x32xbf16>, vector<2x32xf32> -> vector<2x32xf32>
    %484 = vector.broadcast %41 : vector<1x32xf32> to vector<2x32xf32>
    %485 = arith.addf %483, %484 : vector<2x32xf32>
    %486 = arith.addf %469, %479 : vector<2x32xf32>
    %487 = arith.negf %486 : vector<2x32xf32>
    %488 = math.exp %487 : vector<2x32xf32>
    %cst_178 = arith.constant 1.000000e+00 : f32
    %489 = vector.broadcast %cst_178 : f32 to vector<2x32xf32>
    %490 = arith.addf %489, %488 : vector<2x32xf32>
    %491 = arith.divf %489, %490 : vector<2x32xf32>
    %492 = arith.addf %473, %481 : vector<2x32xf32>
    %493 = arith.negf %492 : vector<2x32xf32>
    %494 = math.exp %493 : vector<2x32xf32>
    %cst_179 = arith.constant 1.000000e+00 : f32
    %495 = vector.broadcast %cst_179 : f32 to vector<2x32xf32>
    %496 = arith.addf %495, %494 : vector<2x32xf32>
    %497 = arith.divf %495, %496 : vector<2x32xf32>
    %498 = arith.mulf %491, %485 : vector<2x32xf32>
    %499 = arith.addf %477, %498 : vector<2x32xf32>
    %500 = math.tanh %499 : vector<2x32xf32>
    %cst_180 = arith.constant 1.000000e+00 : f32
    %501 = vector.broadcast %cst_180 : f32 to vector<2x32xf32>
    %502 = arith.subf %501, %497 : vector<2x32xf32>
    %503 = arith.mulf %502, %500 : vector<2x32xf32>
    %504 = arith.mulf %497, %430 : vector<2x32xf32>
    %505 = arith.addf %503, %504 : vector<2x32xf32>
    %c6_i32 = arith.constant 6 : i32
    %c2_i32_181 = arith.constant 2 : i32
    %506 = arith.muli %c6_i32, %c2_i32_181 : i32
    %507 = arith.index_cast %506 : i32 to index
    %c0_182 = arith.constant 0 : index
    %508 = vector.load %arg12[%507, %c0_182] : memref<16x32xf32, #tpu.memory_space<vmem>>, vector<2x32xf32>
    %509 = arith.index_cast %506 : i32 to index
    %c0_183 = arith.constant 0 : index
    %510 = vector.load %arg13[%509, %c0_183] : memref<16x32xf32, #tpu.memory_space<vmem>>, vector<2x32xf32>
    %511 = arith.index_cast %506 : i32 to index
    %c0_184 = arith.constant 0 : index
    %512 = vector.load %arg14[%511, %c0_184] : memref<16x32xf32, #tpu.memory_space<vmem>>, vector<2x32xf32>
    %513 = arith.truncf %465 : vector<2x32xf32> to vector<2x32xbf16>
    %cst_185 = arith.constant dense<0.000000e+00> : vector<2x32xf32>
    %514 = tpu.matmul %513, %29, %cst_185 {dimension_numbers = #tpu.dot_dimension_numbers<[1], [0], [0], [1], [0, 0, 1, 1], [], []>} : vector<2x32xbf16>, vector<32x32xbf16>, vector<2x32xf32> -> vector<2x32xf32>
    %515 = arith.truncf %465 : vector<2x32xf32> to vector<2x32xbf16>
    %cst_186 = arith.constant dense<0.000000e+00> : vector<2x32xf32>
    %516 = tpu.matmul %515, %31, %cst_186 {dimension_numbers = #tpu.dot_dimension_numbers<[1], [0], [0], [1], [0, 0, 1, 1], [], []>} : vector<2x32xbf16>, vector<32x32xbf16>, vector<2x32xf32> -> vector<2x32xf32>
    %517 = arith.truncf %465 : vector<2x32xf32> to vector<2x32xbf16>
    %cst_187 = arith.constant dense<0.000000e+00> : vector<2x32xf32>
    %518 = tpu.matmul %517, %33, %cst_187 {dimension_numbers = #tpu.dot_dimension_numbers<[1], [0], [0], [1], [0, 0, 1, 1], [], []>} : vector<2x32xbf16>, vector<32x32xbf16>, vector<2x32xf32> -> vector<2x32xf32>
    %519 = vector.broadcast %40 : vector<1x32xf32> to vector<2x32xf32>
    %520 = arith.addf %518, %519 : vector<2x32xf32>
    %521 = arith.addf %508, %514 : vector<2x32xf32>
    %522 = arith.negf %521 : vector<2x32xf32>
    %523 = math.exp %522 : vector<2x32xf32>
    %cst_188 = arith.constant 1.000000e+00 : f32
    %524 = vector.broadcast %cst_188 : f32 to vector<2x32xf32>
    %525 = arith.addf %524, %523 : vector<2x32xf32>
    %526 = arith.divf %524, %525 : vector<2x32xf32>
    %527 = arith.addf %510, %516 : vector<2x32xf32>
    %528 = arith.negf %527 : vector<2x32xf32>
    %529 = math.exp %528 : vector<2x32xf32>
    %cst_189 = arith.constant 1.000000e+00 : f32
    %530 = vector.broadcast %cst_189 : f32 to vector<2x32xf32>
    %531 = arith.addf %530, %529 : vector<2x32xf32>
    %532 = arith.divf %530, %531 : vector<2x32xf32>
    %533 = arith.mulf %526, %520 : vector<2x32xf32>
    %534 = arith.addf %512, %533 : vector<2x32xf32>
    %535 = math.tanh %534 : vector<2x32xf32>
    %cst_190 = arith.constant 1.000000e+00 : f32
    %536 = vector.broadcast %cst_190 : f32 to vector<2x32xf32>
    %537 = arith.subf %536, %532 : vector<2x32xf32>
    %538 = arith.mulf %537, %535 : vector<2x32xf32>
    %539 = arith.mulf %532, %465 : vector<2x32xf32>
    %540 = arith.addf %538, %539 : vector<2x32xf32>
    %541 = arith.truncf %540 : vector<2x32xf32> to vector<2x32xbf16>
    %cst_191 = arith.constant dense<0.000000e+00> : vector<2x32xf32>
    %542 = tpu.matmul %541, %43, %cst_191 {dimension_numbers = #tpu.dot_dimension_numbers<[1], [0], [0], [1], [0, 0, 1, 1], [], []>} : vector<2x32xbf16>, vector<32x32xbf16>, vector<2x32xf32> -> vector<2x32xf32>
    %543 = vector.broadcast %49 : vector<1x32xf32> to vector<2x32xf32>
    %544 = arith.addf %542, %543 : vector<2x32xf32>
    %545 = arith.truncf %540 : vector<2x32xf32> to vector<2x32xbf16>
    %cst_192 = arith.constant dense<0.000000e+00> : vector<2x32xf32>
    %546 = tpu.matmul %545, %45, %cst_192 {dimension_numbers = #tpu.dot_dimension_numbers<[1], [0], [0], [1], [0, 0, 1, 1], [], []>} : vector<2x32xbf16>, vector<32x32xbf16>, vector<2x32xf32> -> vector<2x32xf32>
    %547 = vector.broadcast %51 : vector<1x32xf32> to vector<2x32xf32>
    %548 = arith.addf %546, %547 : vector<2x32xf32>
    %549 = arith.truncf %540 : vector<2x32xf32> to vector<2x32xbf16>
    %cst_193 = arith.constant dense<0.000000e+00> : vector<2x32xf32>
    %550 = tpu.matmul %549, %47, %cst_193 {dimension_numbers = #tpu.dot_dimension_numbers<[1], [0], [0], [1], [0, 0, 1, 1], [], []>} : vector<2x32xbf16>, vector<32x32xbf16>, vector<2x32xf32> -> vector<2x32xf32>
    %551 = vector.broadcast %53 : vector<1x32xf32> to vector<2x32xf32>
    %552 = arith.addf %550, %551 : vector<2x32xf32>
    %553 = arith.truncf %505 : vector<2x32xf32> to vector<2x32xbf16>
    %cst_194 = arith.constant dense<0.000000e+00> : vector<2x32xf32>
    %554 = tpu.matmul %553, %35, %cst_194 {dimension_numbers = #tpu.dot_dimension_numbers<[1], [0], [0], [1], [0, 0, 1, 1], [], []>} : vector<2x32xbf16>, vector<32x32xbf16>, vector<2x32xf32> -> vector<2x32xf32>
    %555 = arith.truncf %505 : vector<2x32xf32> to vector<2x32xbf16>
    %cst_195 = arith.constant dense<0.000000e+00> : vector<2x32xf32>
    %556 = tpu.matmul %555, %37, %cst_195 {dimension_numbers = #tpu.dot_dimension_numbers<[1], [0], [0], [1], [0, 0, 1, 1], [], []>} : vector<2x32xbf16>, vector<32x32xbf16>, vector<2x32xf32> -> vector<2x32xf32>
    %557 = arith.truncf %505 : vector<2x32xf32> to vector<2x32xbf16>
    %cst_196 = arith.constant dense<0.000000e+00> : vector<2x32xf32>
    %558 = tpu.matmul %557, %39, %cst_196 {dimension_numbers = #tpu.dot_dimension_numbers<[1], [0], [0], [1], [0, 0, 1, 1], [], []>} : vector<2x32xbf16>, vector<32x32xbf16>, vector<2x32xf32> -> vector<2x32xf32>
    %559 = vector.broadcast %41 : vector<1x32xf32> to vector<2x32xf32>
    %560 = arith.addf %558, %559 : vector<2x32xf32>
    %561 = arith.addf %544, %554 : vector<2x32xf32>
    %562 = arith.negf %561 : vector<2x32xf32>
    %563 = math.exp %562 : vector<2x32xf32>
    %cst_197 = arith.constant 1.000000e+00 : f32
    %564 = vector.broadcast %cst_197 : f32 to vector<2x32xf32>
    %565 = arith.addf %564, %563 : vector<2x32xf32>
    %566 = arith.divf %564, %565 : vector<2x32xf32>
    %567 = arith.addf %548, %556 : vector<2x32xf32>
    %568 = arith.negf %567 : vector<2x32xf32>
    %569 = math.exp %568 : vector<2x32xf32>
    %cst_198 = arith.constant 1.000000e+00 : f32
    %570 = vector.broadcast %cst_198 : f32 to vector<2x32xf32>
    %571 = arith.addf %570, %569 : vector<2x32xf32>
    %572 = arith.divf %570, %571 : vector<2x32xf32>
    %573 = arith.mulf %566, %560 : vector<2x32xf32>
    %574 = arith.addf %552, %573 : vector<2x32xf32>
    %575 = math.tanh %574 : vector<2x32xf32>
    %cst_199 = arith.constant 1.000000e+00 : f32
    %576 = vector.broadcast %cst_199 : f32 to vector<2x32xf32>
    %577 = arith.subf %576, %572 : vector<2x32xf32>
    %578 = arith.mulf %577, %575 : vector<2x32xf32>
    %579 = arith.mulf %572, %505 : vector<2x32xf32>
    %580 = arith.addf %578, %579 : vector<2x32xf32>
    %c7_i32 = arith.constant 7 : i32
    %c2_i32_200 = arith.constant 2 : i32
    %581 = arith.muli %c7_i32, %c2_i32_200 : i32
    %582 = arith.index_cast %581 : i32 to index
    %c0_201 = arith.constant 0 : index
    %583 = vector.load %arg12[%582, %c0_201] : memref<16x32xf32, #tpu.memory_space<vmem>>, vector<2x32xf32>
    %584 = arith.index_cast %581 : i32 to index
    %c0_202 = arith.constant 0 : index
    %585 = vector.load %arg13[%584, %c0_202] : memref<16x32xf32, #tpu.memory_space<vmem>>, vector<2x32xf32>
    %586 = arith.index_cast %581 : i32 to index
    %c0_203 = arith.constant 0 : index
    %587 = vector.load %arg14[%586, %c0_203] : memref<16x32xf32, #tpu.memory_space<vmem>>, vector<2x32xf32>
    %588 = arith.truncf %540 : vector<2x32xf32> to vector<2x32xbf16>
    %cst_204 = arith.constant dense<0.000000e+00> : vector<2x32xf32>
    %589 = tpu.matmul %588, %29, %cst_204 {dimension_numbers = #tpu.dot_dimension_numbers<[1], [0], [0], [1], [0, 0, 1, 1], [], []>} : vector<2x32xbf16>, vector<32x32xbf16>, vector<2x32xf32> -> vector<2x32xf32>
    %590 = arith.truncf %540 : vector<2x32xf32> to vector<2x32xbf16>
    %cst_205 = arith.constant dense<0.000000e+00> : vector<2x32xf32>
    %591 = tpu.matmul %590, %31, %cst_205 {dimension_numbers = #tpu.dot_dimension_numbers<[1], [0], [0], [1], [0, 0, 1, 1], [], []>} : vector<2x32xbf16>, vector<32x32xbf16>, vector<2x32xf32> -> vector<2x32xf32>
    %592 = arith.truncf %540 : vector<2x32xf32> to vector<2x32xbf16>
    %cst_206 = arith.constant dense<0.000000e+00> : vector<2x32xf32>
    %593 = tpu.matmul %592, %33, %cst_206 {dimension_numbers = #tpu.dot_dimension_numbers<[1], [0], [0], [1], [0, 0, 1, 1], [], []>} : vector<2x32xbf16>, vector<32x32xbf16>, vector<2x32xf32> -> vector<2x32xf32>
    %594 = vector.broadcast %40 : vector<1x32xf32> to vector<2x32xf32>
    %595 = arith.addf %593, %594 : vector<2x32xf32>
    %596 = arith.addf %583, %589 : vector<2x32xf32>
    %597 = arith.negf %596 : vector<2x32xf32>
    %598 = math.exp %597 : vector<2x32xf32>
    %cst_207 = arith.constant 1.000000e+00 : f32
    %599 = vector.broadcast %cst_207 : f32 to vector<2x32xf32>
    %600 = arith.addf %599, %598 : vector<2x32xf32>
    %601 = arith.divf %599, %600 : vector<2x32xf32>
    %602 = arith.addf %585, %591 : vector<2x32xf32>
    %603 = arith.negf %602 : vector<2x32xf32>
    %604 = math.exp %603 : vector<2x32xf32>
    %cst_208 = arith.constant 1.000000e+00 : f32
    %605 = vector.broadcast %cst_208 : f32 to vector<2x32xf32>
    %606 = arith.addf %605, %604 : vector<2x32xf32>
    %607 = arith.divf %605, %606 : vector<2x32xf32>
    %608 = arith.mulf %601, %595 : vector<2x32xf32>
    %609 = arith.addf %587, %608 : vector<2x32xf32>
    %610 = math.tanh %609 : vector<2x32xf32>
    %cst_209 = arith.constant 1.000000e+00 : f32
    %611 = vector.broadcast %cst_209 : f32 to vector<2x32xf32>
    %612 = arith.subf %611, %607 : vector<2x32xf32>
    %613 = arith.mulf %612, %610 : vector<2x32xf32>
    %614 = arith.mulf %607, %540 : vector<2x32xf32>
    %615 = arith.addf %613, %614 : vector<2x32xf32>
    %616 = arith.truncf %615 : vector<2x32xf32> to vector<2x32xbf16>
    %cst_210 = arith.constant dense<0.000000e+00> : vector<2x32xf32>
    %617 = tpu.matmul %616, %43, %cst_210 {dimension_numbers = #tpu.dot_dimension_numbers<[1], [0], [0], [1], [0, 0, 1, 1], [], []>} : vector<2x32xbf16>, vector<32x32xbf16>, vector<2x32xf32> -> vector<2x32xf32>
    %618 = vector.broadcast %49 : vector<1x32xf32> to vector<2x32xf32>
    %619 = arith.addf %617, %618 : vector<2x32xf32>
    %620 = arith.truncf %615 : vector<2x32xf32> to vector<2x32xbf16>
    %cst_211 = arith.constant dense<0.000000e+00> : vector<2x32xf32>
    %621 = tpu.matmul %620, %45, %cst_211 {dimension_numbers = #tpu.dot_dimension_numbers<[1], [0], [0], [1], [0, 0, 1, 1], [], []>} : vector<2x32xbf16>, vector<32x32xbf16>, vector<2x32xf32> -> vector<2x32xf32>
    %622 = vector.broadcast %51 : vector<1x32xf32> to vector<2x32xf32>
    %623 = arith.addf %621, %622 : vector<2x32xf32>
    %624 = arith.truncf %615 : vector<2x32xf32> to vector<2x32xbf16>
    %cst_212 = arith.constant dense<0.000000e+00> : vector<2x32xf32>
    %625 = tpu.matmul %624, %47, %cst_212 {dimension_numbers = #tpu.dot_dimension_numbers<[1], [0], [0], [1], [0, 0, 1, 1], [], []>} : vector<2x32xbf16>, vector<32x32xbf16>, vector<2x32xf32> -> vector<2x32xf32>
    %626 = vector.broadcast %53 : vector<1x32xf32> to vector<2x32xf32>
    %627 = arith.addf %625, %626 : vector<2x32xf32>
    %628 = arith.truncf %580 : vector<2x32xf32> to vector<2x32xbf16>
    %cst_213 = arith.constant dense<0.000000e+00> : vector<2x32xf32>
    %629 = tpu.matmul %628, %35, %cst_213 {dimension_numbers = #tpu.dot_dimension_numbers<[1], [0], [0], [1], [0, 0, 1, 1], [], []>} : vector<2x32xbf16>, vector<32x32xbf16>, vector<2x32xf32> -> vector<2x32xf32>
    %630 = arith.truncf %580 : vector<2x32xf32> to vector<2x32xbf16>
    %cst_214 = arith.constant dense<0.000000e+00> : vector<2x32xf32>
    %631 = tpu.matmul %630, %37, %cst_214 {dimension_numbers = #tpu.dot_dimension_numbers<[1], [0], [0], [1], [0, 0, 1, 1], [], []>} : vector<2x32xbf16>, vector<32x32xbf16>, vector<2x32xf32> -> vector<2x32xf32>
    %632 = arith.truncf %580 : vector<2x32xf32> to vector<2x32xbf16>
    %cst_215 = arith.constant dense<0.000000e+00> : vector<2x32xf32>
    %633 = tpu.matmul %632, %39, %cst_215 {dimension_numbers = #tpu.dot_dimension_numbers<[1], [0], [0], [1], [0, 0, 1, 1], [], []>} : vector<2x32xbf16>, vector<32x32xbf16>, vector<2x32xf32> -> vector<2x32xf32>
    %634 = vector.broadcast %41 : vector<1x32xf32> to vector<2x32xf32>
    %635 = arith.addf %633, %634 : vector<2x32xf32>
    %636 = arith.addf %619, %629 : vector<2x32xf32>
    %637 = arith.negf %636 : vector<2x32xf32>
    %638 = math.exp %637 : vector<2x32xf32>
    %cst_216 = arith.constant 1.000000e+00 : f32
    %639 = vector.broadcast %cst_216 : f32 to vector<2x32xf32>
    %640 = arith.addf %639, %638 : vector<2x32xf32>
    %641 = arith.divf %639, %640 : vector<2x32xf32>
    %642 = arith.addf %623, %631 : vector<2x32xf32>
    %643 = arith.negf %642 : vector<2x32xf32>
    %644 = math.exp %643 : vector<2x32xf32>
    %cst_217 = arith.constant 1.000000e+00 : f32
    %645 = vector.broadcast %cst_217 : f32 to vector<2x32xf32>
    %646 = arith.addf %645, %644 : vector<2x32xf32>
    %647 = arith.divf %645, %646 : vector<2x32xf32>
    %648 = arith.mulf %641, %635 : vector<2x32xf32>
    %649 = arith.addf %627, %648 : vector<2x32xf32>
    %650 = math.tanh %649 : vector<2x32xf32>
    %cst_218 = arith.constant 1.000000e+00 : f32
    %651 = vector.broadcast %cst_218 : f32 to vector<2x32xf32>
    %652 = arith.subf %651, %647 : vector<2x32xf32>
    %653 = arith.mulf %652, %650 : vector<2x32xf32>
    %654 = arith.mulf %647, %580 : vector<2x32xf32>
    %655 = arith.addf %653, %654 : vector<2x32xf32>
    %c8_i32 = arith.constant 8 : i32
    %c0_219 = arith.constant 0 : index
    %c0_220 = arith.constant 0 : index
    %656 = vector.load %arg9[%c0_219, %c0_220] : memref<32x1xbf16, #tpu.memory_space<vmem>>, vector<32x1xbf16>
    %657 = arith.truncf %655 : vector<2x32xf32> to vector<2x32xbf16>
    %cst_221 = arith.constant dense<0.000000e+00> : vector<2x1xf32>
    %658 = tpu.matmul %657, %656, %cst_221 {dimension_numbers = #tpu.dot_dimension_numbers<[1], [0], [0], [1], [0, 0, 1, 1], [], []>} : vector<2x32xbf16>, vector<32x1xbf16>, vector<2x1xf32> -> vector<2x1xf32>
    %c0_222 = arith.constant 0 : index
    %c0_223 = arith.constant 0 : index
    %659 = vector.load %arg10[%c0_222, %c0_223] : memref<1x1xf32, #tpu.memory_space<vmem>>, vector<1x1xf32>
    %660 = vector.broadcast %659 : vector<1x1xf32> to vector<2x1xf32>
    %661 = arith.addf %658, %660 : vector<2x1xf32>
    %c0_224 = arith.constant 0 : index
    %c0_225 = arith.constant 0 : index
    %662 = vector.load %arg11[%c0_224, %c0_225] : memref<2x1xf32, #tpu.memory_space<vmem>>, vector<2x1xf32>
    tpu.vector_store %arg11[%c0_224, %c0_225], %661 {strides = array<i32>} : memref<2x1xf32, #tpu.memory_space<vmem>>, vector<2x1xf32>,
    return
  }
}

</mosaic_0001>

<llo_original>
// kernel: forward.1
$region0: #{forward.1}
  #allocation0 [shape = 'u32[]', space=smem, size = 0x4, offset = 0x4, fixed_abs, tag = 'smem constant byte address 0x4 - core index']
  #allocation1 [shape = 'u32[144,128]{1,0:T(1,128)}', space=vmem, size = 0x12000, scoped, tag = 'internal scratch']
  #allocation2 [shape = 'f32[16,32]{1,0:T(8,128)}', space=vmem, size = 0x2000, scoped, tag = 'scratch operand']
  #allocation3 [shape = 'f32[16,32]{1,0:T(8,128)}', space=vmem, size = 0x2000, scoped, tag = 'scratch operand']
  #allocation4 [shape = 'f32[16,32]{1,0:T(8,128)}', space=vmem, size = 0x2000, scoped, tag = 'scratch operand']
  #allocation5 [shape = 'f32[1,1]{1,0:T(1,128)S(1)}', space=vmem, size = 0x200, scoped, tag = 'scoped memory for forward.1']
  %s0 = inlined_call_operand.vmem [shape: f32[16,4], index: 0, kind: input, shape index: {}]
  %s1 = inlined_call_operand.vmem [shape: bf16[3,4,32], index: 1, kind: input, shape index: {}]
  %s2 = inlined_call_operand.vmem [shape: bf16[3,32,32], index: 2, kind: input, shape index: {}]
  %s3 = inlined_call_operand.hbm [shape: f32[3,1,32], index: 3, kind: input, shape index: {}]
  %s4 = inlined_call_operand.hbm [shape: f32[1,32], index: 4, kind: input, shape index: {}]
  %s5 = inlined_call_operand.hbm [shape: bf16[3,32,32], index: 5, kind: input, shape index: {}]
  %s6 = inlined_call_operand.hbm [shape: bf16[3,32,32], index: 6, kind: input, shape index: {}]
  %s7 = inlined_call_operand.vmem [shape: f32[3,1,32], index: 7, kind: input, shape index: {}]
  %s8 = inlined_call_operand.vmem [shape: f32[1,32], index: 8, kind: input, shape index: {}]
  %s9 = inlined_call_operand.vmem [shape: bf16[32,1], index: 9, kind: input, shape index: {}]
  %s10 = inlined_call_operand.<no memory space> [shape: f32[1,1], index: 10, kind: input, shape index: {}]
  %s11 = inlined_call_operand.vmem [shape: f32[2,1], index: 11, kind: output, shape index: {}]
  %s12 = sld [smem:[#allocation0]]
  $region70: #{forward.1} parent=0
    _
  %s14 = ssub.s32 1, %s12
  %s15 = scalar_select 0, %s14, %s12
  %v16 = vstv %s10
  %17 = vst [vmem:[#allocation5] sm:$0x1] %v16
  $region1: #{forward.1} parent=0
    #allocation6 [shape = 'u8[1536]{0}', space=vmem, size = 0x800, scoped, tag = 'input window, operand 3, single buffered']
    #allocation7 [shape = 's32[1]{0}', space=sflag, size = 0x4, scoped, tag = 'scoped memory for forward.1']
    #allocation8 [shape = 'u8[512]{0}', space=vmem, size = 0x400, scoped, tag = 'input window, operand 4, single buffered']
    #allocation9 [shape = 's32[1]{0}', space=sflag, size = 0x4, scoped, tag = 'scoped memory for forward.1']
    #allocation10 [shape = 'u8[24576]{0}', space=vmem, size = 0x6000, scoped, tag = 'input window, operand 5, single buffered']
    #allocation11 [shape = 'u8[24576]{0}', space=vmem, size = 0x6000, scoped, tag = 'input window, operand 6, single buffered']
    #allocation12 [shape = 's32[1]{0}', space=sflag, size = 0x4, scoped, tag = 'scoped memory for forward.1']
    %18 = vsyncpa [#allocation7], 0
    %19 = vsyncpa [#allocation9], 0
    %20 = vsyncpa [#allocation12], 0
    // Predicated region
    $region2: #{forward.1} parent=1 // pred_check
      _
    $region3: #{forward.1} parent=1 // pred_check_branch
      %22 = sbr.rel (0) target = $region5
    $region4: #{forward.1} parent=1 // pred_region
      _
    $region5: #{forward.1} parent=1 // pred_fallthru
      _
    // Predicated region
    $region6: #{forward.1} parent=1 // pred_check
      _
    $region7: #{forward.1} parent=1 // pred_check_branch
      %24 = sbr.rel (0) target = $region9
    $region8: #{forward.1} parent=1 // pred_region
      _
    $region9: #{forward.1} parent=1 // pred_fallthru
      _
    // Predicated region
    $region10: #{forward.1} parent=1 // pred_check
      _
    $region11: #{forward.1} parent=1 // pred_check_branch
      %26 = sbr.rel (0) target = $region13
    $region12: #{forward.1} parent=1 // pred_region
      _
    $region13: #{forward.1} parent=1 // pred_fallthru
      _
    // Predicated region
    $region14: #{forward.1} parent=1 // pred_check
      _
    $region15: #{forward.1} parent=1 // pred_check_branch
      %28 = sbr.rel (0) target = $region17
    $region16: #{forward.1} parent=1 // pred_region
      %s30 = ssub.s32 48, 48
      %31 = vsyncadd [#allocation7], %s30
      %s32 = sshll.u32 [#allocation6], 4
      %s33 = int_to_ptr.vmem [resolvable:$true] %s32
      %38 = dma.hbm_to_vmem [thread:$0]  %s3, 48, %s33, [#allocation7], 16, 16, 1
    $region17: #{forward.1} parent=1 // pred_fallthru
      _
    // Predicated region
    $region18: #{forward.1} parent=1 // pred_check
      _
    $region19: #{forward.1} parent=1 // pred_check_branch
      %40 = sbr.rel (0) target = $region21
    $region20: #{forward.1} parent=1 // pred_region
      %s42 = ssub.s32 16, 16
      %43 = vsyncadd [#allocation9], %s42
      %s45 = sshll.u32 [#allocation8], 4
      %s46 = int_to_ptr.vmem [resolvable:$true] %s45
      %48 = dma.hbm_to_vmem [thread:$0]  %s4, 16, %s46, [#allocation9]
    $region21: #{forward.1} parent=1 // pred_fallthru
      _
    // Predicated region
    $region22: #{forward.1} parent=1 // pred_check
      _
    $region23: #{forward.1} parent=1 // pred_check_branch
      %50 = sbr.rel (0) target = $region25
    $region24: #{forward.1} parent=1 // pred_region
      %s52 = ssub.s32 768, 768
      %53 = vsyncadd [#allocation9], %s52
      %s54 = sshll.u32 [#allocation10], 4
      %s55 = int_to_ptr.vmem [resolvable:$true] %s54
      %60 = dma.hbm_to_vmem [thread:$0]  %s5, 768, %s55, [#allocation9], 64, 64, 4
    $region25: #{forward.1} parent=1 // pred_fallthru
      _
    // Predicated region
    $region26: #{forward.1} parent=1 // pred_check
      _
    $region27: #{forward.1} parent=1 // pred_check_branch
      %62 = sbr.rel (0) target = $region29
    $region28: #{forward.1} parent=1 // pred_region
      %s64 = ssub.s32 768, 768
      %65 = vsyncadd [#allocation12], %s64
      %s66 = sshll.u32 [#allocation11], 4
      %s67 = int_to_ptr.vmem [resolvable:$true] %s66
      %72 = dma.hbm_to_vmem [thread:$0]  %s6, 768, %s67, [#allocation12], 64, 64, 4
    $region29: #{forward.1} parent=1 // pred_fallthru
      _
    // Predicated region
    $region30: #{forward.1} parent=1 // pred_check
      _
    $region31: #{forward.1} parent=1 // pred_check_branch
      %74 = sbr.rel (0) target = $region33
    $region32: #{forward.1} parent=1 // pred_region
      _
    $region33: #{forward.1} parent=1 // pred_fallthru
      _
    // Predicated region
    $region34: #{forward.1} parent=1 // pred_check
      _
    $region35: #{forward.1} parent=1 // pred_check_branch
      %76 = sbr.rel (0) target = $region37
    $region36: #{forward.1} parent=1 // pred_region
      _
    $region37: #{forward.1} parent=1 // pred_fallthru
      _
    // Predicated region
    $region38: #{forward.1} parent=1 // pred_check
      _
    $region39: #{forward.1} parent=1 // pred_check_branch
      %78 = sbr.rel (0) target = $region41
    $region40: #{forward.1} parent=1 // pred_region
      _
    $region41: #{forward.1} parent=1 // pred_fallthru
      _
    // Predicated region
    $region42: #{forward.1} parent=1 // pred_check
      _
    $region43: #{forward.1} parent=1 // pred_check_branch
      %80 = sbr.rel (0) target = $region45
    $region44: #{forward.1} parent=1 // pred_region
      _
    $region45: #{forward.1} parent=1 // pred_fallthru
      _
    // Predicated region
    $region46: #{forward.1} parent=1 // pred_check
      _
    $region47: #{forward.1} parent=1 // pred_check_branch
      %82 = sbr.rel (0) target = $region49
    $region48: #{forward.1} parent=1 // pred_region
      %83 = dma.done [#allocation7], 48
    $region49: #{forward.1} parent=1 // pred_fallthru
      _
    // Predicated region
    $region50: #{forward.1} parent=1 // pred_check
      _
    $region51: #{forward.1} parent=1 // pred_check_branch
      %85 = sbr.rel (0) target = $region53
    $region52: #{forward.1} parent=1 // pred_region
      %86 = dma.done [#allocation9], 16
    $region53: #{forward.1} parent=1 // pred_fallthru
      _
    // Predicated region
    $region54: #{forward.1} parent=1 // pred_check
      _
    $region55: #{forward.1} parent=1 // pred_check_branch
      %88 = sbr.rel (0) target = $region57
    $region56: #{forward.1} parent=1 // pred_region
      %89 = dma.done [#allocation9], 768
    $region57: #{forward.1} parent=1 // pred_fallthru
      _
    // Predicated region
    $region58: #{forward.1} parent=1 // pred_check
      _
    $region59: #{forward.1} parent=1 // pred_check_branch
      %91 = sbr.rel (0) target = $region61
    $region60: #{forward.1} parent=1 // pred_region
      %92 = dma.done [#allocation12], 768
    $region61: #{forward.1} parent=1 // pred_fallthru
      _
    %v94 = vld [vmem:[%s0] sm:$0xff]
    %v95 = vld [vmem:[%s0 + $0x8] sm:$0xff]
    %v96 = vld [vmem:[%s1] sm:$0x3]
    %v97 = vpack.c.bf16 %v95, %v94
    %v98 = vld [vmem:[#allocation6] sm:$0x1]
    %v100 = vlaneseq
    %v101 = vshrl.u32 %v100, 7
    %v102 = vsub.s32 0, %v101
    %v103 = vrot.slane %v98, %v102
    %vm105 = vcmask 31744
    %v107 = vsel %vm105, %v97, 0
    %vm109 = vcmask 1041408
    %v111 = vsel %vm109, %v96, 0
    %113 = vmatprep.subr.bf16.mxu0 0
    %114 = vmatpush1.bf16.msra.mxu0 0
    %115 = vmatprep.subr.bf16.mxu0 0
    %116 = vmatpush1.bf16.msra.mxu0 0
    %117 = vmatprep.subr.bf16.mxu0 0
    %118 = vmatpush1.bf16.msra.mxu0 0
    %119 = vmatprep.subr.bf16.mxu0 0
    %120 = vmatpush1.bf16.msra.mxu0 0
    %121 = vmatprep.subr.bf16.mxu0 0
    %122 = vmatpush1.bf16.msra.mxu0 0
    %123 = vmatprep.subr.bf16.mxu0 0
    %124 = vmatpush1.bf16.msra.mxu0 0
    %125 = vmatprep.subr.bf16.mxu0 0
    %126 = vmatpush1.bf16.msra.mxu0 0
    %127 = vmatprep.subr.bf16.mxu0 0
    %128 = vmatpush1.bf16.msra.mxu0 %v111
    %129 = vmatprep.subr.bf16.mxu0 0
    %130 = vmatpush2.bf16.msra.mxu0 0
    %131 = vmatprep.subr.bf16.mxu0 0
    %132 = vmatpush2.bf16.msra.mxu0 0
    %133 = vmatprep.subr.bf16.mxu0 0
    %134 = vmatpush2.bf16.msra.mxu0 0
    %135 = vmatprep.subr.bf16.mxu0 0
    %136 = vmatpush2.bf16.msra.mxu0 0
    %137 = vmatprep.subr.bf16.mxu0 0
    %138 = vmatpush2.bf16.msra.mxu0 0
    %139 = vmatprep.subr.bf16.mxu0 0
    %140 = vmatpush2.bf16.msra.mxu0 0
    %141 = vmatprep.subr.bf16.mxu0 0
    %142 = vmatpush2.bf16.msra.mxu0 0
    %143 = vmatprep.subr.bf16.mxu0 0
    %144 = vmatpush2.bf16.msra.mxu0 0
    %145 = vmatprep.mubr.bf16.mxu0 0
    %146 = vmatmul.mubr.bf16.gmra.mxu0 %v107
    %v147 = vpop.f32.mrf.mxu0
    %v148 = vadd.f32 %v103, %v147
    %v149 = vpop.f32.mrf.mxu0
    %v150 = vpop.f32.mrf.mxu0
    %v151 = vadd.f32 %v103, %v150
    %v152 = vpop.f32.mrf.mxu0
    %153 = vdwg.mxu0
    %vm154 = vcmask 261120
    %155 = vst.msk [vmem:[#allocation2] sm:$0xff] %vm154, %v148
    %156 = vst.msk [vmem:[#allocation2 + $0x8] sm:$0xff] %vm154, %v151
    %s157 = scalar_lea.vmem %s1, 2
    %v158 = vld [vmem:[%s157] sm:$0x3]
    %s159 = scalar_lea.vmem [#allocation6], 1
    %v160 = vld [vmem:[%s159] sm:$0x1]
    %v162 = vlaneseq
    %v163 = vshrl.u32 %v162, 7
    %v164 = vsub.s32 0, %v163
    %v165 = vrot.slane %v160, %v164
    %v168 = vsel %vm109, %v158, 0
    %170 = vmatprep.subr.bf16.mxu0 0
    %171 = vmatpush1.bf16.msra.mxu0 0
    %172 = vmatprep.subr.bf16.mxu0 0
    %173 = vmatpush1.bf16.msra.mxu0 0
    %174 = vmatprep.subr.bf16.mxu0 0
    %175 = vmatpush1.bf16.msra.mxu0 0
    %176 = vmatprep.subr.bf16.mxu0 0
    %177 = vmatpush1.bf16.msra.mxu0 0
    %178 = vmatprep.subr.bf16.mxu0 0
    %179 = vmatpush1.bf16.msra.mxu0 0
    %180 = vmatprep.subr.bf16.mxu0 0
    %181 = vmatpush1.bf16.msra.mxu0 0
    %182 = vmatprep.subr.bf16.mxu0 0
    %183 = vmatpush1.bf16.msra.mxu0 0
    %184 = vmatprep.subr.bf16.mxu0 0
    %185 = vmatpush1.bf16.msra.mxu0 %v168
    %186 = vmatprep.subr.bf16.mxu0 0
    %187 = vmatpush2.bf16.msra.mxu0 0
    %188 = vmatprep.subr.bf16.mxu0 0
    %189 = vmatpush2.bf16.msra.mxu0 0
    %190 = vmatprep.subr.bf16.mxu0 0
    %191 = vmatpush2.bf16.msra.mxu0 0
    %192 = vmatprep.subr.bf16.mxu0 0
    %193 = vmatpush2.bf16.msra.mxu0 0
    %194 = vmatprep.subr.bf16.mxu0 0
    %195 = vmatpush2.bf16.msra.mxu0 0
    %196 = vmatprep.subr.bf16.mxu0 0
    %197 = vmatpush2.bf16.msra.mxu0 0
    %198 = vmatprep.subr.bf16.mxu0 0
    %199 = vmatpush2.bf16.msra.mxu0 0
    %200 = vmatprep.subr.bf16.mxu0 0
    %201 = vmatpush2.bf16.msra.mxu0 0
    %202 = vmatprep.mubr.bf16.mxu0 0
    %203 = vmatmul.mubr.bf16.gmra.mxu0 %v107
    %v204 = vpop.f32.mrf.mxu0
    %v205 = vadd.f32 %v165, %v204
    %v206 = vpop.f32.mrf.mxu0
    %v207 = vpop.f32.mrf.mxu0
    %v208 = vadd.f32 %v165, %v207
    %v209 = vpop.f32.mrf.mxu0
    %210 = vdwg.mxu0
    %211 = vst.msk [vmem:[#allocation3] sm:$0xff] %vm154, %v205
    %212 = vst.msk [vmem:[#allocation3 + $0x8] sm:$0xff] %vm154, %v208
    %s213 = scalar_lea.vmem %s1, 4
    %v214 = vld [vmem:[%s213] sm:$0x3]
    %s215 = scalar_lea.vmem [#allocation6], 2
    %v216 = vld [vmem:[%s215] sm:$0x1]
    %v218 = vlaneseq
    %v219 = vshrl.u32 %v218, 7
    %v220 = vsub.s32 0, %v219
    %v221 = vrot.slane %v216, %v220
    %v224 = vsel %vm109, %v214, 0
    %226 = vmatprep.subr.bf16.mxu0 0
    %227 = vmatpush1.bf16.msra.mxu0 0
    %228 = vmatprep.subr.bf16.mxu0 0
    %229 = vmatpush1.bf16.msra.mxu0 0
    %230 = vmatprep.subr.bf16.mxu0 0
    %231 = vmatpush1.bf16.msra.mxu0 0
    %232 = vmatprep.subr.bf16.mxu0 0
    %233 = vmatpush1.bf16.msra.mxu0 0
    %234 = vmatprep.subr.bf16.mxu0 0
    %235 = vmatpush1.bf16.msra.mxu0 0
    %236 = vmatprep.subr.bf16.mxu0 0
    %237 = vmatpush1.bf16.msra.mxu0 0
    %238 = vmatprep.subr.bf16.mxu0 0
    %239 = vmatpush1.bf16.msra.mxu0 0
    %240 = vmatprep.subr.bf16.mxu0 0
    %241 = vmatpush1.bf16.msra.mxu0 %v224
    %242 = vmatprep.subr.bf16.mxu0 0
    %243 = vmatpush2.bf16.msra.mxu0 0
    %244 = vmatprep.subr.bf16.mxu0 0
    %245 = vmatpush2.bf16.msra.mxu0 0
    %246 = vmatprep.subr.bf16.mxu0 0
    %247 = vmatpush2.bf16.msra.mxu0 0
    %248 = vmatprep.subr.bf16.mxu0 0
    %249 = vmatpush2.bf16.msra.mxu0 0
    %250 = vmatprep.subr.bf16.mxu0 0
    %251 = vmatpush2.bf16.msra.mxu0 0
    %252 = vmatprep.subr.bf16.mxu0 0
    %253 = vmatpush2.bf16.msra.mxu0 0
    %254 = vmatprep.subr.bf16.mxu0 0
    %255 = vmatpush2.bf16.msra.mxu0 0
    %256 = vmatprep.subr.bf16.mxu0 0
    %257 = vmatpush2.bf16.msra.mxu0 0
    %258 = vmatprep.mubr.bf16.mxu0 0
    %259 = vmatmul.mubr.bf16.gmra.mxu0 %v107
    %v260 = vpop.f32.mrf.mxu0
    %v261 = vadd.f32 %v221, %v260
    %v262 = vpop.f32.mrf.mxu0
    %v263 = vpop.f32.mrf.mxu0
    %v264 = vadd.f32 %v221, %v263
    %v265 = vpop.f32.mrf.mxu0
    %266 = vdwg.mxu0
    %267 = vst.msk [vmem:[#allocation4] sm:$0xff] %vm154, %v261
    %268 = vst.msk [vmem:[#allocation4 + $0x8] sm:$0xff] %vm154, %v264
    %v269 = vld [vmem:[%s2] sm:$0xf]
    %v270 = vld [vmem:[%s2 + $0x4] sm:$0xf]
    %v271 = vld [vmem:[%s2 + $0x8] sm:$0xf]
    %v272 = vld [vmem:[%s2 + $0xc] sm:$0xf]
    %s273 = scalar_lea.vmem %s2, 16
    %v274 = vld [vmem:[%s273] sm:$0xf]
    %v275 = vld [vmem:[%s273 + $0x4] sm:$0xf]
    %v276 = vld [vmem:[%s273 + $0x8] sm:$0xf]
    %v277 = vld [vmem:[%s273 + $0xc] sm:$0xf]
    %s278 = scalar_lea.vmem %s2, 32
    %v279 = vld [vmem:[%s278] sm:$0xf]
    %v280 = vld [vmem:[%s278 + $0x4] sm:$0xf]
    %v281 = vld [vmem:[%s278 + $0x8] sm:$0xf]
    %v282 = vld [vmem:[%s278 + $0xc] sm:$0xf]
    %v283 = vld [vmem:[#allocation11] sm:$0xf]
    %v284 = vld [vmem:[#allocation11 + $0x4] sm:$0xf]
    %v285 = vld [vmem:[#allocation11 + $0x8] sm:$0xf]
    %v286 = vld [vmem:[#allocation11 + $0xc] sm:$0xf]
    %s287 = scalar_lea.vmem [#allocation11], 16
    %v288 = vld [vmem:[%s287] sm:$0xf]
    %v289 = vld [vmem:[%s287 + $0x4] sm:$0xf]
    %v290 = vld [vmem:[%s287 + $0x8] sm:$0xf]
    %v291 = vld [vmem:[%s287 + $0xc] sm:$0xf]
    %s292 = scalar_lea.vmem [#allocation11], 32
    %v293 = vld [vmem:[%s292] sm:$0xf]
    %v294 = vld [vmem:[%s292 + $0x4] sm:$0xf]
    %v295 = vld [vmem:[%s292 + $0x8] sm:$0xf]
    %v296 = vld [vmem:[%s292 + $0xc] sm:$0xf]
    %v297 = vld [vmem:[#allocation8] sm:$0x1]
    %v298 = vld [vmem:[%s8] sm:$0x1]
    %v299 = vld [vmem:[#allocation10] sm:$0xf]
    %v300 = vld [vmem:[#allocation10 + $0x4] sm:$0xf]
    %v301 = vld [vmem:[#allocation10 + $0x8] sm:$0xf]
    %v302 = vld [vmem:[#allocation10 + $0xc] sm:$0xf]
    %s303 = scalar_lea.vmem [#allocation10], 16
    %v304 = vld [vmem:[%s303] sm:$0xf]
    %v305 = vld [vmem:[%s303 + $0x4] sm:$0xf]
    %v306 = vld [vmem:[%s303 + $0x8] sm:$0xf]
    %v307 = vld [vmem:[%s303 + $0xc] sm:$0xf]
    %s308 = scalar_lea.vmem [#allocation10], 32
    %v309 = vld [vmem:[%s308] sm:$0xf]
    %v310 = vld [vmem:[%s308 + $0x4] sm:$0xf]
    %v311 = vld [vmem:[%s308 + $0x8] sm:$0xf]
    %v312 = vld [vmem:[%s308 + $0xc] sm:$0xf]
    %v313 = vld [vmem:[%s7] sm:$0x1]
    %s314 = scalar_lea.vmem %s7, 1
    %v315 = vld [vmem:[%s314] sm:$0x1]
    %s316 = scalar_lea.vmem %s7, 2
    %v317 = vld [vmem:[%s316] sm:$0x1]
    %v318 = vld [vmem:[#allocation2] sm:$0x3]
    %v319 = vld [vmem:[#allocation3] sm:$0x3]
    %v320 = vld [vmem:[#allocation4] sm:$0x3]
    %v325 = vunpack.c.l.b16 %v269
    %v326 = vunpack.c.l.b16 %v270
    %v327 = vunpack.c.l.b16 %v271
    %v328 = vunpack.c.l.b16 %v272
    %v329 = vpack.c.b16 %v326, %v325
    %v330 = vpack.c.b16 %v328, %v327
    %v334 = vsel %vm154, 0, 0
    %336 = vmatprep.subr.bf16.mxu0 0
    %337 = vmatpush1.bf16.msra.mxu0 0
    %338 = vmatprep.subr.bf16.mxu0 0
    %339 = vmatpush1.bf16.msra.mxu0 0
    %340 = vmatprep.subr.bf16.mxu0 0
    %341 = vmatpush1.bf16.msra.mxu0 0
    %342 = vmatprep.subr.bf16.mxu0 0
    %343 = vmatpush1.bf16.msra.mxu0 0
    %344 = vmatprep.subr.bf16.mxu0 0
    %345 = vmatpush1.bf16.msra.mxu0 0
    %346 = vmatprep.subr.bf16.mxu0 0
    %347 = vmatpush1.bf16.msra.mxu0 0
    %348 = vmatprep.subr.bf16.mxu0 0
    %349 = vmatpush1.bf16.msra.mxu0 %v330
    %350 = vmatprep.subr.bf16.mxu0 0
    %351 = vmatpush1.bf16.msra.mxu0 %v329
    %352 = vmatprep.subr.bf16.mxu0 0
    %353 = vmatpush2.bf16.msra.mxu0 0
    %354 = vmatprep.subr.bf16.mxu0 0
    %355 = vmatpush2.bf16.msra.mxu0 0
    %356 = vmatprep.subr.bf16.mxu0 0
    %357 = vmatpush2.bf16.msra.mxu0 0
    %358 = vmatprep.subr.bf16.mxu0 0
    %359 = vmatpush2.bf16.msra.mxu0 0
    %360 = vmatprep.subr.bf16.mxu0 0
    %361 = vmatpush2.bf16.msra.mxu0 0
    %362 = vmatprep.subr.bf16.mxu0 0
    %363 = vmatpush2.bf16.msra.mxu0 0
    %364 = vmatprep.subr.bf16.mxu0 0
    %365 = vmatpush2.bf16.msra.mxu0 0
    %366 = vmatprep.subr.bf16.mxu0 0
    %367 = vmatpush2.bf16.msra.mxu0 0
    %368 = vmatprep.mubr.bf16.mxu0 0
    %369 = vmatmul.mubr.bf16.gmra.mxu0 %v334
    %v370 = vpop.f32.mrf.mxu0
    %v371 = vadd.f32 0.0, %v370
    %v372 = vpop.f32.mrf.mxu0
    %v373 = vpop.f32.mrf.mxu0
    %v374 = vpop.f32.mrf.mxu0
    %375 = vdwg.mxu0
    %v380 = vunpack.c.l.b16 %v274
    %v381 = vunpack.c.l.b16 %v275
    %v382 = vunpack.c.l.b16 %v276
    %v383 = vunpack.c.l.b16 %v277
    %v384 = vpack.c.b16 %v381, %v380
    %v385 = vpack.c.b16 %v383, %v382
    %388 = vmatprep.subr.bf16.mxu0 0
    %389 = vmatpush1.bf16.msra.mxu0 0
    %390 = vmatprep.subr.bf16.mxu0 0
    %391 = vmatpush1.bf16.msra.mxu0 0
    %392 = vmatprep.subr.bf16.mxu0 0
    %393 = vmatpush1.bf16.msra.mxu0 0
    %394 = vmatprep.subr.bf16.mxu0 0
    %395 = vmatpush1.bf16.msra.mxu0 0
    %396 = vmatprep.subr.bf16.mxu0 0
    %397 = vmatpush1.bf16.msra.mxu0 0
    %398 = vmatprep.subr.bf16.mxu0 0
    %399 = vmatpush1.bf16.msra.mxu0 0
    %400 = vmatprep.subr.bf16.mxu0 0
    %401 = vmatpush1.bf16.msra.mxu0 %v385
    %402 = vmatprep.subr.bf16.mxu0 0
    %403 = vmatpush1.bf16.msra.mxu0 %v384
    %404 = vmatprep.subr.bf16.mxu0 0
    %405 = vmatpush2.bf16.msra.mxu0 0
    %406 = vmatprep.subr.bf16.mxu0 0
    %407 = vmatpush2.bf16.msra.mxu0 0
    %408 = vmatprep.subr.bf16.mxu0 0
    %409 = vmatpush2.bf16.msra.mxu0 0
    %410 = vmatprep.subr.bf16.mxu0 0
    %411 = vmatpush2.bf16.msra.mxu0 0
    %412 = vmatprep.subr.bf16.mxu0 0
    %413 = vmatpush2.bf16.msra.mxu0 0
    %414 = vmatprep.subr.bf16.mxu0 0
    %415 = vmatpush2.bf16.msra.mxu0 0
    %416 = vmatprep.subr.bf16.mxu0 0
    %417 = vmatpush2.bf16.msra.mxu0 0
    %418 = vmatprep.subr.bf16.mxu0 0
    %419 = vmatpush2.bf16.msra.mxu0 0
    %420 = vmatprep.mubr.bf16.mxu0 0
    %421 = vmatmul.mubr.bf16.gmra.mxu0 %v334
    %v422 = vpop.f32.mrf.mxu0
    %v423 = vadd.f32 0.0, %v422
    %v424 = vpop.f32.mrf.mxu0
    %v425 = vpop.f32.mrf.mxu0
    %v426 = vpop.f32.mrf.mxu0
    %427 = vdwg.mxu0
    %v429 = vlaneseq
    %v430 = vshrl.u32 %v429, 7
    %v431 = vsub.s32 0, %v430
    %v432 = vrot.slane %v297, %v431
    %v438 = vunpack.c.l.b16 %v279
    %v439 = vunpack.c.l.b16 %v280
    %v440 = vunpack.c.l.b16 %v281
    %v441 = vunpack.c.l.b16 %v282
    %v442 = vpack.c.b16 %v439, %v438
    %v443 = vpack.c.b16 %v441, %v440
    %446 = vmatprep.subr.bf16.mxu0 0
    %447 = vmatpush1.bf16.msra.mxu0 0
    %448 = vmatprep.subr.bf16.mxu0 0
    %449 = vmatpush1.bf16.msra.mxu0 0
    %450 = vmatprep.subr.bf16.mxu0 0
    %451 = vmatpush1.bf16.msra.mxu0 0
    %452 = vmatprep.subr.bf16.mxu0 0
    %453 = vmatpush1.bf16.msra.mxu0 0
    %454 = vmatprep.subr.bf16.mxu0 0
    %455 = vmatpush1.bf16.msra.mxu0 0
    %456 = vmatprep.subr.bf16.mxu0 0
    %457 = vmatpush1.bf16.msra.mxu0 0
    %458 = vmatprep.subr.bf16.mxu0 0
    %459 = vmatpush1.bf16.msra.mxu0 %v443
    %460 = vmatprep.subr.bf16.mxu0 0
    %461 = vmatpush1.bf16.msra.mxu0 %v442
    %462 = vmatprep.subr.bf16.mxu0 0
    %463 = vmatpush2.bf16.msra.mxu0 0
    %464 = vmatprep.subr.bf16.mxu0 0
    %465 = vmatpush2.bf16.msra.mxu0 0
    %466 = vmatprep.subr.bf16.mxu0 0
    %467 = vmatpush2.bf16.msra.mxu0 0
    %468 = vmatprep.subr.bf16.mxu0 0
    %469 = vmatpush2.bf16.msra.mxu0 0
    %470 = vmatprep.subr.bf16.mxu0 0
    %471 = vmatpush2.bf16.msra.mxu0 0
    %472 = vmatprep.subr.bf16.mxu0 0
    %473 = vmatpush2.bf16.msra.mxu0 0
    %474 = vmatprep.subr.bf16.mxu0 0
    %475 = vmatpush2.bf16.msra.mxu0 0
    %476 = vmatprep.subr.bf16.mxu0 0
    %477 = vmatpush2.bf16.msra.mxu0 0
    %478 = vmatprep.mubr.bf16.mxu0 0
    %479 = vmatmul.mubr.bf16.gmra.mxu0 %v334
    %v480 = vpop.f32.mrf.mxu0
    %v481 = vadd.f32 %v432, %v480
    %v482 = vpop.f32.mrf.mxu0
    %v483 = vpop.f32.mrf.mxu0
    %v484 = vpop.f32.mrf.mxu0
    %485 = vdwg.mxu0
    %v486 = vadd.f32 %v318, %v371
    %v487 = vxor.u32 %v486, 2147483648
    %v488 = vmul.f32 %v487, 1.442695
    %v489 = vpow.pop %v488
    %v490 = vadd.f32 %v489, 1.0
    %v491 = vrcp.pop %v490
    %v492 = vmul.f32 1.0, %v491
    %v493 = vadd.f32 %v319, %v423
    %v494 = vxor.u32 %v493, 2147483648
    %v495 = vmul.f32 %v494, 1.442695
    %v496 = vpow.pop %v495
    %v497 = vadd.f32 %v496, 1.0
    %v498 = vrcp.pop %v497
    %v499 = vmul.f32 1.0, %v498
    %v500 = vmul.f32 %v492, %v481
    %v501 = vadd.f32 %v320, %v500
    %v502 = vtanh.pop %v501
    %v503 = vsub.f32 1.0, %v499
    %v504 = vmul.f32 %v503, %v502
    %v505 = vmul.f32 %v499, 0.0
    %v506 = vadd.f32 %v504, %v505
    %v507 = vpack.c.bf16 %v506, %v506
    %v509 = vlaneseq
    %v510 = vshrl.u32 %v509, 7
    %v511 = vsub.s32 0, %v510
    %v512 = vrot.slane %v313, %v511
    %v518 = vunpack.c.l.b16 %v299
    %v519 = vunpack.c.l.b16 %v300
    %v520 = vunpack.c.l.b16 %v301
    %v521 = vunpack.c.l.b16 %v302
    %v522 = vpack.c.b16 %v519, %v518
    %v523 = vpack.c.b16 %v521, %v520
    %v527 = vsel %vm154, %v507, 0
    %529 = vmatprep.subr.bf16.mxu0 0
    %530 = vmatpush1.bf16.msra.mxu0 0
    %531 = vmatprep.subr.bf16.mxu0 0
    %532 = vmatpush1.bf16.msra.mxu0 0
    %533 = vmatprep.subr.bf16.mxu0 0
    %534 = vmatpush1.bf16.msra.mxu0 0
    %535 = vmatprep.subr.bf16.mxu0 0
    %536 = vmatpush1.bf16.msra.mxu0 0
    %537 = vmatprep.subr.bf16.mxu0 0
    %538 = vmatpush1.bf16.msra.mxu0 0
    %539 = vmatprep.subr.bf16.mxu0 0
    %540 = vmatpush1.bf16.msra.mxu0 0
    %541 = vmatprep.subr.bf16.mxu0 0
    %542 = vmatpush1.bf16.msra.mxu0 %v523
    %543 = vmatprep.subr.bf16.mxu0 0
    %544 = vmatpush1.bf16.msra.mxu0 %v522
    %545 = vmatprep.subr.bf16.mxu0 0
    %546 = vmatpush2.bf16.msra.mxu0 0
    %547 = vmatprep.subr.bf16.mxu0 0
    %548 = vmatpush2.bf16.msra.mxu0 0
    %549 = vmatprep.subr.bf16.mxu0 0
    %550 = vmatpush2.bf16.msra.mxu0 0
    %551 = vmatprep.subr.bf16.mxu0 0
    %552 = vmatpush2.bf16.msra.mxu0 0
    %553 = vmatprep.subr.bf16.mxu0 0
    %554 = vmatpush2.bf16.msra.mxu0 0
    %555 = vmatprep.subr.bf16.mxu0 0
    %556 = vmatpush2.bf16.msra.mxu0 0
    %557 = vmatprep.subr.bf16.mxu0 0
    %558 = vmatpush2.bf16.msra.mxu0 0
    %559 = vmatprep.subr.bf16.mxu0 0
    %560 = vmatpush2.bf16.msra.mxu0 0
    %561 = vmatprep.mubr.bf16.mxu0 0
    %562 = vmatmul.mubr.bf16.gmra.mxu0 %v527
    %v563 = vpop.f32.mrf.mxu0
    %v564 = vadd.f32 %v512, %v563
    %v565 = vpop.f32.mrf.mxu0
    %v566 = vpop.f32.mrf.mxu0
    %v567 = vpop.f32.mrf.mxu0
    %568 = vdwg.mxu0
    %v570 = vlaneseq
    %v571 = vshrl.u32 %v570, 7
    %v572 = vsub.s32 0, %v571
    %v573 = vrot.slane %v315, %v572
    %v579 = vunpack.c.l.b16 %v304
    %v580 = vunpack.c.l.b16 %v305
    %v581 = vunpack.c.l.b16 %v306
    %v582 = vunpack.c.l.b16 %v307
    %v583 = vpack.c.b16 %v580, %v579
    %v584 = vpack.c.b16 %v582, %v581
    %587 = vmatprep.subr.bf16.mxu0 0
    %588 = vmatpush1.bf16.msra.mxu0 0
    %589 = vmatprep.subr.bf16.mxu0 0
    %590 = vmatpush1.bf16.msra.mxu0 0
    %591 = vmatprep.subr.bf16.mxu0 0
    %592 = vmatpush1.bf16.msra.mxu0 0
    %593 = vmatprep.subr.bf16.mxu0 0
    %594 = vmatpush1.bf16.msra.mxu0 0
    %595 = vmatprep.subr.bf16.mxu0 0
    %596 = vmatpush1.bf16.msra.mxu0 0
    %597 = vmatprep.subr.bf16.mxu0 0
    %598 = vmatpush1.bf16.msra.mxu0 0
    %599 = vmatprep.subr.bf16.mxu0 0
    %600 = vmatpush1.bf16.msra.mxu0 %v584
    %601 = vmatprep.subr.bf16.mxu0 0
    %602 = vmatpush1.bf16.msra.mxu0 %v583
    %603 = vmatprep.subr.bf16.mxu0 0
    %604 = vmatpush2.bf16.msra.mxu0 0
    %605 = vmatprep.subr.bf16.mxu0 0
    %606 = vmatpush2.bf16.msra.mxu0 0
    %607 = vmatprep.subr.bf16.mxu0 0
    %608 = vmatpush2.bf16.msra.mxu0 0
    %609 = vmatprep.subr.bf16.mxu0 0
    %610 = vmatpush2.bf16.msra.mxu0 0
    %611 = vmatprep.subr.bf16.mxu0 0
    %612 = vmatpush2.bf16.msra.mxu0 0
    %613 = vmatprep.subr.bf16.mxu0 0
    %614 = vmatpush2.bf16.msra.mxu0 0
    %615 = vmatprep.subr.bf16.mxu0 0
    %616 = vmatpush2.bf16.msra.mxu0 0
    %617 = vmatprep.subr.bf16.mxu0 0
    %618 = vmatpush2.bf16.msra.mxu0 0
    %619 = vmatprep.mubr.bf16.mxu0 0
    %620 = vmatmul.mubr.bf16.gmra.mxu0 %v527
    %v621 = vpop.f32.mrf.mxu0
    %v622 = vadd.f32 %v573, %v621
    %v623 = vpop.f32.mrf.mxu0
    %v624 = vpop.f32.mrf.mxu0
    %v625 = vpop.f32.mrf.mxu0
    %626 = vdwg.mxu0
    %v628 = vlaneseq
    %v629 = vshrl.u32 %v628, 7
    %v630 = vsub.s32 0, %v629
    %v631 = vrot.slane %v317, %v630
    %v637 = vunpack.c.l.b16 %v309
    %v638 = vunpack.c.l.b16 %v310
    %v639 = vunpack.c.l.b16 %v311
    %v640 = vunpack.c.l.b16 %v312
    %v641 = vpack.c.b16 %v638, %v637
    %v642 = vpack.c.b16 %v640, %v639
    %645 = vmatprep.subr.bf16.mxu0 0
    %646 = vmatpush1.bf16.msra.mxu0 0
    %647 = vmatprep.subr.bf16.mxu0 0
    %648 = vmatpush1.bf16.msra.mxu0 0
    %649 = vmatprep.subr.bf16.mxu0 0
    %650 = vmatpush1.bf16.msra.mxu0 0
    %651 = vmatprep.subr.bf16.mxu0 0
    %652 = vmatpush1.bf16.msra.mxu0 0
    %653 = vmatprep.subr.bf16.mxu0 0
    %654 = vmatpush1.bf16.msra.mxu0 0
    %655 = vmatprep.subr.bf16.mxu0 0
    %656 = vmatpush1.bf16.msra.mxu0 0
    %657 = vmatprep.subr.bf16.mxu0 0
    %658 = vmatpush1.bf16.msra.mxu0 %v642
    %659 = vmatprep.subr.bf16.mxu0 0
    %660 = vmatpush1.bf16.msra.mxu0 %v641
    %661 = vmatprep.subr.bf16.mxu0 0
    %662 = vmatpush2.bf16.msra.mxu0 0
    %663 = vmatprep.subr.bf16.mxu0 0
    %664 = vmatpush2.bf16.msra.mxu0 0
    %665 = vmatprep.subr.bf16.mxu0 0
    %666 = vmatpush2.bf16.msra.mxu0 0
    %667 = vmatprep.subr.bf16.mxu0 0
    %668 = vmatpush2.bf16.msra.mxu0 0
    %669 = vmatprep.subr.bf16.mxu0 0
    %670 = vmatpush2.bf16.msra.mxu0 0
    %671 = vmatprep.subr.bf16.mxu0 0
    %672 = vmatpush2.bf16.msra.mxu0 0
    %673 = vmatprep.subr.bf16.mxu0 0
    %674 = vmatpush2.bf16.msra.mxu0 0
    %675 = vmatprep.subr.bf16.mxu0 0
    %676 = vmatpush2.bf16.msra.mxu0 0
    %677 = vmatprep.mubr.bf16.mxu0 0
    %678 = vmatmul.mubr.bf16.gmra.mxu0 %v527
    %v679 = vpop.f32.mrf.mxu0
    %v680 = vadd.f32 %v631, %v679
    %v681 = vpop.f32.mrf.mxu0
    %v682 = vpop.f32.mrf.mxu0
    %v683 = vpop.f32.mrf.mxu0
    %684 = vdwg.mxu0
    %v689 = vunpack.c.l.b16 %v283
    %v690 = vunpack.c.l.b16 %v284
    %v691 = vunpack.c.l.b16 %v285
    %v692 = vunpack.c.l.b16 %v286
    %v693 = vpack.c.b16 %v690, %v689
    %v694 = vpack.c.b16 %v692, %v691
    %697 = vmatprep.subr.bf16.mxu0 0
    %698 = vmatpush1.bf16.msra.mxu0 0
    %699 = vmatprep.subr.bf16.mxu0 0
    %700 = vmatpush1.bf16.msra.mxu0 0
    %701 = vmatprep.subr.bf16.mxu0 0
    %702 = vmatpush1.bf16.msra.mxu0 0
    %703 = vmatprep.subr.bf16.mxu0 0
    %704 = vmatpush1.bf16.msra.mxu0 0
    %705 = vmatprep.subr.bf16.mxu0 0
    %706 = vmatpush1.bf16.msra.mxu0 0
    %707 = vmatprep.subr.bf16.mxu0 0
    %708 = vmatpush1.bf16.msra.mxu0 0
    %709 = vmatprep.subr.bf16.mxu0 0
    %710 = vmatpush1.bf16.msra.mxu0 %v694
    %711 = vmatprep.subr.bf16.mxu0 0
    %712 = vmatpush1.bf16.msra.mxu0 %v693
    %713 = vmatprep.subr.bf16.mxu0 0
    %714 = vmatpush2.bf16.msra.mxu0 0
    %715 = vmatprep.subr.bf16.mxu0 0
    %716 = vmatpush2.bf16.msra.mxu0 0
    %717 = vmatprep.subr.bf16.mxu0 0
    %718 = vmatpush2.bf16.msra.mxu0 0
    %719 = vmatprep.subr.bf16.mxu0 0
    %720 = vmatpush2.bf16.msra.mxu0 0
    %721 = vmatprep.subr.bf16.mxu0 0
    %722 = vmatpush2.bf16.msra.mxu0 0
    %723 = vmatprep.subr.bf16.mxu0 0
    %724 = vmatpush2.bf16.msra.mxu0 0
    %725 = vmatprep.subr.bf16.mxu0 0
    %726 = vmatpush2.bf16.msra.mxu0 0
    %727 = vmatprep.subr.bf16.mxu0 0
    %728 = vmatpush2.bf16.msra.mxu0 0
    %729 = vmatprep.mubr.bf16.mxu0 0
    %730 = vmatmul.mubr.bf16.gmra.mxu0 %v334
    %v731 = vpop.f32.mrf.mxu0
    %v732 = vadd.f32 0.0, %v731
    %v733 = vpop.f32.mrf.mxu0
    %v734 = vpop.f32.mrf.mxu0
    %v735 = vpop.f32.mrf.mxu0
    %736 = vdwg.mxu0
    %v741 = vunpack.c.l.b16 %v288
    %v742 = vunpack.c.l.b16 %v289
    %v743 = vunpack.c.l.b16 %v290
    %v744 = vunpack.c.l.b16 %v291
    %v745 = vpack.c.b16 %v742, %v741
    %v746 = vpack.c.b16 %v744, %v743
    %749 = vmatprep.subr.bf16.mxu0 0
    %750 = vmatpush1.bf16.msra.mxu0 0
    %751 = vmatprep.subr.bf16.mxu0 0
    %752 = vmatpush1.bf16.msra.mxu0 0
    %753 = vmatprep.subr.bf16.mxu0 0
    %754 = vmatpush1.bf16.msra.mxu0 0
    %755 = vmatprep.subr.bf16.mxu0 0
    %756 = vmatpush1.bf16.msra.mxu0 0
    %757 = vmatprep.subr.bf16.mxu0 0
    %758 = vmatpush1.bf16.msra.mxu0 0
    %759 = vmatprep.subr.bf16.mxu0 0
    %760 = vmatpush1.bf16.msra.mxu0 0
    %761 = vmatprep.subr.bf16.mxu0 0
    %762 = vmatpush1.bf16.msra.mxu0 %v746
    %763 = vmatprep.subr.bf16.mxu0 0
    %764 = vmatpush1.bf16.msra.mxu0 %v745
    %765 = vmatprep.subr.bf16.mxu0 0
    %766 = vmatpush2.bf16.msra.mxu0 0
    %767 = vmatprep.subr.bf16.mxu0 0
    %768 = vmatpush2.bf16.msra.mxu0 0
    %769 = vmatprep.subr.bf16.mxu0 0
    %770 = vmatpush2.bf16.msra.mxu0 0
    %771 = vmatprep.subr.bf16.mxu0 0
    %772 = vmatpush2.bf16.msra.mxu0 0
    %773 = vmatprep.subr.bf16.mxu0 0
    %774 = vmatpush2.bf16.msra.mxu0 0
    %775 = vmatprep.subr.bf16.mxu0 0
    %776 = vmatpush2.bf16.msra.mxu0 0
    %777 = vmatprep.subr.bf16.mxu0 0
    %778 = vmatpush2.bf16.msra.mxu0 0
    %779 = vmatprep.subr.bf16.mxu0 0
    %780 = vmatpush2.bf16.msra.mxu0 0
    %781 = vmatprep.mubr.bf16.mxu0 0
    %782 = vmatmul.mubr.bf16.gmra.mxu0 %v334
    %v783 = vpop.f32.mrf.mxu0
    %v784 = vadd.f32 0.0, %v783
    %v785 = vpop.f32.mrf.mxu0
    %v786 = vpop.f32.mrf.mxu0
    %v787 = vpop.f32.mrf.mxu0
    %788 = vdwg.mxu0
    %v790 = vlaneseq
    %v791 = vshrl.u32 %v790, 7
    %v792 = vsub.s32 0, %v791
    %v793 = vrot.slane %v298, %v792
    %v799 = vunpack.c.l.b16 %v293
    %v800 = vunpack.c.l.b16 %v294
    %v801 = vunpack.c.l.b16 %v295
    %v802 = vunpack.c.l.b16 %v296
    %v803 = vpack.c.b16 %v800, %v799
    %v804 = vpack.c.b16 %v802, %v801
    %807 = vmatprep.subr.bf16.mxu0 0
    %808 = vmatpush1.bf16.msra.mxu0 0
    %809 = vmatprep.subr.bf16.mxu0 0
    %810 = vmatpush1.bf16.msra.mxu0 0
    %811 = vmatprep.subr.bf16.mxu0 0
    %812 = vmatpush1.bf16.msra.mxu0 0
    %813 = vmatprep.subr.bf16.mxu0 0
    %814 = vmatpush1.bf16.msra.mxu0 0
    %815 = vmatprep.subr.bf16.mxu0 0
    %816 = vmatpush1.bf16.msra.mxu0 0
    %817 = vmatprep.subr.bf16.mxu0 0
    %818 = vmatpush1.bf16.msra.mxu0 0
    %819 = vmatprep.subr.bf16.mxu0 0
    %820 = vmatpush1.bf16.msra.mxu0 %v804
    %821 = vmatprep.subr.bf16.mxu0 0
    %822 = vmatpush1.bf16.msra.mxu0 %v803
    %823 = vmatprep.subr.bf16.mxu0 0
    %824 = vmatpush2.bf16.msra.mxu0 0
    %825 = vmatprep.subr.bf16.mxu0 0
    %826 = vmatpush2.bf16.msra.mxu0 0
    %827 = vmatprep.subr.bf16.mxu0 0
    %828 = vmatpush2.bf16.msra.mxu0 0
    %829 = vmatprep.subr.bf16.mxu0 0
    %830 = vmatpush2.bf16.msra.mxu0 0
    %831 = vmatprep.subr.bf16.mxu0 0
    %832 = vmatpush2.bf16.msra.mxu0 0
    %833 = vmatprep.subr.bf16.mxu0 0
    %834 = vmatpush2.bf16.msra.mxu0 0
    %835 = vmatprep.subr.bf16.mxu0 0
    %836 = vmatpush2.bf16.msra.mxu0 0
    %837 = vmatprep.subr.bf16.mxu0 0
    %838 = vmatpush2.bf16.msra.mxu0 0
    %839 = vmatprep.mubr.bf16.mxu0 0
    %840 = vmatmul.mubr.bf16.gmra.mxu0 %v334
    %v841 = vpop.f32.mrf.mxu0
    %v842 = vadd.f32 %v793, %v841
    %v843 = vpop.f32.mrf.mxu0
    %v844 = vpop.f32.mrf.mxu0
    %v845 = vpop.f32.mrf.mxu0
    %846 = vdwg.mxu0
    %v847 = vadd.f32 %v564, %v732
    %v848 = vxor.u32 %v847, 2147483648
    %v849 = vmul.f32 %v848, 1.442695
    %v850 = vpow.pop %v849
    %v851 = vadd.f32 %v850, 1.0
    %v852 = vrcp.pop %v851
    %v853 = vmul.f32 1.0, %v852
    %v854 = vadd.f32 %v622, %v784
    %v855 = vxor.u32 %v854, 2147483648
    %v856 = vmul.f32 %v855, 1.442695
    %v857 = vpow.pop %v856
    %v858 = vadd.f32 %v857, 1.0
    %v859 = vrcp.pop %v858
    %v860 = vmul.f32 1.0, %v859
    %v861 = vmul.f32 %v853, %v842
    %v862 = vadd.f32 %v680, %v861
    %v863 = vtanh.pop %v862
    %v864 = vsub.f32 1.0, %v860
    %v865 = vmul.f32 %v864, %v863
    %v866 = vmul.f32 %v860, 0.0
    %v867 = vadd.f32 %v865, %v866
    %v868 = vld [vmem:[#allocation2 + $0x2] sm:$0x3]
    %v869 = vld [vmem:[#allocation3 + $0x2] sm:$0x3]
    %v870 = vld [vmem:[#allocation4 + $0x2] sm:$0x3]
    %871 = vmatprep.subr.bf16.mxu0 0
    %872 = vmatpush1.bf16.msra.mxu0 0
    %873 = vmatprep.subr.bf16.mxu0 0
    %874 = vmatpush1.bf16.msra.mxu0 0
    %875 = vmatprep.subr.bf16.mxu0 0
    %876 = vmatpush1.bf16.msra.mxu0 0
    %877 = vmatprep.subr.bf16.mxu0 0
    %878 = vmatpush1.bf16.msra.mxu0 0
    %879 = vmatprep.subr.bf16.mxu0 0
    %880 = vmatpush1.bf16.msra.mxu0 0
    %881 = vmatprep.subr.bf16.mxu0 0
    %882 = vmatpush1.bf16.msra.mxu0 0
    %883 = vmatprep.subr.bf16.mxu0 0
    %884 = vmatpush1.bf16.msra.mxu0 %v330
    %885 = vmatprep.subr.bf16.mxu0 0
    %886 = vmatpush1.bf16.msra.mxu0 %v329
    %887 = vmatprep.subr.bf16.mxu0 0
    %888 = vmatpush2.bf16.msra.mxu0 0
    %889 = vmatprep.subr.bf16.mxu0 0
    %890 = vmatpush2.bf16.msra.mxu0 0
    %891 = vmatprep.subr.bf16.mxu0 0
    %892 = vmatpush2.bf16.msra.mxu0 0
    %893 = vmatprep.subr.bf16.mxu0 0
    %894 = vmatpush2.bf16.msra.mxu0 0
    %895 = vmatprep.subr.bf16.mxu0 0
    %896 = vmatpush2.bf16.msra.mxu0 0
    %897 = vmatprep.subr.bf16.mxu0 0
    %898 = vmatpush2.bf16.msra.mxu0 0
    %899 = vmatprep.subr.bf16.mxu0 0
    %900 = vmatpush2.bf16.msra.mxu0 0
    %901 = vmatprep.subr.bf16.mxu0 0
    %902 = vmatpush2.bf16.msra.mxu0 0
    %903 = vmatprep.mubr.bf16.mxu0 0
    %904 = vmatmul.mubr.bf16.gmra.mxu0 %v527
    %v905 = vpop.f32.mrf.mxu0
    %v906 = vadd.f32 0.0, %v905
    %v907 = vpop.f32.mrf.mxu0
    %v908 = vpop.f32.mrf.mxu0
    %v909 = vpop.f32.mrf.mxu0
    %910 = vdwg.mxu0
    %911 = vmatprep.subr.bf16.mxu0 0
    %912 = vmatpush1.bf16.msra.mxu0 0
    %913 = vmatprep.subr.bf16.mxu0 0
    %914 = vmatpush1.bf16.msra.mxu0 0
    %915 = vmatprep.subr.bf16.mxu0 0
    %916 = vmatpush1.bf16.msra.mxu0 0
    %917 = vmatprep.subr.bf16.mxu0 0
    %918 = vmatpush1.bf16.msra.mxu0 0
    %919 = vmatprep.subr.bf16.mxu0 0
    %920 = vmatpush1.bf16.msra.mxu0 0
    %921 = vmatprep.subr.bf16.mxu0 0
    %922 = vmatpush1.bf16.msra.mxu0 0
    %923 = vmatprep.subr.bf16.mxu0 0
    %924 = vmatpush1.bf16.msra.mxu0 %v385
    %925 = vmatprep.subr.bf16.mxu0 0
    %926 = vmatpush1.bf16.msra.mxu0 %v384
    %927 = vmatprep.subr.bf16.mxu0 0
    %928 = vmatpush2.bf16.msra.mxu0 0
    %929 = vmatprep.subr.bf16.mxu0 0
    %930 = vmatpush2.bf16.msra.mxu0 0
    %931 = vmatprep.subr.bf16.mxu0 0
    %932 = vmatpush2.bf16.msra.mxu0 0
    %933 = vmatprep.subr.bf16.mxu0 0
    %934 = vmatpush2.bf16.msra.mxu0 0
    %935 = vmatprep.subr.bf16.mxu0 0
    %936 = vmatpush2.bf16.msra.mxu0 0
    %937 = vmatprep.subr.bf16.mxu0 0
    %938 = vmatpush2.bf16.msra.mxu0 0
    %939 = vmatprep.subr.bf16.mxu0 0
    %940 = vmatpush2.bf16.msra.mxu0 0
    %941 = vmatprep.subr.bf16.mxu0 0
    %942 = vmatpush2.bf16.msra.mxu0 0
    %943 = vmatprep.mubr.bf16.mxu0 0
    %944 = vmatmul.mubr.bf16.gmra.mxu0 %v527
    %v945 = vpop.f32.mrf.mxu0
    %v946 = vadd.f32 0.0, %v945
    %v947 = vpop.f32.mrf.mxu0
    %v948 = vpop.f32.mrf.mxu0
    %v949 = vpop.f32.mrf.mxu0
    %950 = vdwg.mxu0
    %951 = vmatprep.subr.bf16.mxu0 0
    %952 = vmatpush1.bf16.msra.mxu0 0
    %953 = vmatprep.subr.bf16.mxu0 0
    %954 = vmatpush1.bf16.msra.mxu0 0
    %955 = vmatprep.subr.bf16.mxu0 0
    %956 = vmatpush1.bf16.msra.mxu0 0
    %957 = vmatprep.subr.bf16.mxu0 0
    %958 = vmatpush1.bf16.msra.mxu0 0
    %959 = vmatprep.subr.bf16.mxu0 0
    %960 = vmatpush1.bf16.msra.mxu0 0
    %961 = vmatprep.subr.bf16.mxu0 0
    %962 = vmatpush1.bf16.msra.mxu0 0
    %963 = vmatprep.subr.bf16.mxu0 0
    %964 = vmatpush1.bf16.msra.mxu0 %v443
    %965 = vmatprep.subr.bf16.mxu0 0
    %966 = vmatpush1.bf16.msra.mxu0 %v442
    %967 = vmatprep.subr.bf16.mxu0 0
    %968 = vmatpush2.bf16.msra.mxu0 0
    %969 = vmatprep.subr.bf16.mxu0 0
    %970 = vmatpush2.bf16.msra.mxu0 0
    %971 = vmatprep.subr.bf16.mxu0 0
    %972 = vmatpush2.bf16.msra.mxu0 0
    %973 = vmatprep.subr.bf16.mxu0 0
    %974 = vmatpush2.bf16.msra.mxu0 0
    %975 = vmatprep.subr.bf16.mxu0 0
    %976 = vmatpush2.bf16.msra.mxu0 0
    %977 = vmatprep.subr.bf16.mxu0 0
    %978 = vmatpush2.bf16.msra.mxu0 0
    %979 = vmatprep.subr.bf16.mxu0 0
    %980 = vmatpush2.bf16.msra.mxu0 0
    %981 = vmatprep.subr.bf16.mxu0 0
    %982 = vmatpush2.bf16.msra.mxu0 0
    %983 = vmatprep.mubr.bf16.mxu0 0
    %984 = vmatmul.mubr.bf16.gmra.mxu0 %v527
    %v985 = vpop.f32.mrf.mxu0
    %v986 = vadd.f32 %v432, %v985
    %v987 = vpop.f32.mrf.mxu0
    %v988 = vpop.f32.mrf.mxu0
    %v989 = vpop.f32.mrf.mxu0
    %990 = vdwg.mxu0
    %v991 = vadd.f32 %v868, %v906
    %v992 = vxor.u32 %v991, 2147483648
    %v993 = vmul.f32 %v992, 1.442695
    %v994 = vpow.pop %v993
    %v995 = vadd.f32 %v994, 1.0
    %v996 = vrcp.pop %v995
    %v997 = vmul.f32 1.0, %v996
    %v998 = vadd.f32 %v869, %v946
    %v999 = vxor.u32 %v998, 2147483648
    %v1000 = vmul.f32 %v999, 1.442695
    %v1001 = vpow.pop %v1000
    %v1002 = vadd.f32 %v1001, 1.0
    %v1003 = vrcp.pop %v1002
    %v1004 = vmul.f32 1.0, %v1003
    %v1005 = vmul.f32 %v997, %v986
    %v1006 = vadd.f32 %v870, %v1005
    %v1007 = vtanh.pop %v1006
    %v1008 = vsub.f32 1.0, %v1004
    %v1009 = vmul.f32 %v1008, %v1007
    %v1010 = vmul.f32 %v1004, %v506
    %v1011 = vadd.f32 %v1009, %v1010
    %v1012 = vpack.c.bf16 %v1011, %v1011
    %v1014 = vsel %vm154, %v1012, 0
    %1016 = vmatprep.subr.bf16.mxu0 0
    %1017 = vmatpush1.bf16.msra.mxu0 0
    %1018 = vmatprep.subr.bf16.mxu0 0
    %1019 = vmatpush1.bf16.msra.mxu0 0
    %1020 = vmatprep.subr.bf16.mxu0 0
    %1021 = vmatpush1.bf16.msra.mxu0 0
    %1022 = vmatprep.subr.bf16.mxu0 0
    %1023 = vmatpush1.bf16.msra.mxu0 0
    %1024 = vmatprep.subr.bf16.mxu0 0
    %1025 = vmatpush1.bf16.msra.mxu0 0
    %1026 = vmatprep.subr.bf16.mxu0 0
    %1027 = vmatpush1.bf16.msra.mxu0 0
    %1028 = vmatprep.subr.bf16.mxu0 0
    %1029 = vmatpush1.bf16.msra.mxu0 %v523
    %1030 = vmatprep.subr.bf16.mxu0 0
    %1031 = vmatpush1.bf16.msra.mxu0 %v522
    %1032 = vmatprep.subr.bf16.mxu0 0
    %1033 = vmatpush2.bf16.msra.mxu0 0
    %1034 = vmatprep.subr.bf16.mxu0 0
    %1035 = vmatpush2.bf16.msra.mxu0 0
    %1036 = vmatprep.subr.bf16.mxu0 0
    %1037 = vmatpush2.bf16.msra.mxu0 0
    %1038 = vmatprep.subr.bf16.mxu0 0
    %1039 = vmatpush2.bf16.msra.mxu0 0
    %1040 = vmatprep.subr.bf16.mxu0 0
    %1041 = vmatpush2.bf16.msra.mxu0 0
    %1042 = vmatprep.subr.bf16.mxu0 0
    %1043 = vmatpush2.bf16.msra.mxu0 0
    %1044 = vmatprep.subr.bf16.mxu0 0
    %1045 = vmatpush2.bf16.msra.mxu0 0
    %1046 = vmatprep.subr.bf16.mxu0 0
    %1047 = vmatpush2.bf16.msra.mxu0 0
    %1048 = vmatprep.mubr.bf16.mxu0 0
    %1049 = vmatmul.mubr.bf16.gmra.mxu0 %v1014
    %v1050 = vpop.f32.mrf.mxu0
    %v1051 = vadd.f32 %v512, %v1050
    %v1052 = vpop.f32.mrf.mxu0
    %v1053 = vpop.f32.mrf.mxu0
    %v1054 = vpop.f32.mrf.mxu0
    %1055 = vdwg.mxu0
    %1056 = vmatprep.subr.bf16.mxu0 0
    %1057 = vmatpush1.bf16.msra.mxu0 0
    %1058 = vmatprep.subr.bf16.mxu0 0
    %1059 = vmatpush1.bf16.msra.mxu0 0
    %1060 = vmatprep.subr.bf16.mxu0 0
    %1061 = vmatpush1.bf16.msra.mxu0 0
    %1062 = vmatprep.subr.bf16.mxu0 0
    %1063 = vmatpush1.bf16.msra.mxu0 0
    %1064 = vmatprep.subr.bf16.mxu0 0
    %1065 = vmatpush1.bf16.msra.mxu0 0
    %1066 = vmatprep.subr.bf16.mxu0 0
    %1067 = vmatpush1.bf16.msra.mxu0 0
    %1068 = vmatprep.subr.bf16.mxu0 0
    %1069 = vmatpush1.bf16.msra.mxu0 %v584
    %1070 = vmatprep.subr.bf16.mxu0 0
    %1071 = vmatpush1.bf16.msra.mxu0 %v583
    %1072 = vmatprep.subr.bf16.mxu0 0
    %1073 = vmatpush2.bf16.msra.mxu0 0
    %1074 = vmatprep.subr.bf16.mxu0 0
    %1075 = vmatpush2.bf16.msra.mxu0 0
    %1076 = vmatprep.subr.bf16.mxu0 0
    %1077 = vmatpush2.bf16.msra.mxu0 0
    %1078 = vmatprep.subr.bf16.mxu0 0
    %1079 = vmatpush2.bf16.msra.mxu0 0
    %1080 = vmatprep.subr.bf16.mxu0 0
    %1081 = vmatpush2.bf16.msra.mxu0 0
    %1082 = vmatprep.subr.bf16.mxu0 0
    %1083 = vmatpush2.bf16.msra.mxu0 0
    %1084 = vmatprep.subr.bf16.mxu0 0
    %1085 = vmatpush2.bf16.msra.mxu0 0
    %1086 = vmatprep.subr.bf16.mxu0 0
    %1087 = vmatpush2.bf16.msra.mxu0 0
    %1088 = vmatprep.mubr.bf16.mxu0 0
    %1089 = vmatmul.mubr.bf16.gmra.mxu0 %v1014
    %v1090 = vpop.f32.mrf.mxu0
    %v1091 = vadd.f32 %v573, %v1090
    %v1092 = vpop.f32.mrf.mxu0
    %v1093 = vpop.f32.mrf.mxu0
    %v1094 = vpop.f32.mrf.mxu0
    %1095 = vdwg.mxu0
    %1096 = vmatprep.subr.bf16.mxu0 0
    %1097 = vmatpush1.bf16.msra.mxu0 0
    %1098 = vmatprep.subr.bf16.mxu0 0
    %1099 = vmatpush1.bf16.msra.mxu0 0
    %1100 = vmatprep.subr.bf16.mxu0 0
    %1101 = vmatpush1.bf16.msra.mxu0 0
    %1102 = vmatprep.subr.bf16.mxu0 0
    %1103 = vmatpush1.bf16.msra.mxu0 0
    %1104 = vmatprep.subr.bf16.mxu0 0
    %1105 = vmatpush1.bf16.msra.mxu0 0
    %1106 = vmatprep.subr.bf16.mxu0 0
    %1107 = vmatpush1.bf16.msra.mxu0 0
    %1108 = vmatprep.subr.bf16.mxu0 0
    %1109 = vmatpush1.bf16.msra.mxu0 %v642
    %1110 = vmatprep.subr.bf16.mxu0 0
    %1111 = vmatpush1.bf16.msra.mxu0 %v641
    %1112 = vmatprep.subr.bf16.mxu0 0
    %1113 = vmatpush2.bf16.msra.mxu0 0
    %1114 = vmatprep.subr.bf16.mxu0 0
    %1115 = vmatpush2.bf16.msra.mxu0 0
    %1116 = vmatprep.subr.bf16.mxu0 0
    %1117 = vmatpush2.bf16.msra.mxu0 0
    %1118 = vmatprep.subr.bf16.mxu0 0
    %1119 = vmatpush2.bf16.msra.mxu0 0
    %1120 = vmatprep.subr.bf16.mxu0 0
    %1121 = vmatpush2.bf16.msra.mxu0 0
    %1122 = vmatprep.subr.bf16.mxu0 0
    %1123 = vmatpush2.bf16.msra.mxu0 0
    %1124 = vmatprep.subr.bf16.mxu0 0
    %1125 = vmatpush2.bf16.msra.mxu0 0
    %1126 = vmatprep.subr.bf16.mxu0 0
    %1127 = vmatpush2.bf16.msra.mxu0 0
    %1128 = vmatprep.mubr.bf16.mxu0 0
    %1129 = vmatmul.mubr.bf16.gmra.mxu0 %v1014
    %v1130 = vpop.f32.mrf.mxu0
    %v1131 = vadd.f32 %v631, %v1130
    %v1132 = vpop.f32.mrf.mxu0
    %v1133 = vpop.f32.mrf.mxu0
    %v1134 = vpop.f32.mrf.mxu0
    %1135 = vdwg.mxu0
    %v1136 = vpack.c.bf16 %v867, %v867
    %v1138 = vsel %vm154, %v1136, 0
    %1140 = vmatprep.subr.bf16.mxu0 0
    %1141 = vmatpush1.bf16.msra.mxu0 0
    %1142 = vmatprep.subr.bf16.mxu0 0
    %1143 = vmatpush1.bf16.msra.mxu0 0
    %1144 = vmatprep.subr.bf16.mxu0 0
    %1145 = vmatpush1.bf16.msra.mxu0 0
    %1146 = vmatprep.subr.bf16.mxu0 0
    %1147 = vmatpush1.bf16.msra.mxu0 0
    %1148 = vmatprep.subr.bf16.mxu0 0
    %1149 = vmatpush1.bf16.msra.mxu0 0
    %1150 = vmatprep.subr.bf16.mxu0 0
    %1151 = vmatpush1.bf16.msra.mxu0 0
    %1152 = vmatprep.subr.bf16.mxu0 0
    %1153 = vmatpush1.bf16.msra.mxu0 %v694
    %1154 = vmatprep.subr.bf16.mxu0 0
    %1155 = vmatpush1.bf16.msra.mxu0 %v693
    %1156 = vmatprep.subr.bf16.mxu0 0
    %1157 = vmatpush2.bf16.msra.mxu0 0
    %1158 = vmatprep.subr.bf16.mxu0 0
    %1159 = vmatpush2.bf16.msra.mxu0 0
    %1160 = vmatprep.subr.bf16.mxu0 0
    %1161 = vmatpush2.bf16.msra.mxu0 0
    %1162 = vmatprep.subr.bf16.mxu0 0
    %1163 = vmatpush2.bf16.msra.mxu0 0
    %1164 = vmatprep.subr.bf16.mxu0 0
    %1165 = vmatpush2.bf16.msra.mxu0 0
    %1166 = vmatprep.subr.bf16.mxu0 0
    %1167 = vmatpush2.bf16.msra.mxu0 0
    %1168 = vmatprep.subr.bf16.mxu0 0
    %1169 = vmatpush2.bf16.msra.mxu0 0
    %1170 = vmatprep.subr.bf16.mxu0 0
    %1171 = vmatpush2.bf16.msra.mxu0 0
    %1172 = vmatprep.mubr.bf16.mxu0 0
    %1173 = vmatmul.mubr.bf16.gmra.mxu0 %v1138
    %v1174 = vpop.f32.mrf.mxu0
    %v1175 = vadd.f32 0.0, %v1174
    %v1176 = vpop.f32.mrf.mxu0
    %v1177 = vpop.f32.mrf.mxu0
    %v1178 = vpop.f32.mrf.mxu0
    %1179 = vdwg.mxu0
    %1180 = vmatprep.subr.bf16.mxu0 0
    %1181 = vmatpush1.bf16.msra.mxu0 0
    %1182 = vmatprep.subr.bf16.mxu0 0
    %1183 = vmatpush1.bf16.msra.mxu0 0
    %1184 = vmatprep.subr.bf16.mxu0 0
    %1185 = vmatpush1.bf16.msra.mxu0 0
    %1186 = vmatprep.subr.bf16.mxu0 0
    %1187 = vmatpush1.bf16.msra.mxu0 0
    %1188 = vmatprep.subr.bf16.mxu0 0
    %1189 = vmatpush1.bf16.msra.mxu0 0
    %1190 = vmatprep.subr.bf16.mxu0 0
    %1191 = vmatpush1.bf16.msra.mxu0 0
    %1192 = vmatprep.subr.bf16.mxu0 0
    %1193 = vmatpush1.bf16.msra.mxu0 %v746
    %1194 = vmatprep.subr.bf16.mxu0 0
    %1195 = vmatpush1.bf16.msra.mxu0 %v745
    %1196 = vmatprep.subr.bf16.mxu0 0
    %1197 = vmatpush2.bf16.msra.mxu0 0
    %1198 = vmatprep.subr.bf16.mxu0 0
    %1199 = vmatpush2.bf16.msra.mxu0 0
    %1200 = vmatprep.subr.bf16.mxu0 0
    %1201 = vmatpush2.bf16.msra.mxu0 0
    %1202 = vmatprep.subr.bf16.mxu0 0
    %1203 = vmatpush2.bf16.msra.mxu0 0
    %1204 = vmatprep.subr.bf16.mxu0 0
    %1205 = vmatpush2.bf16.msra.mxu0 0
    %1206 = vmatprep.subr.bf16.mxu0 0
    %1207 = vmatpush2.bf16.msra.mxu0 0
    %1208 = vmatprep.subr.bf16.mxu0 0
    %1209 = vmatpush2.bf16.msra.mxu0 0
    %1210 = vmatprep.subr.bf16.mxu0 0
    %1211 = vmatpush2.bf16.msra.mxu0 0
    %1212 = vmatprep.mubr.bf16.mxu0 0
    %1213 = vmatmul.mubr.bf16.gmra.mxu0 %v1138
    %v1214 = vpop.f32.mrf.mxu0
    %v1215 = vadd.f32 0.0, %v1214
    %v1216 = vpop.f32.mrf.mxu0
    %v1217 = vpop.f32.mrf.mxu0
    %v1218 = vpop.f32.mrf.mxu0
    %1219 = vdwg.mxu0
    %1220 = vmatprep.subr.bf16.mxu0 0
    %1221 = vmatpush1.bf16.msra.mxu0 0
    %1222 = vmatprep.subr.bf16.mxu0 0
    %1223 = vmatpush1.bf16.msra.mxu0 0
    %1224 = vmatprep.subr.bf16.mxu0 0
    %1225 = vmatpush1.bf16.msra.mxu0 0
    %1226 = vmatprep.subr.bf16.mxu0 0
    %1227 = vmatpush1.bf16.msra.mxu0 0
    %1228 = vmatprep.subr.bf16.mxu0 0
    %1229 = vmatpush1.bf16.msra.mxu0 0
    %1230 = vmatprep.subr.bf16.mxu0 0
    %1231 = vmatpush1.bf16.msra.mxu0 0
    %1232 = vmatprep.subr.bf16.mxu0 0
    %1233 = vmatpush1.bf16.msra.mxu0 %v804
    %1234 = vmatprep.subr.bf16.mxu0 0
    %1235 = vmatpush1.bf16.msra.mxu0 %v803
    %1236 = vmatprep.subr.bf16.mxu0 0
    %1237 = vmatpush2.bf16.msra.mxu0 0
    %1238 = vmatprep.subr.bf16.mxu0 0
    %1239 = vmatpush2.bf16.msra.mxu0 0
    %1240 = vmatprep.subr.bf16.mxu0 0
    %1241 = vmatpush2.bf16.msra.mxu0 0
    %1242 = vmatprep.subr.bf16.mxu0 0
    %1243 = vmatpush2.bf16.msra.mxu0 0
    %1244 = vmatprep.subr.bf16.mxu0 0
    %1245 = vmatpush2.bf16.msra.mxu0 0
    %1246 = vmatprep.subr.bf16.mxu0 0
    %1247 = vmatpush2.bf16.msra.mxu0 0
    %1248 = vmatprep.subr.bf16.mxu0 0
    %1249 = vmatpush2.bf16.msra.mxu0 0
    %1250 = vmatprep.subr.bf16.mxu0 0
    %1251 = vmatpush2.bf16.msra.mxu0 0
    %1252 = vmatprep.mubr.bf16.mxu0 0
    %1253 = vmatmul.mubr.bf16.gmra.mxu0 %v1138
    %v1254 = vpop.f32.mrf.mxu0
    %v1255 = vadd.f32 %v793, %v1254
    %v1256 = vpop.f32.mrf.mxu0
    %v1257 = vpop.f32.mrf.mxu0
    %v1258 = vpop.f32.mrf.mxu0
    %1259 = vdwg.mxu0
    %v1260 = vadd.f32 %v1051, %v1175
    %v1261 = vxor.u32 %v1260, 2147483648
    %v1262 = vmul.f32 %v1261, 1.442695
    %v1263 = vpow.pop %v1262
    %v1264 = vadd.f32 %v1263, 1.0
    %v1265 = vrcp.pop %v1264
    %v1266 = vmul.f32 1.0, %v1265
    %v1267 = vadd.f32 %v1091, %v1215
    %v1268 = vxor.u32 %v1267, 2147483648
    %v1269 = vmul.f32 %v1268, 1.442695
    %v1270 = vpow.pop %v1269
    %v1271 = vadd.f32 %v1270, 1.0
    %v1272 = vrcp.pop %v1271
    %v1273 = vmul.f32 1.0, %v1272
    %v1274 = vmul.f32 %v1266, %v1255
    %v1275 = vadd.f32 %v1131, %v1274
    %v1276 = vtanh.pop %v1275
    %v1277 = vsub.f32 1.0, %v1273
    %v1278 = vmul.f32 %v1277, %v1276
    %v1279 = vmul.f32 %v1273, %v867
    %v1280 = vadd.f32 %v1278, %v1279
    %v1281 = vld [vmem:[#allocation2 + $0x4] sm:$0x3]
    %v1282 = vld [vmem:[#allocation3 + $0x4] sm:$0x3]
    %v1283 = vld [vmem:[#allocation4 + $0x4] sm:$0x3]
    %1284 = vmatprep.subr.bf16.mxu0 0
    %1285 = vmatpush1.bf16.msra.mxu0 0
    %1286 = vmatprep.subr.bf16.mxu0 0
    %1287 = vmatpush1.bf16.msra.mxu0 0
    %1288 = vmatprep.subr.bf16.mxu0 0
    %1289 = vmatpush1.bf16.msra.mxu0 0
    %1290 = vmatprep.subr.bf16.mxu0 0
    %1291 = vmatpush1.bf16.msra.mxu0 0
    %1292 = vmatprep.subr.bf16.mxu0 0
    %1293 = vmatpush1.bf16.msra.mxu0 0
    %1294 = vmatprep.subr.bf16.mxu0 0
    %1295 = vmatpush1.bf16.msra.mxu0 0
    %1296 = vmatprep.subr.bf16.mxu0 0
    %1297 = vmatpush1.bf16.msra.mxu0 %v330
    %1298 = vmatprep.subr.bf16.mxu0 0
    %1299 = vmatpush1.bf16.msra.mxu0 %v329
    %1300 = vmatprep.subr.bf16.mxu0 0
    %1301 = vmatpush2.bf16.msra.mxu0 0
    %1302 = vmatprep.subr.bf16.mxu0 0
    %1303 = vmatpush2.bf16.msra.mxu0 0
    %1304 = vmatprep.subr.bf16.mxu0 0
    %1305 = vmatpush2.bf16.msra.mxu0 0
    %1306 = vmatprep.subr.bf16.mxu0 0
    %1307 = vmatpush2.bf16.msra.mxu0 0
    %1308 = vmatprep.subr.bf16.mxu0 0
    %1309 = vmatpush2.bf16.msra.mxu0 0
    %1310 = vmatprep.subr.bf16.mxu0 0
    %1311 = vmatpush2.bf16.msra.mxu0 0
    %1312 = vmatprep.subr.bf16.mxu0 0
    %1313 = vmatpush2.bf16.msra.mxu0 0
    %1314 = vmatprep.subr.bf16.mxu0 0
    %1315 = vmatpush2.bf16.msra.mxu0 0
    %1316 = vmatprep.mubr.bf16.mxu0 0
    %1317 = vmatmul.mubr.bf16.gmra.mxu0 %v1014
    %v1318 = vpop.f32.mrf.mxu0
    %v1319 = vadd.f32 0.0, %v1318
    %v1320 = vpop.f32.mrf.mxu0
    %v1321 = vpop.f32.mrf.mxu0
    %v1322 = vpop.f32.mrf.mxu0
    %1323 = vdwg.mxu0
    %1324 = vmatprep.subr.bf16.mxu0 0
    %1325 = vmatpush1.bf16.msra.mxu0 0
    %1326 = vmatprep.subr.bf16.mxu0 0
    %1327 = vmatpush1.bf16.msra.mxu0 0
    %1328 = vmatprep.subr.bf16.mxu0 0
    %1329 = vmatpush1.bf16.msra.mxu0 0
    %1330 = vmatprep.subr.bf16.mxu0 0
    %1331 = vmatpush1.bf16.msra.mxu0 0
    %1332 = vmatprep.subr.bf16.mxu0 0
    %1333 = vmatpush1.bf16.msra.mxu0 0
    %1334 = vmatprep.subr.bf16.mxu0 0
    %1335 = vmatpush1.bf16.msra.mxu0 0
    %1336 = vmatprep.subr.bf16.mxu0 0
    %1337 = vmatpush1.bf16.msra.mxu0 %v385
    %1338 = vmatprep.subr.bf16.mxu0 0
    %1339 = vmatpush1.bf16.msra.mxu0 %v384
    %1340 = vmatprep.subr.bf16.mxu0 0
    %1341 = vmatpush2.bf16.msra.mxu0 0
    %1342 = vmatprep.subr.bf16.mxu0 0
    %1343 = vmatpush2.bf16.msra.mxu0 0
    %1344 = vmatprep.subr.bf16.mxu0 0
    %1345 = vmatpush2.bf16.msra.mxu0 0
    %1346 = vmatprep.subr.bf16.mxu0 0
    %1347 = vmatpush2.bf16.msra.mxu0 0
    %1348 = vmatprep.subr.bf16.mxu0 0
    %1349 = vmatpush2.bf16.msra.mxu0 0
    %1350 = vmatprep.subr.bf16.mxu0 0
    %1351 = vmatpush2.bf16.msra.mxu0 0
    %1352 = vmatprep.subr.bf16.mxu0 0
    %1353 = vmatpush2.bf16.msra.mxu0 0
    %1354 = vmatprep.subr.bf16.mxu0 0
    %1355 = vmatpush2.bf16.msra.mxu0 0
    %1356 = vmatprep.mubr.bf16.mxu0 0
    %1357 = vmatmul.mubr.bf16.gmra.mxu0 %v1014
    %v1358 = vpop.f32.mrf.mxu0
    %v1359 = vadd.f32 0.0, %v1358
    %v1360 = vpop.f32.mrf.mxu0
    %v1361 = vpop.f32.mrf.mxu0
    %v1362 = vpop.f32.mrf.mxu0
    %1363 = vdwg.mxu0
    %1364 = vmatprep.subr.bf16.mxu0 0
    %1365 = vmatpush1.bf16.msra.mxu0 0
    %1366 = vmatprep.subr.bf16.mxu0 0
    %1367 = vmatpush1.bf16.msra.mxu0 0
    %1368 = vmatprep.subr.bf16.mxu0 0
    %1369 = vmatpush1.bf16.msra.mxu0 0
    %1370 = vmatprep.subr.bf16.mxu0 0
    %1371 = vmatpush1.bf16.msra.mxu0 0
    %1372 = vmatprep.subr.bf16.mxu0 0
    %1373 = vmatpush1.bf16.msra.mxu0 0
    %1374 = vmatprep.subr.bf16.mxu0 0
    %1375 = vmatpush1.bf16.msra.mxu0 0
    %1376 = vmatprep.subr.bf16.mxu0 0
    %1377 = vmatpush1.bf16.msra.mxu0 %v443
    %1378 = vmatprep.subr.bf16.mxu0 0
    %1379 = vmatpush1.bf16.msra.mxu0 %v442
    %1380 = vmatprep.subr.bf16.mxu0 0
    %1381 = vmatpush2.bf16.msra.mxu0 0
    %1382 = vmatprep.subr.bf16.mxu0 0
    %1383 = vmatpush2.bf16.msra.mxu0 0
    %1384 = vmatprep.subr.bf16.mxu0 0
    %1385 = vmatpush2.bf16.msra.mxu0 0
    %1386 = vmatprep.subr.bf16.mxu0 0
    %1387 = vmatpush2.bf16.msra.mxu0 0
    %1388 = vmatprep.subr.bf16.mxu0 0
    %1389 = vmatpush2.bf16.msra.mxu0 0
    %1390 = vmatprep.subr.bf16.mxu0 0
    %1391 = vmatpush2.bf16.msra.mxu0 0
    %1392 = vmatprep.subr.bf16.mxu0 0
    %1393 = vmatpush2.bf16.msra.mxu0 0
    %1394 = vmatprep.subr.bf16.mxu0 0
    %1395 = vmatpush2.bf16.msra.mxu0 0
    %1396 = vmatprep.mubr.bf16.mxu0 0
    %1397 = vmatmul.mubr.bf16.gmra.mxu0 %v1014
    %v1398 = vpop.f32.mrf.mxu0
    %v1399 = vadd.f32 %v432, %v1398
    %v1400 = vpop.f32.mrf.mxu0
    %v1401 = vpop.f32.mrf.mxu0
    %v1402 = vpop.f32.mrf.mxu0
    %1403 = vdwg.mxu0
    %v1404 = vadd.f32 %v1281, %v1319
    %v1405 = vxor.u32 %v1404, 2147483648
    %v1406 = vmul.f32 %v1405, 1.442695
    %v1407 = vpow.pop %v1406
    %v1408 = vadd.f32 %v1407, 1.0
    %v1409 = vrcp.pop %v1408
    %v1410 = vmul.f32 1.0, %v1409
    %v1411 = vadd.f32 %v1282, %v1359
    %v1412 = vxor.u32 %v1411, 2147483648
    %v1413 = vmul.f32 %v1412, 1.442695
    %v1414 = vpow.pop %v1413
    %v1415 = vadd.f32 %v1414, 1.0
    %v1416 = vrcp.pop %v1415
    %v1417 = vmul.f32 1.0, %v1416
    %v1418 = vmul.f32 %v1410, %v1399
    %v1419 = vadd.f32 %v1283, %v1418
    %v1420 = vtanh.pop %v1419
    %v1421 = vsub.f32 1.0, %v1417
    %v1422 = vmul.f32 %v1421, %v1420
    %v1423 = vmul.f32 %v1417, %v1011
    %v1424 = vadd.f32 %v1422, %v1423
    %v1425 = vpack.c.bf16 %v1424, %v1424
    %v1427 = vsel %vm154, %v1425, 0
    %1429 = vmatprep.subr.bf16.mxu0 0
    %1430 = vmatpush1.bf16.msra.mxu0 0
    %1431 = vmatprep.subr.bf16.mxu0 0
    %1432 = vmatpush1.bf16.msra.mxu0 0
    %1433 = vmatprep.subr.bf16.mxu0 0
    %1434 = vmatpush1.bf16.msra.mxu0 0
    %1435 = vmatprep.subr.bf16.mxu0 0
    %1436 = vmatpush1.bf16.msra.mxu0 0
    %1437 = vmatprep.subr.bf16.mxu0 0
    %1438 = vmatpush1.bf16.msra.mxu0 0
    %1439 = vmatprep.subr.bf16.mxu0 0
    %1440 = vmatpush1.bf16.msra.mxu0 0
    %1441 = vmatprep.subr.bf16.mxu0 0
    %1442 = vmatpush1.bf16.msra.mxu0 %v523
    %1443 = vmatprep.subr.bf16.mxu0 0
    %1444 = vmatpush1.bf16.msra.mxu0 %v522
    %1445 = vmatprep.subr.bf16.mxu0 0
    %1446 = vmatpush2.bf16.msra.mxu0 0
    %1447 = vmatprep.subr.bf16.mxu0 0
    %1448 = vmatpush2.bf16.msra.mxu0 0
    %1449 = vmatprep.subr.bf16.mxu0 0
    %1450 = vmatpush2.bf16.msra.mxu0 0
    %1451 = vmatprep.subr.bf16.mxu0 0
    %1452 = vmatpush2.bf16.msra.mxu0 0
    %1453 = vmatprep.subr.bf16.mxu0 0
    %1454 = vmatpush2.bf16.msra.mxu0 0
    %1455 = vmatprep.subr.bf16.mxu0 0
    %1456 = vmatpush2.bf16.msra.mxu0 0
    %1457 = vmatprep.subr.bf16.mxu0 0
    %1458 = vmatpush2.bf16.msra.mxu0 0
    %1459 = vmatprep.subr.bf16.mxu0 0
    %1460 = vmatpush2.bf16.msra.mxu0 0
    %1461 = vmatprep.mubr.bf16.mxu0 0
    %1462 = vmatmul.mubr.bf16.gmra.mxu0 %v1427
    %v1463 = vpop.f32.mrf.mxu0
    %v1464 = vadd.f32 %v512, %v1463
    %v1465 = vpop.f32.mrf.mxu0
    %v1466 = vpop.f32.mrf.mxu0
    %v1467 = vpop.f32.mrf.mxu0
    %1468 = vdwg.mxu0
    %1469 = vmatprep.subr.bf16.mxu0 0
    %1470 = vmatpush1.bf16.msra.mxu0 0
    %1471 = vmatprep.subr.bf16.mxu0 0
    %1472 = vmatpush1.bf16.msra.mxu0 0
    %1473 = vmatprep.subr.bf16.mxu0 0
    %1474 = vmatpush1.bf16.msra.mxu0 0
    %1475 = vmatprep.subr.bf16.mxu0 0
    %1476 = vmatpush1.bf16.msra.mxu0 0
    %1477 = vmatprep.subr.bf16.mxu0 0
    %1478 = vmatpush1.bf16.msra.mxu0 0
    %1479 = vmatprep.subr.bf16.mxu0 0
    %1480 = vmatpush1.bf16.msra.mxu0 0
    %1481 = vmatprep.subr.bf16.mxu0 0
    %1482 = vmatpush1.bf16.msra.mxu0 %v584
    %1483 = vmatprep.subr.bf16.mxu0 0
    %1484 = vmatpush1.bf16.msra.mxu0 %v583
    %1485 = vmatprep.subr.bf16.mxu0 0
    %1486 = vmatpush2.bf16.msra.mxu0 0
    %1487 = vmatprep.subr.bf16.mxu0 0
    %1488 = vmatpush2.bf16.msra.mxu0 0
    %1489 = vmatprep.subr.bf16.mxu0 0
    %1490 = vmatpush2.bf16.msra.mxu0 0
    %1491 = vmatprep.subr.bf16.mxu0 0
    %1492 = vmatpush2.bf16.msra.mxu0 0
    %1493 = vmatprep.subr.bf16.mxu0 0
    %1494 = vmatpush2.bf16.msra.mxu0 0
    %1495 = vmatprep.subr.bf16.mxu0 0
    %1496 = vmatpush2.bf16.msra.mxu0 0
    %1497 = vmatprep.subr.bf16.mxu0 0
    %1498 = vmatpush2.bf16.msra.mxu0 0
    %1499 = vmatprep.subr.bf16.mxu0 0
    %1500 = vmatpush2.bf16.msra.mxu0 0
    %1501 = vmatprep.mubr.bf16.mxu0 0
    %1502 = vmatmul.mubr.bf16.gmra.mxu0 %v1427
    %v1503 = vpop.f32.mrf.mxu0
    %v1504 = vadd.f32 %v573, %v1503
    %v1505 = vpop.f32.mrf.mxu0
    %v1506 = vpop.f32.mrf.mxu0
    %v1507 = vpop.f32.mrf.mxu0
    %1508 = vdwg.mxu0
    %1509 = vmatprep.subr.bf16.mxu0 0
    %1510 = vmatpush1.bf16.msra.mxu0 0
    %1511 = vmatprep.subr.bf16.mxu0 0
    %1512 = vmatpush1.bf16.msra.mxu0 0
    %1513 = vmatprep.subr.bf16.mxu0 0
    %1514 = vmatpush1.bf16.msra.mxu0 0
    %1515 = vmatprep.subr.bf16.mxu0 0
    %1516 = vmatpush1.bf16.msra.mxu0 0
    %1517 = vmatprep.subr.bf16.mxu0 0
    %1518 = vmatpush1.bf16.msra.mxu0 0
    %1519 = vmatprep.subr.bf16.mxu0 0
    %1520 = vmatpush1.bf16.msra.mxu0 0
    %1521 = vmatprep.subr.bf16.mxu0 0
    %1522 = vmatpush1.bf16.msra.mxu0 %v642
    %1523 = vmatprep.subr.bf16.mxu0 0
    %1524 = vmatpush1.bf16.msra.mxu0 %v641
    %1525 = vmatprep.subr.bf16.mxu0 0
    %1526 = vmatpush2.bf16.msra.mxu0 0
    %1527 = vmatprep.subr.bf16.mxu0 0
    %1528 = vmatpush2.bf16.msra.mxu0 0
    %1529 = vmatprep.subr.bf16.mxu0 0
    %1530 = vmatpush2.bf16.msra.mxu0 0
    %1531 = vmatprep.subr.bf16.mxu0 0
    %1532 = vmatpush2.bf16.msra.mxu0 0
    %1533 = vmatprep.subr.bf16.mxu0 0
    %1534 = vmatpush2.bf16.msra.mxu0 0
    %1535 = vmatprep.subr.bf16.mxu0 0
    %1536 = vmatpush2.bf16.msra.mxu0 0
    %1537 = vmatprep.subr.bf16.mxu0 0
    %1538 = vmatpush2.bf16.msra.mxu0 0
    %1539 = vmatprep.subr.bf16.mxu0 0
    %1540 = vmatpush2.bf16.msra.mxu0 0
    %1541 = vmatprep.mubr.bf16.mxu0 0
    %1542 = vmatmul.mubr.bf16.gmra.mxu0 %v1427
    %v1543 = vpop.f32.mrf.mxu0
    %v1544 = vadd.f32 %v631, %v1543
    %v1545 = vpop.f32.mrf.mxu0
    %v1546 = vpop.f32.mrf.mxu0
    %v1547 = vpop.f32.mrf.mxu0
    %1548 = vdwg.mxu0
    %v1549 = vpack.c.bf16 %v1280, %v1280
    %v1551 = vsel %vm154, %v1549, 0
    %1553 = vmatprep.subr.bf16.mxu0 0
    %1554 = vmatpush1.bf16.msra.mxu0 0
    %1555 = vmatprep.subr.bf16.mxu0 0
    %1556 = vmatpush1.bf16.msra.mxu0 0
    %1557 = vmatprep.subr.bf16.mxu0 0
    %1558 = vmatpush1.bf16.msra.mxu0 0
    %1559 = vmatprep.subr.bf16.mxu0 0
    %1560 = vmatpush1.bf16.msra.mxu0 0
    %1561 = vmatprep.subr.bf16.mxu0 0
    %1562 = vmatpush1.bf16.msra.mxu0 0
    %1563 = vmatprep.subr.bf16.mxu0 0
    %1564 = vmatpush1.bf16.msra.mxu0 0
    %1565 = vmatprep.subr.bf16.mxu0 0
    %1566 = vmatpush1.bf16.msra.mxu0 %v694
    %1567 = vmatprep.subr.bf16.mxu0 0
    %1568 = vmatpush1.bf16.msra.mxu0 %v693
    %1569 = vmatprep.subr.bf16.mxu0 0
    %1570 = vmatpush2.bf16.msra.mxu0 0
    %1571 = vmatprep.subr.bf16.mxu0 0
    %1572 = vmatpush2.bf16.msra.mxu0 0
    %1573 = vmatprep.subr.bf16.mxu0 0
    %1574 = vmatpush2.bf16.msra.mxu0 0
    %1575 = vmatprep.subr.bf16.mxu0 0
    %1576 = vmatpush2.bf16.msra.mxu0 0
    %1577 = vmatprep.subr.bf16.mxu0 0
    %1578 = vmatpush2.bf16.msra.mxu0 0
    %1579 = vmatprep.subr.bf16.mxu0 0
    %1580 = vmatpush2.bf16.msra.mxu0 0
    %1581 = vmatprep.subr.bf16.mxu0 0
    %1582 = vmatpush2.bf16.msra.mxu0 0
    %1583 = vmatprep.subr.bf16.mxu0 0
    %1584 = vmatpush2.bf16.msra.mxu0 0
    %1585 = vmatprep.mubr.bf16.mxu0 0
    %1586 = vmatmul.mubr.bf16.gmra.mxu0 %v1551
    %v1587 = vpop.f32.mrf.mxu0
    %v1588 = vadd.f32 0.0, %v1587
    %v1589 = vpop.f32.mrf.mxu0
    %v1590 = vpop.f32.mrf.mxu0
    %v1591 = vpop.f32.mrf.mxu0
    %1592 = vdwg.mxu0
    %1593 = vmatprep.subr.bf16.mxu0 0
    %1594 = vmatpush1.bf16.msra.mxu0 0
    %1595 = vmatprep.subr.bf16.mxu0 0
    %1596 = vmatpush1.bf16.msra.mxu0 0
    %1597 = vmatprep.subr.bf16.mxu0 0
    %1598 = vmatpush1.bf16.msra.mxu0 0
    %1599 = vmatprep.subr.bf16.mxu0 0
    %1600 = vmatpush1.bf16.msra.mxu0 0
    %1601 = vmatprep.subr.bf16.mxu0 0
    %1602 = vmatpush1.bf16.msra.mxu0 0
    %1603 = vmatprep.subr.bf16.mxu0 0
    %1604 = vmatpush1.bf16.msra.mxu0 0
    %1605 = vmatprep.subr.bf16.mxu0 0
    %1606 = vmatpush1.bf16.msra.mxu0 %v746
    %1607 = vmatprep.subr.bf16.mxu0 0
    %1608 = vmatpush1.bf16.msra.mxu0 %v745
    %1609 = vmatprep.subr.bf16.mxu0 0
    %1610 = vmatpush2.bf16.msra.mxu0 0
    %1611 = vmatprep.subr.bf16.mxu0 0
    %1612 = vmatpush2.bf16.msra.mxu0 0
    %1613 = vmatprep.subr.bf16.mxu0 0
    %1614 = vmatpush2.bf16.msra.mxu0 0
    %1615 = vmatprep.subr.bf16.mxu0 0
    %1616 = vmatpush2.bf16.msra.mxu0 0
    %1617 = vmatprep.subr.bf16.mxu0 0
    %1618 = vmatpush2.bf16.msra.mxu0 0
    %1619 = vmatprep.subr.bf16.mxu0 0
    %1620 = vmatpush2.bf16.msra.mxu0 0
    %1621 = vmatprep.subr.bf16.mxu0 0
    %1622 = vmatpush2.bf16.msra.mxu0 0
    %1623 = vmatprep.subr.bf16.mxu0 0
    %1624 = vmatpush2.bf16.msra.mxu0 0
    %1625 = vmatprep.mubr.bf16.mxu0 0
    %1626 = vmatmul.mubr.bf16.gmra.mxu0 %v1551
    %v1627 = vpop.f32.mrf.mxu0
    %v1628 = vadd.f32 0.0, %v1627
    %v1629 = vpop.f32.mrf.mxu0
    %v1630 = vpop.f32.mrf.mxu0
    %v1631 = vpop.f32.mrf.mxu0
    %1632 = vdwg.mxu0
    %1633 = vmatprep.subr.bf16.mxu0 0
    %1634 = vmatpush1.bf16.msra.mxu0 0
    %1635 = vmatprep.subr.bf16.mxu0 0
    %1636 = vmatpush1.bf16.msra.mxu0 0
    %1637 = vmatprep.subr.bf16.mxu0 0
    %1638 = vmatpush1.bf16.msra.mxu0 0
    %1639 = vmatprep.subr.bf16.mxu0 0
    %1640 = vmatpush1.bf16.msra.mxu0 0
    %1641 = vmatprep.subr.bf16.mxu0 0
    %1642 = vmatpush1.bf16.msra.mxu0 0
    %1643 = vmatprep.subr.bf16.mxu0 0
    %1644 = vmatpush1.bf16.msra.mxu0 0
    %1645 = vmatprep.subr.bf16.mxu0 0
    %1646 = vmatpush1.bf16.msra.mxu0 %v804
    %1647 = vmatprep.subr.bf16.mxu0 0
    %1648 = vmatpush1.bf16.msra.mxu0 %v803
    %1649 = vmatprep.subr.bf16.mxu0 0
    %1650 = vmatpush2.bf16.msra.mxu0 0
    %1651 = vmatprep.subr.bf16.mxu0 0
    %1652 = vmatpush2.bf16.msra.mxu0 0
    %1653 = vmatprep.subr.bf16.mxu0 0
    %1654 = vmatpush2.bf16.msra.mxu0 0
    %1655 = vmatprep.subr.bf16.mxu0 0
    %1656 = vmatpush2.bf16.msra.mxu0 0
    %1657 = vmatprep.subr.bf16.mxu0 0
    %1658 = vmatpush2.bf16.msra.mxu0 0
    %1659 = vmatprep.subr.bf16.mxu0 0
    %1660 = vmatpush2.bf16.msra.mxu0 0
    %1661 = vmatprep.subr.bf16.mxu0 0
    %1662 = vmatpush2.bf16.msra.mxu0 0
    %1663 = vmatprep.subr.bf16.mxu0 0
    %1664 = vmatpush2.bf16.msra.mxu0 0
    %1665 = vmatprep.mubr.bf16.mxu0 0
    %1666 = vmatmul.mubr.bf16.gmra.mxu0 %v1551
    %v1667 = vpop.f32.mrf.mxu0
    %v1668 = vadd.f32 %v793, %v1667
    %v1669 = vpop.f32.mrf.mxu0
    %v1670 = vpop.f32.mrf.mxu0
    %v1671 = vpop.f32.mrf.mxu0
    %1672 = vdwg.mxu0
    %v1673 = vadd.f32 %v1464, %v1588
    %v1674 = vxor.u32 %v1673, 2147483648
    %v1675 = vmul.f32 %v1674, 1.442695
    %v1676 = vpow.pop %v1675
    %v1677 = vadd.f32 %v1676, 1.0
    %v1678 = vrcp.pop %v1677
    %v1679 = vmul.f32 1.0, %v1678
    %v1680 = vadd.f32 %v1504, %v1628
    %v1681 = vxor.u32 %v1680, 2147483648
    %v1682 = vmul.f32 %v1681, 1.442695
    %v1683 = vpow.pop %v1682
    %v1684 = vadd.f32 %v1683, 1.0
    %v1685 = vrcp.pop %v1684
    %v1686 = vmul.f32 1.0, %v1685
    %v1687 = vmul.f32 %v1679, %v1668
    %v1688 = vadd.f32 %v1544, %v1687
    %v1689 = vtanh.pop %v1688
    %v1690 = vsub.f32 1.0, %v1686
    %v1691 = vmul.f32 %v1690, %v1689
    %v1692 = vmul.f32 %v1686, %v1280
    %v1693 = vadd.f32 %v1691, %v1692
    %v1694 = vld [vmem:[#allocation2 + $0x6] sm:$0x3]
    %v1695 = vld [vmem:[#allocation3 + $0x6] sm:$0x3]
    %v1696 = vld [vmem:[#allocation4 + $0x6] sm:$0x3]
    %1697 = vmatprep.subr.bf16.mxu0 0
    %1698 = vmatpush1.bf16.msra.mxu0 0
    %1699 = vmatprep.subr.bf16.mxu0 0
    %1700 = vmatpush1.bf16.msra.mxu0 0
    %1701 = vmatprep.subr.bf16.mxu0 0
    %1702 = vmatpush1.bf16.msra.mxu0 0
    %1703 = vmatprep.subr.bf16.mxu0 0
    %1704 = vmatpush1.bf16.msra.mxu0 0
    %1705 = vmatprep.subr.bf16.mxu0 0
    %1706 = vmatpush1.bf16.msra.mxu0 0
    %1707 = vmatprep.subr.bf16.mxu0 0
    %1708 = vmatpush1.bf16.msra.mxu0 0
    %1709 = vmatprep.subr.bf16.mxu0 0
    %1710 = vmatpush1.bf16.msra.mxu0 %v330
    %1711 = vmatprep.subr.bf16.mxu0 0
    %1712 = vmatpush1.bf16.msra.mxu0 %v329
    %1713 = vmatprep.subr.bf16.mxu0 0
    %1714 = vmatpush2.bf16.msra.mxu0 0
    %1715 = vmatprep.subr.bf16.mxu0 0
    %1716 = vmatpush2.bf16.msra.mxu0 0
    %1717 = vmatprep.subr.bf16.mxu0 0
    %1718 = vmatpush2.bf16.msra.mxu0 0
    %1719 = vmatprep.subr.bf16.mxu0 0
    %1720 = vmatpush2.bf16.msra.mxu0 0
    %1721 = vmatprep.subr.bf16.mxu0 0
    %1722 = vmatpush2.bf16.msra.mxu0 0
    %1723 = vmatprep.subr.bf16.mxu0 0
    %1724 = vmatpush2.bf16.msra.mxu0 0
    %1725 = vmatprep.subr.bf16.mxu0 0
    %1726 = vmatpush2.bf16.msra.mxu0 0
    %1727 = vmatprep.subr.bf16.mxu0 0
    %1728 = vmatpush2.bf16.msra.mxu0 0
    %1729 = vmatprep.mubr.bf16.mxu0 0
    %1730 = vmatmul.mubr.bf16.gmra.mxu0 %v1427
    %v1731 = vpop.f32.mrf.mxu0
    %v1732 = vadd.f32 0.0, %v1731
    %v1733 = vpop.f32.mrf.mxu0
    %v1734 = vpop.f32.mrf.mxu0
    %v1735 = vpop.f32.mrf.mxu0
    %1736 = vdwg.mxu0
    %1737 = vmatprep.subr.bf16.mxu0 0
    %1738 = vmatpush1.bf16.msra.mxu0 0
    %1739 = vmatprep.subr.bf16.mxu0 0
    %1740 = vmatpush1.bf16.msra.mxu0 0
    %1741 = vmatprep.subr.bf16.mxu0 0
    %1742 = vmatpush1.bf16.msra.mxu0 0
    %1743 = vmatprep.subr.bf16.mxu0 0
    %1744 = vmatpush1.bf16.msra.mxu0 0
    %1745 = vmatprep.subr.bf16.mxu0 0
    %1746 = vmatpush1.bf16.msra.mxu0 0
    %1747 = vmatprep.subr.bf16.mxu0 0
    %1748 = vmatpush1.bf16.msra.mxu0 0
    %1749 = vmatprep.subr.bf16.mxu0 0
    %1750 = vmatpush1.bf16.msra.mxu0 %v385
    %1751 = vmatprep.subr.bf16.mxu0 0
    %1752 = vmatpush1.bf16.msra.mxu0 %v384
    %1753 = vmatprep.subr.bf16.mxu0 0
    %1754 = vmatpush2.bf16.msra.mxu0 0
    %1755 = vmatprep.subr.bf16.mxu0 0
    %1756 = vmatpush2.bf16.msra.mxu0 0
    %1757 = vmatprep.subr.bf16.mxu0 0
    %1758 = vmatpush2.bf16.msra.mxu0 0
    %1759 = vmatprep.subr.bf16.mxu0 0
    %1760 = vmatpush2.bf16.msra.mxu0 0
    %1761 = vmatprep.subr.bf16.mxu0 0
    %1762 = vmatpush2.bf16.msra.mxu0 0
    %1763 = vmatprep.subr.bf16.mxu0 0
    %1764 = vmatpush2.bf16.msra.mxu0 0
    %1765 = vmatprep.subr.bf16.mxu0 0
    %1766 = vmatpush2.bf16.msra.mxu0 0
    %1767 = vmatprep.subr.bf16.mxu0 0
    %1768 = vmatpush2.bf16.msra.mxu0 0
    %1769 = vmatprep.mubr.bf16.mxu0 0
    %1770 = vmatmul.mubr.bf16.gmra.mxu0 %v1427
    %v1771 = vpop.f32.mrf.mxu0
    %v1772 = vadd.f32 0.0, %v1771
    %v1773 = vpop.f32.mrf.mxu0
    %v1774 = vpop.f32.mrf.mxu0
    %v1775 = vpop.f32.mrf.mxu0
    %1776 = vdwg.mxu0
    %1777 = vmatprep.subr.bf16.mxu0 0
    %1778 = vmatpush1.bf16.msra.mxu0 0
    %1779 = vmatprep.subr.bf16.mxu0 0
    %1780 = vmatpush1.bf16.msra.mxu0 0
    %1781 = vmatprep.subr.bf16.mxu0 0
    %1782 = vmatpush1.bf16.msra.mxu0 0
    %1783 = vmatprep.subr.bf16.mxu0 0
    %1784 = vmatpush1.bf16.msra.mxu0 0
    %1785 = vmatprep.subr.bf16.mxu0 0
    %1786 = vmatpush1.bf16.msra.mxu0 0
    %1787 = vmatprep.subr.bf16.mxu0 0
    %1788 = vmatpush1.bf16.msra.mxu0 0
    %1789 = vmatprep.subr.bf16.mxu0 0
    %1790 = vmatpush1.bf16.msra.mxu0 %v443
    %1791 = vmatprep.subr.bf16.mxu0 0
    %1792 = vmatpush1.bf16.msra.mxu0 %v442
    %1793 = vmatprep.subr.bf16.mxu0 0
    %1794 = vmatpush2.bf16.msra.mxu0 0
    %1795 = vmatprep.subr.bf16.mxu0 0
    %1796 = vmatpush2.bf16.msra.mxu0 0
    %1797 = vmatprep.subr.bf16.mxu0 0
    %1798 = vmatpush2.bf16.msra.mxu0 0
    %1799 = vmatprep.subr.bf16.mxu0 0
    %1800 = vmatpush2.bf16.msra.mxu0 0
    %1801 = vmatprep.subr.bf16.mxu0 0
    %1802 = vmatpush2.bf16.msra.mxu0 0
    %1803 = vmatprep.subr.bf16.mxu0 0
    %1804 = vmatpush2.bf16.msra.mxu0 0
    %1805 = vmatprep.subr.bf16.mxu0 0
    %1806 = vmatpush2.bf16.msra.mxu0 0
    %1807 = vmatprep.subr.bf16.mxu0 0
    %1808 = vmatpush2.bf16.msra.mxu0 0
    %1809 = vmatprep.mubr.bf16.mxu0 0
    %1810 = vmatmul.mubr.bf16.gmra.mxu0 %v1427
    %v1811 = vpop.f32.mrf.mxu0
    %v1812 = vadd.f32 %v432, %v1811
    %v1813 = vpop.f32.mrf.mxu0
    %v1814 = vpop.f32.mrf.mxu0
    %v1815 = vpop.f32.mrf.mxu0
    %1816 = vdwg.mxu0
    %v1817 = vadd.f32 %v1694, %v1732
    %v1818 = vxor.u32 %v1817, 2147483648
    %v1819 = vmul.f32 %v1818, 1.442695
    %v1820 = vpow.pop %v1819
    %v1821 = vadd.f32 %v1820, 1.0
    %v1822 = vrcp.pop %v1821
    %v1823 = vmul.f32 1.0, %v1822
    %v1824 = vadd.f32 %v1695, %v1772
    %v1825 = vxor.u32 %v1824, 2147483648
    %v1826 = vmul.f32 %v1825, 1.442695
    %v1827 = vpow.pop %v1826
    %v1828 = vadd.f32 %v1827, 1.0
    %v1829 = vrcp.pop %v1828
    %v1830 = vmul.f32 1.0, %v1829
    %v1831 = vmul.f32 %v1823, %v1812
    %v1832 = vadd.f32 %v1696, %v1831
    %v1833 = vtanh.pop %v1832
    %v1834 = vsub.f32 1.0, %v1830
    %v1835 = vmul.f32 %v1834, %v1833
    %v1836 = vmul.f32 %v1830, %v1424
    %v1837 = vadd.f32 %v1835, %v1836
    %v1838 = vpack.c.bf16 %v1837, %v1837
    %v1840 = vsel %vm154, %v1838, 0
    %1842 = vmatprep.subr.bf16.mxu0 0
    %1843 = vmatpush1.bf16.msra.mxu0 0
    %1844 = vmatprep.subr.bf16.mxu0 0
    %1845 = vmatpush1.bf16.msra.mxu0 0
    %1846 = vmatprep.subr.bf16.mxu0 0
    %1847 = vmatpush1.bf16.msra.mxu0 0
    %1848 = vmatprep.subr.bf16.mxu0 0
    %1849 = vmatpush1.bf16.msra.mxu0 0
    %1850 = vmatprep.subr.bf16.mxu0 0
    %1851 = vmatpush1.bf16.msra.mxu0 0
    %1852 = vmatprep.subr.bf16.mxu0 0
    %1853 = vmatpush1.bf16.msra.mxu0 0
    %1854 = vmatprep.subr.bf16.mxu0 0
    %1855 = vmatpush1.bf16.msra.mxu0 %v523
    %1856 = vmatprep.subr.bf16.mxu0 0
    %1857 = vmatpush1.bf16.msra.mxu0 %v522
    %1858 = vmatprep.subr.bf16.mxu0 0
    %1859 = vmatpush2.bf16.msra.mxu0 0
    %1860 = vmatprep.subr.bf16.mxu0 0
    %1861 = vmatpush2.bf16.msra.mxu0 0
    %1862 = vmatprep.subr.bf16.mxu0 0
    %1863 = vmatpush2.bf16.msra.mxu0 0
    %1864 = vmatprep.subr.bf16.mxu0 0
    %1865 = vmatpush2.bf16.msra.mxu0 0
    %1866 = vmatprep.subr.bf16.mxu0 0
    %1867 = vmatpush2.bf16.msra.mxu0 0
    %1868 = vmatprep.subr.bf16.mxu0 0
    %1869 = vmatpush2.bf16.msra.mxu0 0
    %1870 = vmatprep.subr.bf16.mxu0 0
    %1871 = vmatpush2.bf16.msra.mxu0 0
    %1872 = vmatprep.subr.bf16.mxu0 0
    %1873 = vmatpush2.bf16.msra.mxu0 0
    %1874 = vmatprep.mubr.bf16.mxu0 0
    %1875 = vmatmul.mubr.bf16.gmra.mxu0 %v1840
    %v1876 = vpop.f32.mrf.mxu0
    %v1877 = vadd.f32 %v512, %v1876
    %v1878 = vpop.f32.mrf.mxu0
    %v1879 = vpop.f32.mrf.mxu0
    %v1880 = vpop.f32.mrf.mxu0
    %1881 = vdwg.mxu0
    %1882 = vmatprep.subr.bf16.mxu0 0
    %1883 = vmatpush1.bf16.msra.mxu0 0
    %1884 = vmatprep.subr.bf16.mxu0 0
    %1885 = vmatpush1.bf16.msra.mxu0 0
    %1886 = vmatprep.subr.bf16.mxu0 0
    %1887 = vmatpush1.bf16.msra.mxu0 0
    %1888 = vmatprep.subr.bf16.mxu0 0
    %1889 = vmatpush1.bf16.msra.mxu0 0
    %1890 = vmatprep.subr.bf16.mxu0 0
    %1891 = vmatpush1.bf16.msra.mxu0 0
    %1892 = vmatprep.subr.bf16.mxu0 0
    %1893 = vmatpush1.bf16.msra.mxu0 0
    %1894 = vmatprep.subr.bf16.mxu0 0
    %1895 = vmatpush1.bf16.msra.mxu0 %v584
    %1896 = vmatprep.subr.bf16.mxu0 0
    %1897 = vmatpush1.bf16.msra.mxu0 %v583
    %1898 = vmatprep.subr.bf16.mxu0 0
    %1899 = vmatpush2.bf16.msra.mxu0 0
    %1900 = vmatprep.subr.bf16.mxu0 0
    %1901 = vmatpush2.bf16.msra.mxu0 0
    %1902 = vmatprep.subr.bf16.mxu0 0
    %1903 = vmatpush2.bf16.msra.mxu0 0
    %1904 = vmatprep.subr.bf16.mxu0 0
    %1905 = vmatpush2.bf16.msra.mxu0 0
    %1906 = vmatprep.subr.bf16.mxu0 0
    %1907 = vmatpush2.bf16.msra.mxu0 0
    %1908 = vmatprep.subr.bf16.mxu0 0
    %1909 = vmatpush2.bf16.msra.mxu0 0
    %1910 = vmatprep.subr.bf16.mxu0 0
    %1911 = vmatpush2.bf16.msra.mxu0 0
    %1912 = vmatprep.subr.bf16.mxu0 0
    %1913 = vmatpush2.bf16.msra.mxu0 0
    %1914 = vmatprep.mubr.bf16.mxu0 0
    %1915 = vmatmul.mubr.bf16.gmra.mxu0 %v1840
    %v1916 = vpop.f32.mrf.mxu0
    %v1917 = vadd.f32 %v573, %v1916
    %v1918 = vpop.f32.mrf.mxu0
    %v1919 = vpop.f32.mrf.mxu0
    %v1920 = vpop.f32.mrf.mxu0
    %1921 = vdwg.mxu0
    %1922 = vmatprep.subr.bf16.mxu0 0
    %1923 = vmatpush1.bf16.msra.mxu0 0
    %1924 = vmatprep.subr.bf16.mxu0 0
    %1925 = vmatpush1.bf16.msra.mxu0 0
    %1926 = vmatprep.subr.bf16.mxu0 0
    %1927 = vmatpush1.bf16.msra.mxu0 0
    %1928 = vmatprep.subr.bf16.mxu0 0
    %1929 = vmatpush1.bf16.msra.mxu0 0
    %1930 = vmatprep.subr.bf16.mxu0 0
    %1931 = vmatpush1.bf16.msra.mxu0 0
    %1932 = vmatprep.subr.bf16.mxu0 0
    %1933 = vmatpush1.bf16.msra.mxu0 0
    %1934 = vmatprep.subr.bf16.mxu0 0
    %1935 = vmatpush1.bf16.msra.mxu0 %v642
    %1936 = vmatprep.subr.bf16.mxu0 0
    %1937 = vmatpush1.bf16.msra.mxu0 %v641
    %1938 = vmatprep.subr.bf16.mxu0 0
    %1939 = vmatpush2.bf16.msra.mxu0 0
    %1940 = vmatprep.subr.bf16.mxu0 0
    %1941 = vmatpush2.bf16.msra.mxu0 0
    %1942 = vmatprep.subr.bf16.mxu0 0
    %1943 = vmatpush2.bf16.msra.mxu0 0
    %1944 = vmatprep.subr.bf16.mxu0 0
    %1945 = vmatpush2.bf16.msra.mxu0 0
    %1946 = vmatprep.subr.bf16.mxu0 0
    %1947 = vmatpush2.bf16.msra.mxu0 0
    %1948 = vmatprep.subr.bf16.mxu0 0
    %1949 = vmatpush2.bf16.msra.mxu0 0
    %1950 = vmatprep.subr.bf16.mxu0 0
    %1951 = vmatpush2.bf16.msra.mxu0 0
    %1952 = vmatprep.subr.bf16.mxu0 0
    %1953 = vmatpush2.bf16.msra.mxu0 0
    %1954 = vmatprep.mubr.bf16.mxu0 0
    %1955 = vmatmul.mubr.bf16.gmra.mxu0 %v1840
    %v1956 = vpop.f32.mrf.mxu0
    %v1957 = vadd.f32 %v631, %v1956
    %v1958 = vpop.f32.mrf.mxu0
    %v1959 = vpop.f32.mrf.mxu0
    %v1960 = vpop.f32.mrf.mxu0
    %1961 = vdwg.mxu0
    %v1962 = vpack.c.bf16 %v1693, %v1693
    %v1964 = vsel %vm154, %v1962, 0
    %1966 = vmatprep.subr.bf16.mxu0 0
    %1967 = vmatpush1.bf16.msra.mxu0 0
    %1968 = vmatprep.subr.bf16.mxu0 0
    %1969 = vmatpush1.bf16.msra.mxu0 0
    %1970 = vmatprep.subr.bf16.mxu0 0
    %1971 = vmatpush1.bf16.msra.mxu0 0
    %1972 = vmatprep.subr.bf16.mxu0 0
    %1973 = vmatpush1.bf16.msra.mxu0 0
    %1974 = vmatprep.subr.bf16.mxu0 0
    %1975 = vmatpush1.bf16.msra.mxu0 0
    %1976 = vmatprep.subr.bf16.mxu0 0
    %1977 = vmatpush1.bf16.msra.mxu0 0
    %1978 = vmatprep.subr.bf16.mxu0 0
    %1979 = vmatpush1.bf16.msra.mxu0 %v694
    %1980 = vmatprep.subr.bf16.mxu0 0
    %1981 = vmatpush1.bf16.msra.mxu0 %v693
    %1982 = vmatprep.subr.bf16.mxu0 0
    %1983 = vmatpush2.bf16.msra.mxu0 0
    %1984 = vmatprep.subr.bf16.mxu0 0
    %1985 = vmatpush2.bf16.msra.mxu0 0
    %1986 = vmatprep.subr.bf16.mxu0 0
    %1987 = vmatpush2.bf16.msra.mxu0 0
    %1988 = vmatprep.subr.bf16.mxu0 0
    %1989 = vmatpush2.bf16.msra.mxu0 0
    %1990 = vmatprep.subr.bf16.mxu0 0
    %1991 = vmatpush2.bf16.msra.mxu0 0
    %1992 = vmatprep.subr.bf16.mxu0 0
    %1993 = vmatpush2.bf16.msra.mxu0 0
    %1994 = vmatprep.subr.bf16.mxu0 0
    %1995 = vmatpush2.bf16.msra.mxu0 0
    %1996 = vmatprep.subr.bf16.mxu0 0
    %1997 = vmatpush2.bf16.msra.mxu0 0
    %1998 = vmatprep.mubr.bf16.mxu0 0
    %1999 = vmatmul.mubr.bf16.gmra.mxu0 %v1964
    %v2000 = vpop.f32.mrf.mxu0
    %v2001 = vadd.f32 0.0, %v2000
    %v2002 = vpop.f32.mrf.mxu0
    %v2003 = vpop.f32.mrf.mxu0
    %v2004 = vpop.f32.mrf.mxu0
    %2005 = vdwg.mxu0
    %2006 = vmatprep.subr.bf16.mxu0 0
    %2007 = vmatpush1.bf16.msra.mxu0 0
    %2008 = vmatprep.subr.bf16.mxu0 0
    %2009 = vmatpush1.bf16.msra.mxu0 0
    %2010 = vmatprep.subr.bf16.mxu0 0
    %2011 = vmatpush1.bf16.msra.mxu0 0
    %2012 = vmatprep.subr.bf16.mxu0 0
    %2013 = vmatpush1.bf16.msra.mxu0 0
    %2014 = vmatprep.subr.bf16.mxu0 0
    %2015 = vmatpush1.bf16.msra.mxu0 0
    %2016 = vmatprep.subr.bf16.mxu0 0
    %2017 = vmatpush1.bf16.msra.mxu0 0
    %2018 = vmatprep.subr.bf16.mxu0 0
    %2019 = vmatpush1.bf16.msra.mxu0 %v746
    %2020 = vmatprep.subr.bf16.mxu0 0
    %2021 = vmatpush1.bf16.msra.mxu0 %v745
    %2022 = vmatprep.subr.bf16.mxu0 0
    %2023 = vmatpush2.bf16.msra.mxu0 0
    %2024 = vmatprep.subr.bf16.mxu0 0
    %2025 = vmatpush2.bf16.msra.mxu0 0
    %2026 = vmatprep.subr.bf16.mxu0 0
    %2027 = vmatpush2.bf16.msra.mxu0 0
    %2028 = vmatprep.subr.bf16.mxu0 0
    %2029 = vmatpush2.bf16.msra.mxu0 0
    %2030 = vmatprep.subr.bf16.mxu0 0
    %2031 = vmatpush2.bf16.msra.mxu0 0
    %2032 = vmatprep.subr.bf16.mxu0 0
    %2033 = vmatpush2.bf16.msra.mxu0 0
    %2034 = vmatprep.subr.bf16.mxu0 0
    %2035 = vmatpush2.bf16.msra.mxu0 0
    %2036 = vmatprep.subr.bf16.mxu0 0
    %2037 = vmatpush2.bf16.msra.mxu0 0
    %2038 = vmatprep.mubr.bf16.mxu0 0
    %2039 = vmatmul.mubr.bf16.gmra.mxu0 %v1964
    %v2040 = vpop.f32.mrf.mxu0
    %v2041 = vadd.f32 0.0, %v2040
    %v2042 = vpop.f32.mrf.mxu0
    %v2043 = vpop.f32.mrf.mxu0
    %v2044 = vpop.f32.mrf.mxu0
    %2045 = vdwg.mxu0
    %2046 = vmatprep.subr.bf16.mxu0 0
    %2047 = vmatpush1.bf16.msra.mxu0 0
    %2048 = vmatprep.subr.bf16.mxu0 0
    %2049 = vmatpush1.bf16.msra.mxu0 0
    %2050 = vmatprep.subr.bf16.mxu0 0
    %2051 = vmatpush1.bf16.msra.mxu0 0
    %2052 = vmatprep.subr.bf16.mxu0 0
    %2053 = vmatpush1.bf16.msra.mxu0 0
    %2054 = vmatprep.subr.bf16.mxu0 0
    %2055 = vmatpush1.bf16.msra.mxu0 0
    %2056 = vmatprep.subr.bf16.mxu0 0
    %2057 = vmatpush1.bf16.msra.mxu0 0
    %2058 = vmatprep.subr.bf16.mxu0 0
    %2059 = vmatpush1.bf16.msra.mxu0 %v804
    %2060 = vmatprep.subr.bf16.mxu0 0
    %2061 = vmatpush1.bf16.msra.mxu0 %v803
    %2062 = vmatprep.subr.bf16.mxu0 0
    %2063 = vmatpush2.bf16.msra.mxu0 0
    %2064 = vmatprep.subr.bf16.mxu0 0
    %2065 = vmatpush2.bf16.msra.mxu0 0
    %2066 = vmatprep.subr.bf16.mxu0 0
    %2067 = vmatpush2.bf16.msra.mxu0 0
    %2068 = vmatprep.subr.bf16.mxu0 0
    %2069 = vmatpush2.bf16.msra.mxu0 0
    %2070 = vmatprep.subr.bf16.mxu0 0
    %2071 = vmatpush2.bf16.msra.mxu0 0
    %2072 = vmatprep.subr.bf16.mxu0 0
    %2073 = vmatpush2.bf16.msra.mxu0 0
    %2074 = vmatprep.subr.bf16.mxu0 0
    %2075 = vmatpush2.bf16.msra.mxu0 0
    %2076 = vmatprep.subr.bf16.mxu0 0
    %2077 = vmatpush2.bf16.msra.mxu0 0
    %2078 = vmatprep.mubr.bf16.mxu0 0
    %2079 = vmatmul.mubr.bf16.gmra.mxu0 %v1964
    %v2080 = vpop.f32.mrf.mxu0
    %v2081 = vadd.f32 %v793, %v2080
    %v2082 = vpop.f32.mrf.mxu0
    %v2083 = vpop.f32.mrf.mxu0
    %v2084 = vpop.f32.mrf.mxu0
    %2085 = vdwg.mxu0
    %v2086 = vadd.f32 %v1877, %v2001
    %v2087 = vxor.u32 %v2086, 2147483648
    %v2088 = vmul.f32 %v2087, 1.442695
    %v2089 = vpow.pop %v2088
    %v2090 = vadd.f32 %v2089, 1.0
    %v2091 = vrcp.pop %v2090
    %v2092 = vmul.f32 1.0, %v2091
    %v2093 = vadd.f32 %v1917, %v2041
    %v2094 = vxor.u32 %v2093, 2147483648
    %v2095 = vmul.f32 %v2094, 1.442695
    %v2096 = vpow.pop %v2095
    %v2097 = vadd.f32 %v2096, 1.0
    %v2098 = vrcp.pop %v2097
    %v2099 = vmul.f32 1.0, %v2098
    %v2100 = vmul.f32 %v2092, %v2081
    %v2101 = vadd.f32 %v1957, %v2100
    %v2102 = vtanh.pop %v2101
    %v2103 = vsub.f32 1.0, %v2099
    %v2104 = vmul.f32 %v2103, %v2102
    %v2105 = vmul.f32 %v2099, %v1693
    %v2106 = vadd.f32 %v2104, %v2105
    %v2107 = vld [vmem:[#allocation2 + $0x8] sm:$0x3]
    %v2108 = vld [vmem:[#allocation3 + $0x8] sm:$0x3]
    %v2109 = vld [vmem:[#allocation4 + $0x8] sm:$0x3]
    %2110 = vmatprep.subr.bf16.mxu0 0
    %2111 = vmatpush1.bf16.msra.mxu0 0
    %2112 = vmatprep.subr.bf16.mxu0 0
    %2113 = vmatpush1.bf16.msra.mxu0 0
    %2114 = vmatprep.subr.bf16.mxu0 0
    %2115 = vmatpush1.bf16.msra.mxu0 0
    %2116 = vmatprep.subr.bf16.mxu0 0
    %2117 = vmatpush1.bf16.msra.mxu0 0
    %2118 = vmatprep.subr.bf16.mxu0 0
    %2119 = vmatpush1.bf16.msra.mxu0 0
    %2120 = vmatprep.subr.bf16.mxu0 0
    %2121 = vmatpush1.bf16.msra.mxu0 0
    %2122 = vmatprep.subr.bf16.mxu0 0
    %2123 = vmatpush1.bf16.msra.mxu0 %v330
    %2124 = vmatprep.subr.bf16.mxu0 0
    %2125 = vmatpush1.bf16.msra.mxu0 %v329
    %2126 = vmatprep.subr.bf16.mxu0 0
    %2127 = vmatpush2.bf16.msra.mxu0 0
    %2128 = vmatprep.subr.bf16.mxu0 0
    %2129 = vmatpush2.bf16.msra.mxu0 0
    %2130 = vmatprep.subr.bf16.mxu0 0
    %2131 = vmatpush2.bf16.msra.mxu0 0
    %2132 = vmatprep.subr.bf16.mxu0 0
    %2133 = vmatpush2.bf16.msra.mxu0 0
    %2134 = vmatprep.subr.bf16.mxu0 0
    %2135 = vmatpush2.bf16.msra.mxu0 0
    %2136 = vmatprep.subr.bf16.mxu0 0
    %2137 = vmatpush2.bf16.msra.mxu0 0
    %2138 = vmatprep.subr.bf16.mxu0 0
    %2139 = vmatpush2.bf16.msra.mxu0 0
    %2140 = vmatprep.subr.bf16.mxu0 0
    %2141 = vmatpush2.bf16.msra.mxu0 0
    %2142 = vmatprep.mubr.bf16.mxu0 0
    %2143 = vmatmul.mubr.bf16.gmra.mxu0 %v1840
    %v2144 = vpop.f32.mrf.mxu0
    %v2145 = vadd.f32 0.0, %v2144
    %v2146 = vpop.f32.mrf.mxu0
    %v2147 = vpop.f32.mrf.mxu0
    %v2148 = vpop.f32.mrf.mxu0
    %2149 = vdwg.mxu0
    %2150 = vmatprep.subr.bf16.mxu0 0
    %2151 = vmatpush1.bf16.msra.mxu0 0
    %2152 = vmatprep.subr.bf16.mxu0 0
    %2153 = vmatpush1.bf16.msra.mxu0 0
    %2154 = vmatprep.subr.bf16.mxu0 0
    %2155 = vmatpush1.bf16.msra.mxu0 0
    %2156 = vmatprep.subr.bf16.mxu0 0
    %2157 = vmatpush1.bf16.msra.mxu0 0
    %2158 = vmatprep.subr.bf16.mxu0 0
    %2159 = vmatpush1.bf16.msra.mxu0 0
    %2160 = vmatprep.subr.bf16.mxu0 0
    %2161 = vmatpush1.bf16.msra.mxu0 0
    %2162 = vmatprep.subr.bf16.mxu0 0
    %2163 = vmatpush1.bf16.msra.mxu0 %v385
    %2164 = vmatprep.subr.bf16.mxu0 0
    %2165 = vmatpush1.bf16.msra.mxu0 %v384
    %2166 = vmatprep.subr.bf16.mxu0 0
    %2167 = vmatpush2.bf16.msra.mxu0 0
    %2168 = vmatprep.subr.bf16.mxu0 0
    %2169 = vmatpush2.bf16.msra.mxu0 0
    %2170 = vmatprep.subr.bf16.mxu0 0
    %2171 = vmatpush2.bf16.msra.mxu0 0
    %2172 = vmatprep.subr.bf16.mxu0 0
    %2173 = vmatpush2.bf16.msra.mxu0 0
    %2174 = vmatprep.subr.bf16.mxu0 0
    %2175 = vmatpush2.bf16.msra.mxu0 0
    %2176 = vmatprep.subr.bf16.mxu0 0
    %2177 = vmatpush2.bf16.msra.mxu0 0
    %2178 = vmatprep.subr.bf16.mxu0 0
    %2179 = vmatpush2.bf16.msra.mxu0 0
    %2180 = vmatprep.subr.bf16.mxu0 0
    %2181 = vmatpush2.bf16.msra.mxu0 0
    %2182 = vmatprep.mubr.bf16.mxu0 0
    %2183 = vmatmul.mubr.bf16.gmra.mxu0 %v1840
    %v2184 = vpop.f32.mrf.mxu0
    %v2185 = vadd.f32 0.0, %v2184
    %v2186 = vpop.f32.mrf.mxu0
    %v2187 = vpop.f32.mrf.mxu0
    %v2188 = vpop.f32.mrf.mxu0
    %2189 = vdwg.mxu0
    %2190 = vmatprep.subr.bf16.mxu0 0
    %2191 = vmatpush1.bf16.msra.mxu0 0
    %2192 = vmatprep.subr.bf16.mxu0 0
    %2193 = vmatpush1.bf16.msra.mxu0 0
    %2194 = vmatprep.subr.bf16.mxu0 0
    %2195 = vmatpush1.bf16.msra.mxu0 0
    %2196 = vmatprep.subr.bf16.mxu0 0
    %2197 = vmatpush1.bf16.msra.mxu0 0
    %2198 = vmatprep.subr.bf16.mxu0 0
    %2199 = vmatpush1.bf16.msra.mxu0 0
    %2200 = vmatprep.subr.bf16.mxu0 0
    %2201 = vmatpush1.bf16.msra.mxu0 0
    %2202 = vmatprep.subr.bf16.mxu0 0
    %2203 = vmatpush1.bf16.msra.mxu0 %v443
    %2204 = vmatprep.subr.bf16.mxu0 0
    %2205 = vmatpush1.bf16.msra.mxu0 %v442
    %2206 = vmatprep.subr.bf16.mxu0 0
    %2207 = vmatpush2.bf16.msra.mxu0 0
    %2208 = vmatprep.subr.bf16.mxu0 0
    %2209 = vmatpush2.bf16.msra.mxu0 0
    %2210 = vmatprep.subr.bf16.mxu0 0
    %2211 = vmatpush2.bf16.msra.mxu0 0
    %2212 = vmatprep.subr.bf16.mxu0 0
    %2213 = vmatpush2.bf16.msra.mxu0 0
    %2214 = vmatprep.subr.bf16.mxu0 0
    %2215 = vmatpush2.bf16.msra.mxu0 0
    %2216 = vmatprep.subr.bf16.mxu0 0
    %2217 = vmatpush2.bf16.msra.mxu0 0
    %2218 = vmatprep.subr.bf16.mxu0 0
    %2219 = vmatpush2.bf16.msra.mxu0 0
    %2220 = vmatprep.subr.bf16.mxu0 0
    %2221 = vmatpush2.bf16.msra.mxu0 0
    %2222 = vmatprep.mubr.bf16.mxu0 0
    %2223 = vmatmul.mubr.bf16.gmra.mxu0 %v1840
    %v2224 = vpop.f32.mrf.mxu0
    %v2225 = vadd.f32 %v432, %v2224
    %v2226 = vpop.f32.mrf.mxu0
    %v2227 = vpop.f32.mrf.mxu0
    %v2228 = vpop.f32.mrf.mxu0
    %2229 = vdwg.mxu0
    %v2230 = vadd.f32 %v2107, %v2145
    %v2231 = vxor.u32 %v2230, 2147483648
    %v2232 = vmul.f32 %v2231, 1.442695
    %v2233 = vpow.pop %v2232
    %v2234 = vadd.f32 %v2233, 1.0
    %v2235 = vrcp.pop %v2234
    %v2236 = vmul.f32 1.0, %v2235
    %v2237 = vadd.f32 %v2108, %v2185
    %v2238 = vxor.u32 %v2237, 2147483648
    %v2239 = vmul.f32 %v2238, 1.442695
    %v2240 = vpow.pop %v2239
    %v2241 = vadd.f32 %v2240, 1.0
    %v2242 = vrcp.pop %v2241
    %v2243 = vmul.f32 1.0, %v2242
    %v2244 = vmul.f32 %v2236, %v2225
    %v2245 = vadd.f32 %v2109, %v2244
    %v2246 = vtanh.pop %v2245
    %v2247 = vsub.f32 1.0, %v2243
    %v2248 = vmul.f32 %v2247, %v2246
    %v2249 = vmul.f32 %v2243, %v1837
    %v2250 = vadd.f32 %v2248, %v2249
    %v2251 = vpack.c.bf16 %v2250, %v2250
    %v2253 = vsel %vm154, %v2251, 0
    %2255 = vmatprep.subr.bf16.mxu0 0
    %2256 = vmatpush1.bf16.msra.mxu0 0
    %2257 = vmatprep.subr.bf16.mxu0 0
    %2258 = vmatpush1.bf16.msra.mxu0 0
    %2259 = vmatprep.subr.bf16.mxu0 0
    %2260 = vmatpush1.bf16.msra.mxu0 0
    %2261 = vmatprep.subr.bf16.mxu0 0
    %2262 = vmatpush1.bf16.msra.mxu0 0
    %2263 = vmatprep.subr.bf16.mxu0 0
    %2264 = vmatpush1.bf16.msra.mxu0 0
    %2265 = vmatprep.subr.bf16.mxu0 0
    %2266 = vmatpush1.bf16.msra.mxu0 0
    %2267 = vmatprep.subr.bf16.mxu0 0
    %2268 = vmatpush1.bf16.msra.mxu0 %v523
    %2269 = vmatprep.subr.bf16.mxu0 0
    %2270 = vmatpush1.bf16.msra.mxu0 %v522
    %2271 = vmatprep.subr.bf16.mxu0 0
    %2272 = vmatpush2.bf16.msra.mxu0 0
    %2273 = vmatprep.subr.bf16.mxu0 0
    %2274 = vmatpush2.bf16.msra.mxu0 0
    %2275 = vmatprep.subr.bf16.mxu0 0
    %2276 = vmatpush2.bf16.msra.mxu0 0
    %2277 = vmatprep.subr.bf16.mxu0 0
    %2278 = vmatpush2.bf16.msra.mxu0 0
    %2279 = vmatprep.subr.bf16.mxu0 0
    %2280 = vmatpush2.bf16.msra.mxu0 0
    %2281 = vmatprep.subr.bf16.mxu0 0
    %2282 = vmatpush2.bf16.msra.mxu0 0
    %2283 = vmatprep.subr.bf16.mxu0 0
    %2284 = vmatpush2.bf16.msra.mxu0 0
    %2285 = vmatprep.subr.bf16.mxu0 0
    %2286 = vmatpush2.bf16.msra.mxu0 0
    %2287 = vmatprep.mubr.bf16.mxu0 0
    %2288 = vmatmul.mubr.bf16.gmra.mxu0 %v2253
    %v2289 = vpop.f32.mrf.mxu0
    %v2290 = vadd.f32 %v512, %v2289
    %v2291 = vpop.f32.mrf.mxu0
    %v2292 = vpop.f32.mrf.mxu0
    %v2293 = vpop.f32.mrf.mxu0
    %2294 = vdwg.mxu0
    %2295 = vmatprep.subr.bf16.mxu0 0
    %2296 = vmatpush1.bf16.msra.mxu0 0
    %2297 = vmatprep.subr.bf16.mxu0 0
    %2298 = vmatpush1.bf16.msra.mxu0 0
    %2299 = vmatprep.subr.bf16.mxu0 0
    %2300 = vmatpush1.bf16.msra.mxu0 0
    %2301 = vmatprep.subr.bf16.mxu0 0
    %2302 = vmatpush1.bf16.msra.mxu0 0
    %2303 = vmatprep.subr.bf16.mxu0 0
    %2304 = vmatpush1.bf16.msra.mxu0 0
    %2305 = vmatprep.subr.bf16.mxu0 0
    %2306 = vmatpush1.bf16.msra.mxu0 0
    %2307 = vmatprep.subr.bf16.mxu0 0
    %2308 = vmatpush1.bf16.msra.mxu0 %v584
    %2309 = vmatprep.subr.bf16.mxu0 0
    %2310 = vmatpush1.bf16.msra.mxu0 %v583
    %2311 = vmatprep.subr.bf16.mxu0 0
    %2312 = vmatpush2.bf16.msra.mxu0 0
    %2313 = vmatprep.subr.bf16.mxu0 0
    %2314 = vmatpush2.bf16.msra.mxu0 0
    %2315 = vmatprep.subr.bf16.mxu0 0
    %2316 = vmatpush2.bf16.msra.mxu0 0
    %2317 = vmatprep.subr.bf16.mxu0 0
    %2318 = vmatpush2.bf16.msra.mxu0 0
    %2319 = vmatprep.subr.bf16.mxu0 0
    %2320 = vmatpush2.bf16.msra.mxu0 0
    %2321 = vmatprep.subr.bf16.mxu0 0
    %2322 = vmatpush2.bf16.msra.mxu0 0
    %2323 = vmatprep.subr.bf16.mxu0 0
    %2324 = vmatpush2.bf16.msra.mxu0 0
    %2325 = vmatprep.subr.bf16.mxu0 0
    %2326 = vmatpush2.bf16.msra.mxu0 0
    %2327 = vmatprep.mubr.bf16.mxu0 0
    %2328 = vmatmul.mubr.bf16.gmra.mxu0 %v2253
    %v2329 = vpop.f32.mrf.mxu0
    %v2330 = vadd.f32 %v573, %v2329
    %v2331 = vpop.f32.mrf.mxu0
    %v2332 = vpop.f32.mrf.mxu0
    %v2333 = vpop.f32.mrf.mxu0
    %2334 = vdwg.mxu0
    %2335 = vmatprep.subr.bf16.mxu0 0
    %2336 = vmatpush1.bf16.msra.mxu0 0
    %2337 = vmatprep.subr.bf16.mxu0 0
    %2338 = vmatpush1.bf16.msra.mxu0 0
    %2339 = vmatprep.subr.bf16.mxu0 0
    %2340 = vmatpush1.bf16.msra.mxu0 0
    %2341 = vmatprep.subr.bf16.mxu0 0
    %2342 = vmatpush1.bf16.msra.mxu0 0
    %2343 = vmatprep.subr.bf16.mxu0 0
    %2344 = vmatpush1.bf16.msra.mxu0 0
    %2345 = vmatprep.subr.bf16.mxu0 0
    %2346 = vmatpush1.bf16.msra.mxu0 0
    %2347 = vmatprep.subr.bf16.mxu0 0
    %2348 = vmatpush1.bf16.msra.mxu0 %v642
    %2349 = vmatprep.subr.bf16.mxu0 0
    %2350 = vmatpush1.bf16.msra.mxu0 %v641
    %2351 = vmatprep.subr.bf16.mxu0 0
    %2352 = vmatpush2.bf16.msra.mxu0 0
    %2353 = vmatprep.subr.bf16.mxu0 0
    %2354 = vmatpush2.bf16.msra.mxu0 0
    %2355 = vmatprep.subr.bf16.mxu0 0
    %2356 = vmatpush2.bf16.msra.mxu0 0
    %2357 = vmatprep.subr.bf16.mxu0 0
    %2358 = vmatpush2.bf16.msra.mxu0 0
    %2359 = vmatprep.subr.bf16.mxu0 0
    %2360 = vmatpush2.bf16.msra.mxu0 0
    %2361 = vmatprep.subr.bf16.mxu0 0
    %2362 = vmatpush2.bf16.msra.mxu0 0
    %2363 = vmatprep.subr.bf16.mxu0 0
    %2364 = vmatpush2.bf16.msra.mxu0 0
    %2365 = vmatprep.subr.bf16.mxu0 0
    %2366 = vmatpush2.bf16.msra.mxu0 0
    %2367 = vmatprep.mubr.bf16.mxu0 0
    %2368 = vmatmul.mubr.bf16.gmra.mxu0 %v2253
    %v2369 = vpop.f32.mrf.mxu0
    %v2370 = vadd.f32 %v631, %v2369
    %v2371 = vpop.f32.mrf.mxu0
    %v2372 = vpop.f32.mrf.mxu0
    %v2373 = vpop.f32.mrf.mxu0
    %2374 = vdwg.mxu0
    %v2375 = vpack.c.bf16 %v2106, %v2106
    %v2377 = vsel %vm154, %v2375, 0
    %2379 = vmatprep.subr.bf16.mxu0 0
    %2380 = vmatpush1.bf16.msra.mxu0 0
    %2381 = vmatprep.subr.bf16.mxu0 0
    %2382 = vmatpush1.bf16.msra.mxu0 0
    %2383 = vmatprep.subr.bf16.mxu0 0
    %2384 = vmatpush1.bf16.msra.mxu0 0
    %2385 = vmatprep.subr.bf16.mxu0 0
    %2386 = vmatpush1.bf16.msra.mxu0 0
    %2387 = vmatprep.subr.bf16.mxu0 0
    %2388 = vmatpush1.bf16.msra.mxu0 0
    %2389 = vmatprep.subr.bf16.mxu0 0
    %2390 = vmatpush1.bf16.msra.mxu0 0
    %2391 = vmatprep.subr.bf16.mxu0 0
    %2392 = vmatpush1.bf16.msra.mxu0 %v694
    %2393 = vmatprep.subr.bf16.mxu0 0
    %2394 = vmatpush1.bf16.msra.mxu0 %v693
    %2395 = vmatprep.subr.bf16.mxu0 0
    %2396 = vmatpush2.bf16.msra.mxu0 0
    %2397 = vmatprep.subr.bf16.mxu0 0
    %2398 = vmatpush2.bf16.msra.mxu0 0
    %2399 = vmatprep.subr.bf16.mxu0 0
    %2400 = vmatpush2.bf16.msra.mxu0 0
    %2401 = vmatprep.subr.bf16.mxu0 0
    %2402 = vmatpush2.bf16.msra.mxu0 0
    %2403 = vmatprep.subr.bf16.mxu0 0
    %2404 = vmatpush2.bf16.msra.mxu0 0
    %2405 = vmatprep.subr.bf16.mxu0 0
    %2406 = vmatpush2.bf16.msra.mxu0 0
    %2407 = vmatprep.subr.bf16.mxu0 0
    %2408 = vmatpush2.bf16.msra.mxu0 0
    %2409 = vmatprep.subr.bf16.mxu0 0
    %2410 = vmatpush2.bf16.msra.mxu0 0
    %2411 = vmatprep.mubr.bf16.mxu0 0
    %2412 = vmatmul.mubr.bf16.gmra.mxu0 %v2377
    %v2413 = vpop.f32.mrf.mxu0
    %v2414 = vadd.f32 0.0, %v2413
    %v2415 = vpop.f32.mrf.mxu0
    %v2416 = vpop.f32.mrf.mxu0
    %v2417 = vpop.f32.mrf.mxu0
    %2418 = vdwg.mxu0
    %2419 = vmatprep.subr.bf16.mxu0 0
    %2420 = vmatpush1.bf16.msra.mxu0 0
    %2421 = vmatprep.subr.bf16.mxu0 0
    %2422 = vmatpush1.bf16.msra.mxu0 0
    %2423 = vmatprep.subr.bf16.mxu0 0
    %2424 = vmatpush1.bf16.msra.mxu0 0
    %2425 = vmatprep.subr.bf16.mxu0 0
    %2426 = vmatpush1.bf16.msra.mxu0 0
    %2427 = vmatprep.subr.bf16.mxu0 0
    %2428 = vmatpush1.bf16.msra.mxu0 0
    %2429 = vmatprep.subr.bf16.mxu0 0
    %2430 = vmatpush1.bf16.msra.mxu0 0
    %2431 = vmatprep.subr.bf16.mxu0 0
    %2432 = vmatpush1.bf16.msra.mxu0 %v746
    %2433 = vmatprep.subr.bf16.mxu0 0
    %2434 = vmatpush1.bf16.msra.mxu0 %v745
    %2435 = vmatprep.subr.bf16.mxu0 0
    %2436 = vmatpush2.bf16.msra.mxu0 0
    %2437 = vmatprep.subr.bf16.mxu0 0
    %2438 = vmatpush2.bf16.msra.mxu0 0
    %2439 = vmatprep.subr.bf16.mxu0 0
    %2440 = vmatpush2.bf16.msra.mxu0 0
    %2441 = vmatprep.subr.bf16.mxu0 0
    %2442 = vmatpush2.bf16.msra.mxu0 0
    %2443 = vmatprep.subr.bf16.mxu0 0
    %2444 = vmatpush2.bf16.msra.mxu0 0
    %2445 = vmatprep.subr.bf16.mxu0 0
    %2446 = vmatpush2.bf16.msra.mxu0 0
    %2447 = vmatprep.subr.bf16.mxu0 0
    %2448 = vmatpush2.bf16.msra.mxu0 0
    %2449 = vmatprep.subr.bf16.mxu0 0
    %2450 = vmatpush2.bf16.msra.mxu0 0
    %2451 = vmatprep.mubr.bf16.mxu0 0
    %2452 = vmatmul.mubr.bf16.gmra.mxu0 %v2377
    %v2453 = vpop.f32.mrf.mxu0
    %v2454 = vadd.f32 0.0, %v2453
    %v2455 = vpop.f32.mrf.mxu0
    %v2456 = vpop.f32.mrf.mxu0
    %v2457 = vpop.f32.mrf.mxu0
    %2458 = vdwg.mxu0
    %2459 = vmatprep.subr.bf16.mxu0 0
    %2460 = vmatpush1.bf16.msra.mxu0 0
    %2461 = vmatprep.subr.bf16.mxu0 0
    %2462 = vmatpush1.bf16.msra.mxu0 0
    %2463 = vmatprep.subr.bf16.mxu0 0
    %2464 = vmatpush1.bf16.msra.mxu0 0
    %2465 = vmatprep.subr.bf16.mxu0 0
    %2466 = vmatpush1.bf16.msra.mxu0 0
    %2467 = vmatprep.subr.bf16.mxu0 0
    %2468 = vmatpush1.bf16.msra.mxu0 0
    %2469 = vmatprep.subr.bf16.mxu0 0
    %2470 = vmatpush1.bf16.msra.mxu0 0
    %2471 = vmatprep.subr.bf16.mxu0 0
    %2472 = vmatpush1.bf16.msra.mxu0 %v804
    %2473 = vmatprep.subr.bf16.mxu0 0
    %2474 = vmatpush1.bf16.msra.mxu0 %v803
    %2475 = vmatprep.subr.bf16.mxu0 0
    %2476 = vmatpush2.bf16.msra.mxu0 0
    %2477 = vmatprep.subr.bf16.mxu0 0
    %2478 = vmatpush2.bf16.msra.mxu0 0
    %2479 = vmatprep.subr.bf16.mxu0 0
    %2480 = vmatpush2.bf16.msra.mxu0 0
    %2481 = vmatprep.subr.bf16.mxu0 0
    %2482 = vmatpush2.bf16.msra.mxu0 0
    %2483 = vmatprep.subr.bf16.mxu0 0
    %2484 = vmatpush2.bf16.msra.mxu0 0
    %2485 = vmatprep.subr.bf16.mxu0 0
    %2486 = vmatpush2.bf16.msra.mxu0 0
    %2487 = vmatprep.subr.bf16.mxu0 0
    %2488 = vmatpush2.bf16.msra.mxu0 0
    %2489 = vmatprep.subr.bf16.mxu0 0
    %2490 = vmatpush2.bf16.msra.mxu0 0
    %2491 = vmatprep.mubr.bf16.mxu0 0
    %2492 = vmatmul.mubr.bf16.gmra.mxu0 %v2377
    %v2493 = vpop.f32.mrf.mxu0
    %v2494 = vadd.f32 %v793, %v2493
    %v2495 = vpop.f32.mrf.mxu0
    %v2496 = vpop.f32.mrf.mxu0
    %v2497 = vpop.f32.mrf.mxu0
    %2498 = vdwg.mxu0
    %v2499 = vadd.f32 %v2290, %v2414
    %v2500 = vxor.u32 %v2499, 2147483648
    %v2501 = vmul.f32 %v2500, 1.442695
    %v2502 = vpow.pop %v2501
    %v2503 = vadd.f32 %v2502, 1.0
    %v2504 = vrcp.pop %v2503
    %v2505 = vmul.f32 1.0, %v2504
    %v2506 = vadd.f32 %v2330, %v2454
    %v2507 = vxor.u32 %v2506, 2147483648
    %v2508 = vmul.f32 %v2507, 1.442695
    %v2509 = vpow.pop %v2508
    %v2510 = vadd.f32 %v2509, 1.0
    %v2511 = vrcp.pop %v2510
    %v2512 = vmul.f32 1.0, %v2511
    %v2513 = vmul.f32 %v2505, %v2494
    %v2514 = vadd.f32 %v2370, %v2513
    %v2515 = vtanh.pop %v2514
    %v2516 = vsub.f32 1.0, %v2512
    %v2517 = vmul.f32 %v2516, %v2515
    %v2518 = vmul.f32 %v2512, %v2106
    %v2519 = vadd.f32 %v2517, %v2518
    %v2520 = vld [vmem:[#allocation2 + $0xa] sm:$0x3]
    %v2521 = vld [vmem:[#allocation3 + $0xa] sm:$0x3]
    %v2522 = vld [vmem:[#allocation4 + $0xa] sm:$0x3]
    %2523 = vmatprep.subr.bf16.mxu0 0
    %2524 = vmatpush1.bf16.msra.mxu0 0
    %2525 = vmatprep.subr.bf16.mxu0 0
    %2526 = vmatpush1.bf16.msra.mxu0 0
    %2527 = vmatprep.subr.bf16.mxu0 0
    %2528 = vmatpush1.bf16.msra.mxu0 0
    %2529 = vmatprep.subr.bf16.mxu0 0
    %2530 = vmatpush1.bf16.msra.mxu0 0
    %2531 = vmatprep.subr.bf16.mxu0 0
    %2532 = vmatpush1.bf16.msra.mxu0 0
    %2533 = vmatprep.subr.bf16.mxu0 0
    %2534 = vmatpush1.bf16.msra.mxu0 0
    %2535 = vmatprep.subr.bf16.mxu0 0
    %2536 = vmatpush1.bf16.msra.mxu0 %v330
    %2537 = vmatprep.subr.bf16.mxu0 0
    %2538 = vmatpush1.bf16.msra.mxu0 %v329
    %2539 = vmatprep.subr.bf16.mxu0 0
    %2540 = vmatpush2.bf16.msra.mxu0 0
    %2541 = vmatprep.subr.bf16.mxu0 0
    %2542 = vmatpush2.bf16.msra.mxu0 0
    %2543 = vmatprep.subr.bf16.mxu0 0
    %2544 = vmatpush2.bf16.msra.mxu0 0
    %2545 = vmatprep.subr.bf16.mxu0 0
    %2546 = vmatpush2.bf16.msra.mxu0 0
    %2547 = vmatprep.subr.bf16.mxu0 0
    %2548 = vmatpush2.bf16.msra.mxu0 0
    %2549 = vmatprep.subr.bf16.mxu0 0
    %2550 = vmatpush2.bf16.msra.mxu0 0
    %2551 = vmatprep.subr.bf16.mxu0 0
    %2552 = vmatpush2.bf16.msra.mxu0 0
    %2553 = vmatprep.subr.bf16.mxu0 0
    %2554 = vmatpush2.bf16.msra.mxu0 0
    %2555 = vmatprep.mubr.bf16.mxu0 0
    %2556 = vmatmul.mubr.bf16.gmra.mxu0 %v2253
    %v2557 = vpop.f32.mrf.mxu0
    %v2558 = vadd.f32 0.0, %v2557
    %v2559 = vpop.f32.mrf.mxu0
    %v2560 = vpop.f32.mrf.mxu0
    %v2561 = vpop.f32.mrf.mxu0
    %2562 = vdwg.mxu0
    %2563 = vmatprep.subr.bf16.mxu0 0
    %2564 = vmatpush1.bf16.msra.mxu0 0
    %2565 = vmatprep.subr.bf16.mxu0 0
    %2566 = vmatpush1.bf16.msra.mxu0 0
    %2567 = vmatprep.subr.bf16.mxu0 0
    %2568 = vmatpush1.bf16.msra.mxu0 0
    %2569 = vmatprep.subr.bf16.mxu0 0
    %2570 = vmatpush1.bf16.msra.mxu0 0
    %2571 = vmatprep.subr.bf16.mxu0 0
    %2572 = vmatpush1.bf16.msra.mxu0 0
    %2573 = vmatprep.subr.bf16.mxu0 0
    %2574 = vmatpush1.bf16.msra.mxu0 0
    %2575 = vmatprep.subr.bf16.mxu0 0
    %2576 = vmatpush1.bf16.msra.mxu0 %v385
    %2577 = vmatprep.subr.bf16.mxu0 0
    %2578 = vmatpush1.bf16.msra.mxu0 %v384
    %2579 = vmatprep.subr.bf16.mxu0 0
    %2580 = vmatpush2.bf16.msra.mxu0 0
    %2581 = vmatprep.subr.bf16.mxu0 0
    %2582 = vmatpush2.bf16.msra.mxu0 0
    %2583 = vmatprep.subr.bf16.mxu0 0
    %2584 = vmatpush2.bf16.msra.mxu0 0
    %2585 = vmatprep.subr.bf16.mxu0 0
    %2586 = vmatpush2.bf16.msra.mxu0 0
    %2587 = vmatprep.subr.bf16.mxu0 0
    %2588 = vmatpush2.bf16.msra.mxu0 0
    %2589 = vmatprep.subr.bf16.mxu0 0
    %2590 = vmatpush2.bf16.msra.mxu0 0
    %2591 = vmatprep.subr.bf16.mxu0 0
    %2592 = vmatpush2.bf16.msra.mxu0 0
    %2593 = vmatprep.subr.bf16.mxu0 0
    %2594 = vmatpush2.bf16.msra.mxu0 0
    %2595 = vmatprep.mubr.bf16.mxu0 0
    %2596 = vmatmul.mubr.bf16.gmra.mxu0 %v2253
    %v2597 = vpop.f32.mrf.mxu0
    %v2598 = vadd.f32 0.0, %v2597
    %v2599 = vpop.f32.mrf.mxu0
    %v2600 = vpop.f32.mrf.mxu0
    %v2601 = vpop.f32.mrf.mxu0
    %2602 = vdwg.mxu0
    %2603 = vmatprep.subr.bf16.mxu0 0
    %2604 = vmatpush1.bf16.msra.mxu0 0
    %2605 = vmatprep.subr.bf16.mxu0 0
    %2606 = vmatpush1.bf16.msra.mxu0 0
    %2607 = vmatprep.subr.bf16.mxu0 0
    %2608 = vmatpush1.bf16.msra.mxu0 0
    %2609 = vmatprep.subr.bf16.mxu0 0
    %2610 = vmatpush1.bf16.msra.mxu0 0
    %2611 = vmatprep.subr.bf16.mxu0 0
    %2612 = vmatpush1.bf16.msra.mxu0 0
    %2613 = vmatprep.subr.bf16.mxu0 0
    %2614 = vmatpush1.bf16.msra.mxu0 0
    %2615 = vmatprep.subr.bf16.mxu0 0
    %2616 = vmatpush1.bf16.msra.mxu0 %v443
    %2617 = vmatprep.subr.bf16.mxu0 0
    %2618 = vmatpush1.bf16.msra.mxu0 %v442
    %2619 = vmatprep.subr.bf16.mxu0 0
    %2620 = vmatpush2.bf16.msra.mxu0 0
    %2621 = vmatprep.subr.bf16.mxu0 0
    %2622 = vmatpush2.bf16.msra.mxu0 0
    %2623 = vmatprep.subr.bf16.mxu0 0
    %2624 = vmatpush2.bf16.msra.mxu0 0
    %2625 = vmatprep.subr.bf16.mxu0 0
    %2626 = vmatpush2.bf16.msra.mxu0 0
    %2627 = vmatprep.subr.bf16.mxu0 0
    %2628 = vmatpush2.bf16.msra.mxu0 0
    %2629 = vmatprep.subr.bf16.mxu0 0
    %2630 = vmatpush2.bf16.msra.mxu0 0
    %2631 = vmatprep.subr.bf16.mxu0 0
    %2632 = vmatpush2.bf16.msra.mxu0 0
    %2633 = vmatprep.subr.bf16.mxu0 0
    %2634 = vmatpush2.bf16.msra.mxu0 0
    %2635 = vmatprep.mubr.bf16.mxu0 0
    %2636 = vmatmul.mubr.bf16.gmra.mxu0 %v2253
    %v2637 = vpop.f32.mrf.mxu0
    %v2638 = vadd.f32 %v432, %v2637
    %v2639 = vpop.f32.mrf.mxu0
    %v2640 = vpop.f32.mrf.mxu0
    %v2641 = vpop.f32.mrf.mxu0
    %2642 = vdwg.mxu0
    %v2643 = vadd.f32 %v2520, %v2558
    %v2644 = vxor.u32 %v2643, 2147483648
    %v2645 = vmul.f32 %v2644, 1.442695
    %v2646 = vpow.pop %v2645
    %v2647 = vadd.f32 %v2646, 1.0
    %v2648 = vrcp.pop %v2647
    %v2649 = vmul.f32 1.0, %v2648
    %v2650 = vadd.f32 %v2521, %v2598
    %v2651 = vxor.u32 %v2650, 2147483648
    %v2652 = vmul.f32 %v2651, 1.442695
    %v2653 = vpow.pop %v2652
    %v2654 = vadd.f32 %v2653, 1.0
    %v2655 = vrcp.pop %v2654
    %v2656 = vmul.f32 1.0, %v2655
    %v2657 = vmul.f32 %v2649, %v2638
    %v2658 = vadd.f32 %v2522, %v2657
    %v2659 = vtanh.pop %v2658
    %v2660 = vsub.f32 1.0, %v2656
    %v2661 = vmul.f32 %v2660, %v2659
    %v2662 = vmul.f32 %v2656, %v2250
    %v2663 = vadd.f32 %v2661, %v2662
    %v2664 = vpack.c.bf16 %v2663, %v2663
    %v2666 = vsel %vm154, %v2664, 0
    %2668 = vmatprep.subr.bf16.mxu0 0
    %2669 = vmatpush1.bf16.msra.mxu0 0
    %2670 = vmatprep.subr.bf16.mxu0 0
    %2671 = vmatpush1.bf16.msra.mxu0 0
    %2672 = vmatprep.subr.bf16.mxu0 0
    %2673 = vmatpush1.bf16.msra.mxu0 0
    %2674 = vmatprep.subr.bf16.mxu0 0
    %2675 = vmatpush1.bf16.msra.mxu0 0
    %2676 = vmatprep.subr.bf16.mxu0 0
    %2677 = vmatpush1.bf16.msra.mxu0 0
    %2678 = vmatprep.subr.bf16.mxu0 0
    %2679 = vmatpush1.bf16.msra.mxu0 0
    %2680 = vmatprep.subr.bf16.mxu0 0
    %2681 = vmatpush1.bf16.msra.mxu0 %v523
    %2682 = vmatprep.subr.bf16.mxu0 0
    %2683 = vmatpush1.bf16.msra.mxu0 %v522
    %2684 = vmatprep.subr.bf16.mxu0 0
    %2685 = vmatpush2.bf16.msra.mxu0 0
    %2686 = vmatprep.subr.bf16.mxu0 0
    %2687 = vmatpush2.bf16.msra.mxu0 0
    %2688 = vmatprep.subr.bf16.mxu0 0
    %2689 = vmatpush2.bf16.msra.mxu0 0
    %2690 = vmatprep.subr.bf16.mxu0 0
    %2691 = vmatpush2.bf16.msra.mxu0 0
    %2692 = vmatprep.subr.bf16.mxu0 0
    %2693 = vmatpush2.bf16.msra.mxu0 0
    %2694 = vmatprep.subr.bf16.mxu0 0
    %2695 = vmatpush2.bf16.msra.mxu0 0
    %2696 = vmatprep.subr.bf16.mxu0 0
    %2697 = vmatpush2.bf16.msra.mxu0 0
    %2698 = vmatprep.subr.bf16.mxu0 0
    %2699 = vmatpush2.bf16.msra.mxu0 0
    %2700 = vmatprep.mubr.bf16.mxu0 0
    %2701 = vmatmul.mubr.bf16.gmra.mxu0 %v2666
    %v2702 = vpop.f32.mrf.mxu0
    %v2703 = vadd.f32 %v512, %v2702
    %v2704 = vpop.f32.mrf.mxu0
    %v2705 = vpop.f32.mrf.mxu0
    %v2706 = vpop.f32.mrf.mxu0
    %2707 = vdwg.mxu0
    %2708 = vmatprep.subr.bf16.mxu0 0
    %2709 = vmatpush1.bf16.msra.mxu0 0
    %2710 = vmatprep.subr.bf16.mxu0 0
    %2711 = vmatpush1.bf16.msra.mxu0 0
    %2712 = vmatprep.subr.bf16.mxu0 0
    %2713 = vmatpush1.bf16.msra.mxu0 0
    %2714 = vmatprep.subr.bf16.mxu0 0
    %2715 = vmatpush1.bf16.msra.mxu0 0
    %2716 = vmatprep.subr.bf16.mxu0 0
    %2717 = vmatpush1.bf16.msra.mxu0 0
    %2718 = vmatprep.subr.bf16.mxu0 0
    %2719 = vmatpush1.bf16.msra.mxu0 0
    %2720 = vmatprep.subr.bf16.mxu0 0
    %2721 = vmatpush1.bf16.msra.mxu0 %v584
    %2722 = vmatprep.subr.bf16.mxu0 0
    %2723 = vmatpush1.bf16.msra.mxu0 %v583
    %2724 = vmatprep.subr.bf16.mxu0 0
    %2725 = vmatpush2.bf16.msra.mxu0 0
    %2726 = vmatprep.subr.bf16.mxu0 0
    %2727 = vmatpush2.bf16.msra.mxu0 0
    %2728 = vmatprep.subr.bf16.mxu0 0
    %2729 = vmatpush2.bf16.msra.mxu0 0
    %2730 = vmatprep.subr.bf16.mxu0 0
    %2731 = vmatpush2.bf16.msra.mxu0 0
    %2732 = vmatprep.subr.bf16.mxu0 0
    %2733 = vmatpush2.bf16.msra.mxu0 0
    %2734 = vmatprep.subr.bf16.mxu0 0
    %2735 = vmatpush2.bf16.msra.mxu0 0
    %2736 = vmatprep.subr.bf16.mxu0 0
    %2737 = vmatpush2.bf16.msra.mxu0 0
    %2738 = vmatprep.subr.bf16.mxu0 0
    %2739 = vmatpush2.bf16.msra.mxu0 0
    %2740 = vmatprep.mubr.bf16.mxu0 0
    %2741 = vmatmul.mubr.bf16.gmra.mxu0 %v2666
    %v2742 = vpop.f32.mrf.mxu0
    %v2743 = vadd.f32 %v573, %v2742
    %v2744 = vpop.f32.mrf.mxu0
    %v2745 = vpop.f32.mrf.mxu0
    %v2746 = vpop.f32.mrf.mxu0
    %2747 = vdwg.mxu0
    %2748 = vmatprep.subr.bf16.mxu0 0
    %2749 = vmatpush1.bf16.msra.mxu0 0
    %2750 = vmatprep.subr.bf16.mxu0 0
    %2751 = vmatpush1.bf16.msra.mxu0 0
    %2752 = vmatprep.subr.bf16.mxu0 0
    %2753 = vmatpush1.bf16.msra.mxu0 0
    %2754 = vmatprep.subr.bf16.mxu0 0
    %2755 = vmatpush1.bf16.msra.mxu0 0
    %2756 = vmatprep.subr.bf16.mxu0 0
    %2757 = vmatpush1.bf16.msra.mxu0 0
    %2758 = vmatprep.subr.bf16.mxu0 0
    %2759 = vmatpush1.bf16.msra.mxu0 0
    %2760 = vmatprep.subr.bf16.mxu0 0
    %2761 = vmatpush1.bf16.msra.mxu0 %v642
    %2762 = vmatprep.subr.bf16.mxu0 0
    %2763 = vmatpush1.bf16.msra.mxu0 %v641
    %2764 = vmatprep.subr.bf16.mxu0 0
    %2765 = vmatpush2.bf16.msra.mxu0 0
    %2766 = vmatprep.subr.bf16.mxu0 0
    %2767 = vmatpush2.bf16.msra.mxu0 0
    %2768 = vmatprep.subr.bf16.mxu0 0
    %2769 = vmatpush2.bf16.msra.mxu0 0
    %2770 = vmatprep.subr.bf16.mxu0 0
    %2771 = vmatpush2.bf16.msra.mxu0 0
    %2772 = vmatprep.subr.bf16.mxu0 0
    %2773 = vmatpush2.bf16.msra.mxu0 0
    %2774 = vmatprep.subr.bf16.mxu0 0
    %2775 = vmatpush2.bf16.msra.mxu0 0
    %2776 = vmatprep.subr.bf16.mxu0 0
    %2777 = vmatpush2.bf16.msra.mxu0 0
    %2778 = vmatprep.subr.bf16.mxu0 0
    %2779 = vmatpush2.bf16.msra.mxu0 0
    %2780 = vmatprep.mubr.bf16.mxu0 0
    %2781 = vmatmul.mubr.bf16.gmra.mxu0 %v2666
    %v2782 = vpop.f32.mrf.mxu0
    %v2783 = vadd.f32 %v631, %v2782
    %v2784 = vpop.f32.mrf.mxu0
    %v2785 = vpop.f32.mrf.mxu0
    %v2786 = vpop.f32.mrf.mxu0
    %2787 = vdwg.mxu0
    %v2788 = vpack.c.bf16 %v2519, %v2519
    %v2790 = vsel %vm154, %v2788, 0
    %2792 = vmatprep.subr.bf16.mxu0 0
    %2793 = vmatpush1.bf16.msra.mxu0 0
    %2794 = vmatprep.subr.bf16.mxu0 0
    %2795 = vmatpush1.bf16.msra.mxu0 0
    %2796 = vmatprep.subr.bf16.mxu0 0
    %2797 = vmatpush1.bf16.msra.mxu0 0
    %2798 = vmatprep.subr.bf16.mxu0 0
    %2799 = vmatpush1.bf16.msra.mxu0 0
    %2800 = vmatprep.subr.bf16.mxu0 0
    %2801 = vmatpush1.bf16.msra.mxu0 0
    %2802 = vmatprep.subr.bf16.mxu0 0
    %2803 = vmatpush1.bf16.msra.mxu0 0
    %2804 = vmatprep.subr.bf16.mxu0 0
    %2805 = vmatpush1.bf16.msra.mxu0 %v694
    %2806 = vmatprep.subr.bf16.mxu0 0
    %2807 = vmatpush1.bf16.msra.mxu0 %v693
    %2808 = vmatprep.subr.bf16.mxu0 0
    %2809 = vmatpush2.bf16.msra.mxu0 0
    %2810 = vmatprep.subr.bf16.mxu0 0
    %2811 = vmatpush2.bf16.msra.mxu0 0
    %2812 = vmatprep.subr.bf16.mxu0 0
    %2813 = vmatpush2.bf16.msra.mxu0 0
    %2814 = vmatprep.subr.bf16.mxu0 0
    %2815 = vmatpush2.bf16.msra.mxu0 0
    %2816 = vmatprep.subr.bf16.mxu0 0
    %2817 = vmatpush2.bf16.msra.mxu0 0
    %2818 = vmatprep.subr.bf16.mxu0 0
    %2819 = vmatpush2.bf16.msra.mxu0 0
    %2820 = vmatprep.subr.bf16.mxu0 0
    %2821 = vmatpush2.bf16.msra.mxu0 0
    %2822 = vmatprep.subr.bf16.mxu0 0
    %2823 = vmatpush2.bf16.msra.mxu0 0
    %2824 = vmatprep.mubr.bf16.mxu0 0
    %2825 = vmatmul.mubr.bf16.gmra.mxu0 %v2790
    %v2826 = vpop.f32.mrf.mxu0
    %v2827 = vadd.f32 0.0, %v2826
    %v2828 = vpop.f32.mrf.mxu0
    %v2829 = vpop.f32.mrf.mxu0
    %v2830 = vpop.f32.mrf.mxu0
    %2831 = vdwg.mxu0
    %2832 = vmatprep.subr.bf16.mxu0 0
    %2833 = vmatpush1.bf16.msra.mxu0 0
    %2834 = vmatprep.subr.bf16.mxu0 0
    %2835 = vmatpush1.bf16.msra.mxu0 0
    %2836 = vmatprep.subr.bf16.mxu0 0
    %2837 = vmatpush1.bf16.msra.mxu0 0
    %2838 = vmatprep.subr.bf16.mxu0 0
    %2839 = vmatpush1.bf16.msra.mxu0 0
    %2840 = vmatprep.subr.bf16.mxu0 0
    %2841 = vmatpush1.bf16.msra.mxu0 0
    %2842 = vmatprep.subr.bf16.mxu0 0
    %2843 = vmatpush1.bf16.msra.mxu0 0
    %2844 = vmatprep.subr.bf16.mxu0 0
    %2845 = vmatpush1.bf16.msra.mxu0 %v746
    %2846 = vmatprep.subr.bf16.mxu0 0
    %2847 = vmatpush1.bf16.msra.mxu0 %v745
    %2848 = vmatprep.subr.bf16.mxu0 0
    %2849 = vmatpush2.bf16.msra.mxu0 0
    %2850 = vmatprep.subr.bf16.mxu0 0
    %2851 = vmatpush2.bf16.msra.mxu0 0
    %2852 = vmatprep.subr.bf16.mxu0 0
    %2853 = vmatpush2.bf16.msra.mxu0 0
    %2854 = vmatprep.subr.bf16.mxu0 0
    %2855 = vmatpush2.bf16.msra.mxu0 0
    %2856 = vmatprep.subr.bf16.mxu0 0
    %2857 = vmatpush2.bf16.msra.mxu0 0
    %2858 = vmatprep.subr.bf16.mxu0 0
    %2859 = vmatpush2.bf16.msra.mxu0 0
    %2860 = vmatprep.subr.bf16.mxu0 0
    %2861 = vmatpush2.bf16.msra.mxu0 0
    %2862 = vmatprep.subr.bf16.mxu0 0
    %2863 = vmatpush2.bf16.msra.mxu0 0
    %2864 = vmatprep.mubr.bf16.mxu0 0
    %2865 = vmatmul.mubr.bf16.gmra.mxu0 %v2790
    %v2866 = vpop.f32.mrf.mxu0
    %v2867 = vadd.f32 0.0, %v2866
    %v2868 = vpop.f32.mrf.mxu0
    %v2869 = vpop.f32.mrf.mxu0
    %v2870 = vpop.f32.mrf.mxu0
    %2871 = vdwg.mxu0
    %2872 = vmatprep.subr.bf16.mxu0 0
    %2873 = vmatpush1.bf16.msra.mxu0 0
    %2874 = vmatprep.subr.bf16.mxu0 0
    %2875 = vmatpush1.bf16.msra.mxu0 0
    %2876 = vmatprep.subr.bf16.mxu0 0
    %2877 = vmatpush1.bf16.msra.mxu0 0
    %2878 = vmatprep.subr.bf16.mxu0 0
    %2879 = vmatpush1.bf16.msra.mxu0 0
    %2880 = vmatprep.subr.bf16.mxu0 0
    %2881 = vmatpush1.bf16.msra.mxu0 0
    %2882 = vmatprep.subr.bf16.mxu0 0
    %2883 = vmatpush1.bf16.msra.mxu0 0
    %2884 = vmatprep.subr.bf16.mxu0 0
    %2885 = vmatpush1.bf16.msra.mxu0 %v804
    %2886 = vmatprep.subr.bf16.mxu0 0
    %2887 = vmatpush1.bf16.msra.mxu0 %v803
    %2888 = vmatprep.subr.bf16.mxu0 0
    %2889 = vmatpush2.bf16.msra.mxu0 0
    %2890 = vmatprep.subr.bf16.mxu0 0
    %2891 = vmatpush2.bf16.msra.mxu0 0
    %2892 = vmatprep.subr.bf16.mxu0 0
    %2893 = vmatpush2.bf16.msra.mxu0 0
    %2894 = vmatprep.subr.bf16.mxu0 0
    %2895 = vmatpush2.bf16.msra.mxu0 0
    %2896 = vmatprep.subr.bf16.mxu0 0
    %2897 = vmatpush2.bf16.msra.mxu0 0
    %2898 = vmatprep.subr.bf16.mxu0 0
    %2899 = vmatpush2.bf16.msra.mxu0 0
    %2900 = vmatprep.subr.bf16.mxu0 0
    %2901 = vmatpush2.bf16.msra.mxu0 0
    %2902 = vmatprep.subr.bf16.mxu0 0
    %2903 = vmatpush2.bf16.msra.mxu0 0
    %2904 = vmatprep.mubr.bf16.mxu0 0
    %2905 = vmatmul.mubr.bf16.gmra.mxu0 %v2790
    %v2906 = vpop.f32.mrf.mxu0
    %v2907 = vadd.f32 %v793, %v2906
    %v2908 = vpop.f32.mrf.mxu0
    %v2909 = vpop.f32.mrf.mxu0
    %v2910 = vpop.f32.mrf.mxu0
    %2911 = vdwg.mxu0
    %v2912 = vadd.f32 %v2703, %v2827
    %v2913 = vxor.u32 %v2912, 2147483648
    %v2914 = vmul.f32 %v2913, 1.442695
    %v2915 = vpow.pop %v2914
    %v2916 = vadd.f32 %v2915, 1.0
    %v2917 = vrcp.pop %v2916
    %v2918 = vmul.f32 1.0, %v2917
    %v2919 = vadd.f32 %v2743, %v2867
    %v2920 = vxor.u32 %v2919, 2147483648
    %v2921 = vmul.f32 %v2920, 1.442695
    %v2922 = vpow.pop %v2921
    %v2923 = vadd.f32 %v2922, 1.0
    %v2924 = vrcp.pop %v2923
    %v2925 = vmul.f32 1.0, %v2924
    %v2926 = vmul.f32 %v2918, %v2907
    %v2927 = vadd.f32 %v2783, %v2926
    %v2928 = vtanh.pop %v2927
    %v2929 = vsub.f32 1.0, %v2925
    %v2930 = vmul.f32 %v2929, %v2928
    %v2931 = vmul.f32 %v2925, %v2519
    %v2932 = vadd.f32 %v2930, %v2931
    %v2933 = vld [vmem:[#allocation2 + $0xc] sm:$0x3]
    %v2934 = vld [vmem:[#allocation3 + $0xc] sm:$0x3]
    %v2935 = vld [vmem:[#allocation4 + $0xc] sm:$0x3]
    %2936 = vmatprep.subr.bf16.mxu0 0
    %2937 = vmatpush1.bf16.msra.mxu0 0
    %2938 = vmatprep.subr.bf16.mxu0 0
    %2939 = vmatpush1.bf16.msra.mxu0 0
    %2940 = vmatprep.subr.bf16.mxu0 0
    %2941 = vmatpush1.bf16.msra.mxu0 0
    %2942 = vmatprep.subr.bf16.mxu0 0
    %2943 = vmatpush1.bf16.msra.mxu0 0
    %2944 = vmatprep.subr.bf16.mxu0 0
    %2945 = vmatpush1.bf16.msra.mxu0 0
    %2946 = vmatprep.subr.bf16.mxu0 0
    %2947 = vmatpush1.bf16.msra.mxu0 0
    %2948 = vmatprep.subr.bf16.mxu0 0
    %2949 = vmatpush1.bf16.msra.mxu0 %v330
    %2950 = vmatprep.subr.bf16.mxu0 0
    %2951 = vmatpush1.bf16.msra.mxu0 %v329
    %2952 = vmatprep.subr.bf16.mxu0 0
    %2953 = vmatpush2.bf16.msra.mxu0 0
    %2954 = vmatprep.subr.bf16.mxu0 0
    %2955 = vmatpush2.bf16.msra.mxu0 0
    %2956 = vmatprep.subr.bf16.mxu0 0
    %2957 = vmatpush2.bf16.msra.mxu0 0
    %2958 = vmatprep.subr.bf16.mxu0 0
    %2959 = vmatpush2.bf16.msra.mxu0 0
    %2960 = vmatprep.subr.bf16.mxu0 0
    %2961 = vmatpush2.bf16.msra.mxu0 0
    %2962 = vmatprep.subr.bf16.mxu0 0
    %2963 = vmatpush2.bf16.msra.mxu0 0
    %2964 = vmatprep.subr.bf16.mxu0 0
    %2965 = vmatpush2.bf16.msra.mxu0 0
    %2966 = vmatprep.subr.bf16.mxu0 0
    %2967 = vmatpush2.bf16.msra.mxu0 0
    %2968 = vmatprep.mubr.bf16.mxu0 0
    %2969 = vmatmul.mubr.bf16.gmra.mxu0 %v2666
    %v2970 = vpop.f32.mrf.mxu0
    %v2971 = vadd.f32 0.0, %v2970
    %v2972 = vpop.f32.mrf.mxu0
    %v2973 = vpop.f32.mrf.mxu0
    %v2974 = vpop.f32.mrf.mxu0
    %2975 = vdwg.mxu0
    %2976 = vmatprep.subr.bf16.mxu0 0
    %2977 = vmatpush1.bf16.msra.mxu0 0
    %2978 = vmatprep.subr.bf16.mxu0 0
    %2979 = vmatpush1.bf16.msra.mxu0 0
    %2980 = vmatprep.subr.bf16.mxu0 0
    %2981 = vmatpush1.bf16.msra.mxu0 0
    %2982 = vmatprep.subr.bf16.mxu0 0
    %2983 = vmatpush1.bf16.msra.mxu0 0
    %2984 = vmatprep.subr.bf16.mxu0 0
    %2985 = vmatpush1.bf16.msra.mxu0 0
    %2986 = vmatprep.subr.bf16.mxu0 0
    %2987 = vmatpush1.bf16.msra.mxu0 0
    %2988 = vmatprep.subr.bf16.mxu0 0
    %2989 = vmatpush1.bf16.msra.mxu0 %v385
    %2990 = vmatprep.subr.bf16.mxu0 0
    %2991 = vmatpush1.bf16.msra.mxu0 %v384
    %2992 = vmatprep.subr.bf16.mxu0 0
    %2993 = vmatpush2.bf16.msra.mxu0 0
    %2994 = vmatprep.subr.bf16.mxu0 0
    %2995 = vmatpush2.bf16.msra.mxu0 0
    %2996 = vmatprep.subr.bf16.mxu0 0
    %2997 = vmatpush2.bf16.msra.mxu0 0
    %2998 = vmatprep.subr.bf16.mxu0 0
    %2999 = vmatpush2.bf16.msra.mxu0 0
    %3000 = vmatprep.subr.bf16.mxu0 0
    %3001 = vmatpush2.bf16.msra.mxu0 0
    %3002 = vmatprep.subr.bf16.mxu0 0
    %3003 = vmatpush2.bf16.msra.mxu0 0
    %3004 = vmatprep.subr.bf16.mxu0 0
    %3005 = vmatpush2.bf16.msra.mxu0 0
    %3006 = vmatprep.subr.bf16.mxu0 0
    %3007 = vmatpush2.bf16.msra.mxu0 0
    %3008 = vmatprep.mubr.bf16.mxu0 0
    %3009 = vmatmul.mubr.bf16.gmra.mxu0 %v2666
    %v3010 = vpop.f32.mrf.mxu0
    %v3011 = vadd.f32 0.0, %v3010
    %v3012 = vpop.f32.mrf.mxu0
    %v3013 = vpop.f32.mrf.mxu0
    %v3014 = vpop.f32.mrf.mxu0
    %3015 = vdwg.mxu0
    %3016 = vmatprep.subr.bf16.mxu0 0
    %3017 = vmatpush1.bf16.msra.mxu0 0
    %3018 = vmatprep.subr.bf16.mxu0 0
    %3019 = vmatpush1.bf16.msra.mxu0 0
    %3020 = vmatprep.subr.bf16.mxu0 0
    %3021 = vmatpush1.bf16.msra.mxu0 0
    %3022 = vmatprep.subr.bf16.mxu0 0
    %3023 = vmatpush1.bf16.msra.mxu0 0
    %3024 = vmatprep.subr.bf16.mxu0 0
    %3025 = vmatpush1.bf16.msra.mxu0 0
    %3026 = vmatprep.subr.bf16.mxu0 0
    %3027 = vmatpush1.bf16.msra.mxu0 0
    %3028 = vmatprep.subr.bf16.mxu0 0
    %3029 = vmatpush1.bf16.msra.mxu0 %v443
    %3030 = vmatprep.subr.bf16.mxu0 0
    %3031 = vmatpush1.bf16.msra.mxu0 %v442
    %3032 = vmatprep.subr.bf16.mxu0 0
    %3033 = vmatpush2.bf16.msra.mxu0 0
    %3034 = vmatprep.subr.bf16.mxu0 0
    %3035 = vmatpush2.bf16.msra.mxu0 0
    %3036 = vmatprep.subr.bf16.mxu0 0
    %3037 = vmatpush2.bf16.msra.mxu0 0
    %3038 = vmatprep.subr.bf16.mxu0 0
    %3039 = vmatpush2.bf16.msra.mxu0 0
    %3040 = vmatprep.subr.bf16.mxu0 0
    %3041 = vmatpush2.bf16.msra.mxu0 0
    %3042 = vmatprep.subr.bf16.mxu0 0
    %3043 = vmatpush2.bf16.msra.mxu0 0
    %3044 = vmatprep.subr.bf16.mxu0 0
    %3045 = vmatpush2.bf16.msra.mxu0 0
    %3046 = vmatprep.subr.bf16.mxu0 0
    %3047 = vmatpush2.bf16.msra.mxu0 0
    %3048 = vmatprep.mubr.bf16.mxu0 0
    %3049 = vmatmul.mubr.bf16.gmra.mxu0 %v2666
    %v3050 = vpop.f32.mrf.mxu0
    %v3051 = vadd.f32 %v432, %v3050
    %v3052 = vpop.f32.mrf.mxu0
    %v3053 = vpop.f32.mrf.mxu0
    %v3054 = vpop.f32.mrf.mxu0
    %3055 = vdwg.mxu0
    %v3056 = vadd.f32 %v2933, %v2971
    %v3057 = vxor.u32 %v3056, 2147483648
    %v3058 = vmul.f32 %v3057, 1.442695
    %v3059 = vpow.pop %v3058
    %v3060 = vadd.f32 %v3059, 1.0
    %v3061 = vrcp.pop %v3060
    %v3062 = vmul.f32 1.0, %v3061
    %v3063 = vadd.f32 %v2934, %v3011
    %v3064 = vxor.u32 %v3063, 2147483648
    %v3065 = vmul.f32 %v3064, 1.442695
    %v3066 = vpow.pop %v3065
    %v3067 = vadd.f32 %v3066, 1.0
    %v3068 = vrcp.pop %v3067
    %v3069 = vmul.f32 1.0, %v3068
    %v3070 = vmul.f32 %v3062, %v3051
    %v3071 = vadd.f32 %v2935, %v3070
    %v3072 = vtanh.pop %v3071
    %v3073 = vsub.f32 1.0, %v3069
    %v3074 = vmul.f32 %v3073, %v3072
    %v3075 = vmul.f32 %v3069, %v2663
    %v3076 = vadd.f32 %v3074, %v3075
    %v3077 = vpack.c.bf16 %v3076, %v3076
    %v3079 = vsel %vm154, %v3077, 0
    %3081 = vmatprep.subr.bf16.mxu0 0
    %3082 = vmatpush1.bf16.msra.mxu0 0
    %3083 = vmatprep.subr.bf16.mxu0 0
    %3084 = vmatpush1.bf16.msra.mxu0 0
    %3085 = vmatprep.subr.bf16.mxu0 0
    %3086 = vmatpush1.bf16.msra.mxu0 0
    %3087 = vmatprep.subr.bf16.mxu0 0
    %3088 = vmatpush1.bf16.msra.mxu0 0
    %3089 = vmatprep.subr.bf16.mxu0 0
    %3090 = vmatpush1.bf16.msra.mxu0 0
    %3091 = vmatprep.subr.bf16.mxu0 0
    %3092 = vmatpush1.bf16.msra.mxu0 0
    %3093 = vmatprep.subr.bf16.mxu0 0
    %3094 = vmatpush1.bf16.msra.mxu0 %v523
    %3095 = vmatprep.subr.bf16.mxu0 0
    %3096 = vmatpush1.bf16.msra.mxu0 %v522
    %3097 = vmatprep.subr.bf16.mxu0 0
    %3098 = vmatpush2.bf16.msra.mxu0 0
    %3099 = vmatprep.subr.bf16.mxu0 0
    %3100 = vmatpush2.bf16.msra.mxu0 0
    %3101 = vmatprep.subr.bf16.mxu0 0
    %3102 = vmatpush2.bf16.msra.mxu0 0
    %3103 = vmatprep.subr.bf16.mxu0 0
    %3104 = vmatpush2.bf16.msra.mxu0 0
    %3105 = vmatprep.subr.bf16.mxu0 0
    %3106 = vmatpush2.bf16.msra.mxu0 0
    %3107 = vmatprep.subr.bf16.mxu0 0
    %3108 = vmatpush2.bf16.msra.mxu0 0
    %3109 = vmatprep.subr.bf16.mxu0 0
    %3110 = vmatpush2.bf16.msra.mxu0 0
    %3111 = vmatprep.subr.bf16.mxu0 0
    %3112 = vmatpush2.bf16.msra.mxu0 0
    %3113 = vmatprep.mubr.bf16.mxu0 0
    %3114 = vmatmul.mubr.bf16.gmra.mxu0 %v3079
    %v3115 = vpop.f32.mrf.mxu0
    %v3116 = vadd.f32 %v512, %v3115
    %v3117 = vpop.f32.mrf.mxu0
    %v3118 = vpop.f32.mrf.mxu0
    %v3119 = vpop.f32.mrf.mxu0
    %3120 = vdwg.mxu0
    %3121 = vmatprep.subr.bf16.mxu0 0
    %3122 = vmatpush1.bf16.msra.mxu0 0
    %3123 = vmatprep.subr.bf16.mxu0 0
    %3124 = vmatpush1.bf16.msra.mxu0 0
    %3125 = vmatprep.subr.bf16.mxu0 0
    %3126 = vmatpush1.bf16.msra.mxu0 0
    %3127 = vmatprep.subr.bf16.mxu0 0
    %3128 = vmatpush1.bf16.msra.mxu0 0
    %3129 = vmatprep.subr.bf16.mxu0 0
    %3130 = vmatpush1.bf16.msra.mxu0 0
    %3131 = vmatprep.subr.bf16.mxu0 0
    %3132 = vmatpush1.bf16.msra.mxu0 0
    %3133 = vmatprep.subr.bf16.mxu0 0
    %3134 = vmatpush1.bf16.msra.mxu0 %v584
    %3135 = vmatprep.subr.bf16.mxu0 0
    %3136 = vmatpush1.bf16.msra.mxu0 %v583
    %3137 = vmatprep.subr.bf16.mxu0 0
    %3138 = vmatpush2.bf16.msra.mxu0 0
    %3139 = vmatprep.subr.bf16.mxu0 0
    %3140 = vmatpush2.bf16.msra.mxu0 0
    %3141 = vmatprep.subr.bf16.mxu0 0
    %3142 = vmatpush2.bf16.msra.mxu0 0
    %3143 = vmatprep.subr.bf16.mxu0 0
    %3144 = vmatpush2.bf16.msra.mxu0 0
    %3145 = vmatprep.subr.bf16.mxu0 0
    %3146 = vmatpush2.bf16.msra.mxu0 0
    %3147 = vmatprep.subr.bf16.mxu0 0
    %3148 = vmatpush2.bf16.msra.mxu0 0
    %3149 = vmatprep.subr.bf16.mxu0 0
    %3150 = vmatpush2.bf16.msra.mxu0 0
    %3151 = vmatprep.subr.bf16.mxu0 0
    %3152 = vmatpush2.bf16.msra.mxu0 0
    %3153 = vmatprep.mubr.bf16.mxu0 0
    %3154 = vmatmul.mubr.bf16.gmra.mxu0 %v3079
    %v3155 = vpop.f32.mrf.mxu0
    %v3156 = vadd.f32 %v573, %v3155
    %v3157 = vpop.f32.mrf.mxu0
    %v3158 = vpop.f32.mrf.mxu0
    %v3159 = vpop.f32.mrf.mxu0
    %3160 = vdwg.mxu0
    %3161 = vmatprep.subr.bf16.mxu0 0
    %3162 = vmatpush1.bf16.msra.mxu0 0
    %3163 = vmatprep.subr.bf16.mxu0 0
    %3164 = vmatpush1.bf16.msra.mxu0 0
    %3165 = vmatprep.subr.bf16.mxu0 0
    %3166 = vmatpush1.bf16.msra.mxu0 0
    %3167 = vmatprep.subr.bf16.mxu0 0
    %3168 = vmatpush1.bf16.msra.mxu0 0
    %3169 = vmatprep.subr.bf16.mxu0 0
    %3170 = vmatpush1.bf16.msra.mxu0 0
    %3171 = vmatprep.subr.bf16.mxu0 0
    %3172 = vmatpush1.bf16.msra.mxu0 0
    %3173 = vmatprep.subr.bf16.mxu0 0
    %3174 = vmatpush1.bf16.msra.mxu0 %v642
    %3175 = vmatprep.subr.bf16.mxu0 0
    %3176 = vmatpush1.bf16.msra.mxu0 %v641
    %3177 = vmatprep.subr.bf16.mxu0 0
    %3178 = vmatpush2.bf16.msra.mxu0 0
    %3179 = vmatprep.subr.bf16.mxu0 0
    %3180 = vmatpush2.bf16.msra.mxu0 0
    %3181 = vmatprep.subr.bf16.mxu0 0
    %3182 = vmatpush2.bf16.msra.mxu0 0
    %3183 = vmatprep.subr.bf16.mxu0 0
    %3184 = vmatpush2.bf16.msra.mxu0 0
    %3185 = vmatprep.subr.bf16.mxu0 0
    %3186 = vmatpush2.bf16.msra.mxu0 0
    %3187 = vmatprep.subr.bf16.mxu0 0
    %3188 = vmatpush2.bf16.msra.mxu0 0
    %3189 = vmatprep.subr.bf16.mxu0 0
    %3190 = vmatpush2.bf16.msra.mxu0 0
    %3191 = vmatprep.subr.bf16.mxu0 0
    %3192 = vmatpush2.bf16.msra.mxu0 0
    %3193 = vmatprep.mubr.bf16.mxu0 0
    %3194 = vmatmul.mubr.bf16.gmra.mxu0 %v3079
    %v3195 = vpop.f32.mrf.mxu0
    %v3196 = vadd.f32 %v631, %v3195
    %v3197 = vpop.f32.mrf.mxu0
    %v3198 = vpop.f32.mrf.mxu0
    %v3199 = vpop.f32.mrf.mxu0
    %3200 = vdwg.mxu0
    %v3201 = vpack.c.bf16 %v2932, %v2932
    %v3203 = vsel %vm154, %v3201, 0
    %3205 = vmatprep.subr.bf16.mxu0 0
    %3206 = vmatpush1.bf16.msra.mxu0 0
    %3207 = vmatprep.subr.bf16.mxu0 0
    %3208 = vmatpush1.bf16.msra.mxu0 0
    %3209 = vmatprep.subr.bf16.mxu0 0
    %3210 = vmatpush1.bf16.msra.mxu0 0
    %3211 = vmatprep.subr.bf16.mxu0 0
    %3212 = vmatpush1.bf16.msra.mxu0 0
    %3213 = vmatprep.subr.bf16.mxu0 0
    %3214 = vmatpush1.bf16.msra.mxu0 0
    %3215 = vmatprep.subr.bf16.mxu0 0
    %3216 = vmatpush1.bf16.msra.mxu0 0
    %3217 = vmatprep.subr.bf16.mxu0 0
    %3218 = vmatpush1.bf16.msra.mxu0 %v694
    %3219 = vmatprep.subr.bf16.mxu0 0
    %3220 = vmatpush1.bf16.msra.mxu0 %v693
    %3221 = vmatprep.subr.bf16.mxu0 0
    %3222 = vmatpush2.bf16.msra.mxu0 0
    %3223 = vmatprep.subr.bf16.mxu0 0
    %3224 = vmatpush2.bf16.msra.mxu0 0
    %3225 = vmatprep.subr.bf16.mxu0 0
    %3226 = vmatpush2.bf16.msra.mxu0 0
    %3227 = vmatprep.subr.bf16.mxu0 0
    %3228 = vmatpush2.bf16.msra.mxu0 0
    %3229 = vmatprep.subr.bf16.mxu0 0
    %3230 = vmatpush2.bf16.msra.mxu0 0
    %3231 = vmatprep.subr.bf16.mxu0 0
    %3232 = vmatpush2.bf16.msra.mxu0 0
    %3233 = vmatprep.subr.bf16.mxu0 0
    %3234 = vmatpush2.bf16.msra.mxu0 0
    %3235 = vmatprep.subr.bf16.mxu0 0
    %3236 = vmatpush2.bf16.msra.mxu0 0
    %3237 = vmatprep.mubr.bf16.mxu0 0
    %3238 = vmatmul.mubr.bf16.gmra.mxu0 %v3203
    %v3239 = vpop.f32.mrf.mxu0
    %v3240 = vadd.f32 0.0, %v3239
    %v3241 = vpop.f32.mrf.mxu0
    %v3242 = vpop.f32.mrf.mxu0
    %v3243 = vpop.f32.mrf.mxu0
    %3244 = vdwg.mxu0
    %3245 = vmatprep.subr.bf16.mxu0 0
    %3246 = vmatpush1.bf16.msra.mxu0 0
    %3247 = vmatprep.subr.bf16.mxu0 0
    %3248 = vmatpush1.bf16.msra.mxu0 0
    %3249 = vmatprep.subr.bf16.mxu0 0
    %3250 = vmatpush1.bf16.msra.mxu0 0
    %3251 = vmatprep.subr.bf16.mxu0 0
    %3252 = vmatpush1.bf16.msra.mxu0 0
    %3253 = vmatprep.subr.bf16.mxu0 0
    %3254 = vmatpush1.bf16.msra.mxu0 0
    %3255 = vmatprep.subr.bf16.mxu0 0
    %3256 = vmatpush1.bf16.msra.mxu0 0
    %3257 = vmatprep.subr.bf16.mxu0 0
    %3258 = vmatpush1.bf16.msra.mxu0 %v746
    %3259 = vmatprep.subr.bf16.mxu0 0
    %3260 = vmatpush1.bf16.msra.mxu0 %v745
    %3261 = vmatprep.subr.bf16.mxu0 0
    %3262 = vmatpush2.bf16.msra.mxu0 0
    %3263 = vmatprep.subr.bf16.mxu0 0
    %3264 = vmatpush2.bf16.msra.mxu0 0
    %3265 = vmatprep.subr.bf16.mxu0 0
    %3266 = vmatpush2.bf16.msra.mxu0 0
    %3267 = vmatprep.subr.bf16.mxu0 0
    %3268 = vmatpush2.bf16.msra.mxu0 0
    %3269 = vmatprep.subr.bf16.mxu0 0
    %3270 = vmatpush2.bf16.msra.mxu0 0
    %3271 = vmatprep.subr.bf16.mxu0 0
    %3272 = vmatpush2.bf16.msra.mxu0 0
    %3273 = vmatprep.subr.bf16.mxu0 0
    %3274 = vmatpush2.bf16.msra.mxu0 0
    %3275 = vmatprep.subr.bf16.mxu0 0
    %3276 = vmatpush2.bf16.msra.mxu0 0
    %3277 = vmatprep.mubr.bf16.mxu0 0
    %3278 = vmatmul.mubr.bf16.gmra.mxu0 %v3203
    %v3279 = vpop.f32.mrf.mxu0
    %v3280 = vadd.f32 0.0, %v3279
    %v3281 = vpop.f32.mrf.mxu0
    %v3282 = vpop.f32.mrf.mxu0
    %v3283 = vpop.f32.mrf.mxu0
    %3284 = vdwg.mxu0
    %3285 = vmatprep.subr.bf16.mxu0 0
    %3286 = vmatpush1.bf16.msra.mxu0 0
    %3287 = vmatprep.subr.bf16.mxu0 0
    %3288 = vmatpush1.bf16.msra.mxu0 0
    %3289 = vmatprep.subr.bf16.mxu0 0
    %3290 = vmatpush1.bf16.msra.mxu0 0
    %3291 = vmatprep.subr.bf16.mxu0 0
    %3292 = vmatpush1.bf16.msra.mxu0 0
    %3293 = vmatprep.subr.bf16.mxu0 0
    %3294 = vmatpush1.bf16.msra.mxu0 0
    %3295 = vmatprep.subr.bf16.mxu0 0
    %3296 = vmatpush1.bf16.msra.mxu0 0
    %3297 = vmatprep.subr.bf16.mxu0 0
    %3298 = vmatpush1.bf16.msra.mxu0 %v804
    %3299 = vmatprep.subr.bf16.mxu0 0
    %3300 = vmatpush1.bf16.msra.mxu0 %v803
    %3301 = vmatprep.subr.bf16.mxu0 0
    %3302 = vmatpush2.bf16.msra.mxu0 0
    %3303 = vmatprep.subr.bf16.mxu0 0
    %3304 = vmatpush2.bf16.msra.mxu0 0
    %3305 = vmatprep.subr.bf16.mxu0 0
    %3306 = vmatpush2.bf16.msra.mxu0 0
    %3307 = vmatprep.subr.bf16.mxu0 0
    %3308 = vmatpush2.bf16.msra.mxu0 0
    %3309 = vmatprep.subr.bf16.mxu0 0
    %3310 = vmatpush2.bf16.msra.mxu0 0
    %3311 = vmatprep.subr.bf16.mxu0 0
    %3312 = vmatpush2.bf16.msra.mxu0 0
    %3313 = vmatprep.subr.bf16.mxu0 0
    %3314 = vmatpush2.bf16.msra.mxu0 0
    %3315 = vmatprep.subr.bf16.mxu0 0
    %3316 = vmatpush2.bf16.msra.mxu0 0
    %3317 = vmatprep.mubr.bf16.mxu0 0
    %3318 = vmatmul.mubr.bf16.gmra.mxu0 %v3203
    %v3319 = vpop.f32.mrf.mxu0
    %v3320 = vadd.f32 %v793, %v3319
    %v3321 = vpop.f32.mrf.mxu0
    %v3322 = vpop.f32.mrf.mxu0
    %v3323 = vpop.f32.mrf.mxu0
    %3324 = vdwg.mxu0
    %v3325 = vadd.f32 %v3116, %v3240
    %v3326 = vxor.u32 %v3325, 2147483648
    %v3327 = vmul.f32 %v3326, 1.442695
    %v3328 = vpow.pop %v3327
    %v3329 = vadd.f32 %v3328, 1.0
    %v3330 = vrcp.pop %v3329
    %v3331 = vmul.f32 1.0, %v3330
    %v3332 = vadd.f32 %v3156, %v3280
    %v3333 = vxor.u32 %v3332, 2147483648
    %v3334 = vmul.f32 %v3333, 1.442695
    %v3335 = vpow.pop %v3334
    %v3336 = vadd.f32 %v3335, 1.0
    %v3337 = vrcp.pop %v3336
    %v3338 = vmul.f32 1.0, %v3337
    %v3339 = vmul.f32 %v3331, %v3320
    %v3340 = vadd.f32 %v3196, %v3339
    %v3341 = vtanh.pop %v3340
    %v3342 = vsub.f32 1.0, %v3338
    %v3343 = vmul.f32 %v3342, %v3341
    %v3344 = vmul.f32 %v3338, %v2932
    %v3345 = vadd.f32 %v3343, %v3344
    %v3346 = vld [vmem:[#allocation2 + $0xe] sm:$0x3]
    %v3347 = vld [vmem:[#allocation3 + $0xe] sm:$0x3]
    %v3348 = vld [vmem:[#allocation4 + $0xe] sm:$0x3]
    %3349 = vmatprep.subr.bf16.mxu0 0
    %3350 = vmatpush1.bf16.msra.mxu0 0
    %3351 = vmatprep.subr.bf16.mxu0 0
    %3352 = vmatpush1.bf16.msra.mxu0 0
    %3353 = vmatprep.subr.bf16.mxu0 0
    %3354 = vmatpush1.bf16.msra.mxu0 0
    %3355 = vmatprep.subr.bf16.mxu0 0
    %3356 = vmatpush1.bf16.msra.mxu0 0
    %3357 = vmatprep.subr.bf16.mxu0 0
    %3358 = vmatpush1.bf16.msra.mxu0 0
    %3359 = vmatprep.subr.bf16.mxu0 0
    %3360 = vmatpush1.bf16.msra.mxu0 0
    %3361 = vmatprep.subr.bf16.mxu0 0
    %3362 = vmatpush1.bf16.msra.mxu0 %v330
    %3363 = vmatprep.subr.bf16.mxu0 0
    %3364 = vmatpush1.bf16.msra.mxu0 %v329
    %3365 = vmatprep.subr.bf16.mxu0 0
    %3366 = vmatpush2.bf16.msra.mxu0 0
    %3367 = vmatprep.subr.bf16.mxu0 0
    %3368 = vmatpush2.bf16.msra.mxu0 0
    %3369 = vmatprep.subr.bf16.mxu0 0
    %3370 = vmatpush2.bf16.msra.mxu0 0
    %3371 = vmatprep.subr.bf16.mxu0 0
    %3372 = vmatpush2.bf16.msra.mxu0 0
    %3373 = vmatprep.subr.bf16.mxu0 0
    %3374 = vmatpush2.bf16.msra.mxu0 0
    %3375 = vmatprep.subr.bf16.mxu0 0
    %3376 = vmatpush2.bf16.msra.mxu0 0
    %3377 = vmatprep.subr.bf16.mxu0 0
    %3378 = vmatpush2.bf16.msra.mxu0 0
    %3379 = vmatprep.subr.bf16.mxu0 0
    %3380 = vmatpush2.bf16.msra.mxu0 0
    %3381 = vmatprep.mubr.bf16.mxu0 0
    %3382 = vmatmul.mubr.bf16.gmra.mxu0 %v3079
    %v3383 = vpop.f32.mrf.mxu0
    %v3384 = vadd.f32 0.0, %v3383
    %v3385 = vpop.f32.mrf.mxu0
    %v3386 = vpop.f32.mrf.mxu0
    %v3387 = vpop.f32.mrf.mxu0
    %3388 = vdwg.mxu0
    %3389 = vmatprep.subr.bf16.mxu0 0
    %3390 = vmatpush1.bf16.msra.mxu0 0
    %3391 = vmatprep.subr.bf16.mxu0 0
    %3392 = vmatpush1.bf16.msra.mxu0 0
    %3393 = vmatprep.subr.bf16.mxu0 0
    %3394 = vmatpush1.bf16.msra.mxu0 0
    %3395 = vmatprep.subr.bf16.mxu0 0
    %3396 = vmatpush1.bf16.msra.mxu0 0
    %3397 = vmatprep.subr.bf16.mxu0 0
    %3398 = vmatpush1.bf16.msra.mxu0 0
    %3399 = vmatprep.subr.bf16.mxu0 0
    %3400 = vmatpush1.bf16.msra.mxu0 0
    %3401 = vmatprep.subr.bf16.mxu0 0
    %3402 = vmatpush1.bf16.msra.mxu0 %v385
    %3403 = vmatprep.subr.bf16.mxu0 0
    %3404 = vmatpush1.bf16.msra.mxu0 %v384
    %3405 = vmatprep.subr.bf16.mxu0 0
    %3406 = vmatpush2.bf16.msra.mxu0 0
    %3407 = vmatprep.subr.bf16.mxu0 0
    %3408 = vmatpush2.bf16.msra.mxu0 0
    %3409 = vmatprep.subr.bf16.mxu0 0
    %3410 = vmatpush2.bf16.msra.mxu0 0
    %3411 = vmatprep.subr.bf16.mxu0 0
    %3412 = vmatpush2.bf16.msra.mxu0 0
    %3413 = vmatprep.subr.bf16.mxu0 0
    %3414 = vmatpush2.bf16.msra.mxu0 0
    %3415 = vmatprep.subr.bf16.mxu0 0
    %3416 = vmatpush2.bf16.msra.mxu0 0
    %3417 = vmatprep.subr.bf16.mxu0 0
    %3418 = vmatpush2.bf16.msra.mxu0 0
    %3419 = vmatprep.subr.bf16.mxu0 0
    %3420 = vmatpush2.bf16.msra.mxu0 0
    %3421 = vmatprep.mubr.bf16.mxu0 0
    %3422 = vmatmul.mubr.bf16.gmra.mxu0 %v3079
    %v3423 = vpop.f32.mrf.mxu0
    %v3424 = vadd.f32 0.0, %v3423
    %v3425 = vpop.f32.mrf.mxu0
    %v3426 = vpop.f32.mrf.mxu0
    %v3427 = vpop.f32.mrf.mxu0
    %3428 = vdwg.mxu0
    %3429 = vmatprep.subr.bf16.mxu0 0
    %3430 = vmatpush1.bf16.msra.mxu0 0
    %3431 = vmatprep.subr.bf16.mxu0 0
    %3432 = vmatpush1.bf16.msra.mxu0 0
    %3433 = vmatprep.subr.bf16.mxu0 0
    %3434 = vmatpush1.bf16.msra.mxu0 0
    %3435 = vmatprep.subr.bf16.mxu0 0
    %3436 = vmatpush1.bf16.msra.mxu0 0
    %3437 = vmatprep.subr.bf16.mxu0 0
    %3438 = vmatpush1.bf16.msra.mxu0 0
    %3439 = vmatprep.subr.bf16.mxu0 0
    %3440 = vmatpush1.bf16.msra.mxu0 0
    %3441 = vmatprep.subr.bf16.mxu0 0
    %3442 = vmatpush1.bf16.msra.mxu0 %v443
    %3443 = vmatprep.subr.bf16.mxu0 0
    %3444 = vmatpush1.bf16.msra.mxu0 %v442
    %3445 = vmatprep.subr.bf16.mxu0 0
    %3446 = vmatpush2.bf16.msra.mxu0 0
    %3447 = vmatprep.subr.bf16.mxu0 0
    %3448 = vmatpush2.bf16.msra.mxu0 0
    %3449 = vmatprep.subr.bf16.mxu0 0
    %3450 = vmatpush2.bf16.msra.mxu0 0
    %3451 = vmatprep.subr.bf16.mxu0 0
    %3452 = vmatpush2.bf16.msra.mxu0 0
    %3453 = vmatprep.subr.bf16.mxu0 0
    %3454 = vmatpush2.bf16.msra.mxu0 0
    %3455 = vmatprep.subr.bf16.mxu0 0
    %3456 = vmatpush2.bf16.msra.mxu0 0
    %3457 = vmatprep.subr.bf16.mxu0 0
    %3458 = vmatpush2.bf16.msra.mxu0 0
    %3459 = vmatprep.subr.bf16.mxu0 0
    %3460 = vmatpush2.bf16.msra.mxu0 0
    %3461 = vmatprep.mubr.bf16.mxu0 0
    %3462 = vmatmul.mubr.bf16.gmra.mxu0 %v3079
    %v3463 = vpop.f32.mrf.mxu0
    %v3464 = vadd.f32 %v432, %v3463
    %v3465 = vpop.f32.mrf.mxu0
    %v3466 = vpop.f32.mrf.mxu0
    %v3467 = vpop.f32.mrf.mxu0
    %3468 = vdwg.mxu0
    %v3469 = vadd.f32 %v3346, %v3384
    %v3470 = vxor.u32 %v3469, 2147483648
    %v3471 = vmul.f32 %v3470, 1.442695
    %v3472 = vpow.pop %v3471
    %v3473 = vadd.f32 %v3472, 1.0
    %v3474 = vrcp.pop %v3473
    %v3475 = vmul.f32 1.0, %v3474
    %v3476 = vadd.f32 %v3347, %v3424
    %v3477 = vxor.u32 %v3476, 2147483648
    %v3478 = vmul.f32 %v3477, 1.442695
    %v3479 = vpow.pop %v3478
    %v3480 = vadd.f32 %v3479, 1.0
    %v3481 = vrcp.pop %v3480
    %v3482 = vmul.f32 1.0, %v3481
    %v3483 = vmul.f32 %v3475, %v3464
    %v3484 = vadd.f32 %v3348, %v3483
    %v3485 = vtanh.pop %v3484
    %v3486 = vsub.f32 1.0, %v3482
    %v3487 = vmul.f32 %v3486, %v3485
    %v3488 = vmul.f32 %v3482, %v3076
    %v3489 = vadd.f32 %v3487, %v3488
    %v3490 = vpack.c.bf16 %v3489, %v3489
    %v3492 = vsel %vm154, %v3490, 0
    %3494 = vmatprep.subr.bf16.mxu0 0
    %3495 = vmatpush1.bf16.msra.mxu0 0
    %3496 = vmatprep.subr.bf16.mxu0 0
    %3497 = vmatpush1.bf16.msra.mxu0 0
    %3498 = vmatprep.subr.bf16.mxu0 0
    %3499 = vmatpush1.bf16.msra.mxu0 0
    %3500 = vmatprep.subr.bf16.mxu0 0
    %3501 = vmatpush1.bf16.msra.mxu0 0
    %3502 = vmatprep.subr.bf16.mxu0 0
    %3503 = vmatpush1.bf16.msra.mxu0 0
    %3504 = vmatprep.subr.bf16.mxu0 0
    %3505 = vmatpush1.bf16.msra.mxu0 0
    %3506 = vmatprep.subr.bf16.mxu0 0
    %3507 = vmatpush1.bf16.msra.mxu0 %v523
    %3508 = vmatprep.subr.bf16.mxu0 0
    %3509 = vmatpush1.bf16.msra.mxu0 %v522
    %3510 = vmatprep.subr.bf16.mxu0 0
    %3511 = vmatpush2.bf16.msra.mxu0 0
    %3512 = vmatprep.subr.bf16.mxu0 0
    %3513 = vmatpush2.bf16.msra.mxu0 0
    %3514 = vmatprep.subr.bf16.mxu0 0
    %3515 = vmatpush2.bf16.msra.mxu0 0
    %3516 = vmatprep.subr.bf16.mxu0 0
    %3517 = vmatpush2.bf16.msra.mxu0 0
    %3518 = vmatprep.subr.bf16.mxu0 0
    %3519 = vmatpush2.bf16.msra.mxu0 0
    %3520 = vmatprep.subr.bf16.mxu0 0
    %3521 = vmatpush2.bf16.msra.mxu0 0
    %3522 = vmatprep.subr.bf16.mxu0 0
    %3523 = vmatpush2.bf16.msra.mxu0 0
    %3524 = vmatprep.subr.bf16.mxu0 0
    %3525 = vmatpush2.bf16.msra.mxu0 0
    %3526 = vmatprep.mubr.bf16.mxu0 0
    %3527 = vmatmul.mubr.bf16.gmra.mxu0 %v3492
    %v3528 = vpop.f32.mrf.mxu0
    %v3529 = vadd.f32 %v512, %v3528
    %v3530 = vpop.f32.mrf.mxu0
    %v3531 = vpop.f32.mrf.mxu0
    %v3532 = vpop.f32.mrf.mxu0
    %3533 = vdwg.mxu0
    %3534 = vmatprep.subr.bf16.mxu0 0
    %3535 = vmatpush1.bf16.msra.mxu0 0
    %3536 = vmatprep.subr.bf16.mxu0 0
    %3537 = vmatpush1.bf16.msra.mxu0 0
    %3538 = vmatprep.subr.bf16.mxu0 0
    %3539 = vmatpush1.bf16.msra.mxu0 0
    %3540 = vmatprep.subr.bf16.mxu0 0
    %3541 = vmatpush1.bf16.msra.mxu0 0
    %3542 = vmatprep.subr.bf16.mxu0 0
    %3543 = vmatpush1.bf16.msra.mxu0 0
    %3544 = vmatprep.subr.bf16.mxu0 0
    %3545 = vmatpush1.bf16.msra.mxu0 0
    %3546 = vmatprep.subr.bf16.mxu0 0
    %3547 = vmatpush1.bf16.msra.mxu0 %v584
    %3548 = vmatprep.subr.bf16.mxu0 0
    %3549 = vmatpush1.bf16.msra.mxu0 %v583
    %3550 = vmatprep.subr.bf16.mxu0 0
    %3551 = vmatpush2.bf16.msra.mxu0 0
    %3552 = vmatprep.subr.bf16.mxu0 0
    %3553 = vmatpush2.bf16.msra.mxu0 0
    %3554 = vmatprep.subr.bf16.mxu0 0
    %3555 = vmatpush2.bf16.msra.mxu0 0
    %3556 = vmatprep.subr.bf16.mxu0 0
    %3557 = vmatpush2.bf16.msra.mxu0 0
    %3558 = vmatprep.subr.bf16.mxu0 0
    %3559 = vmatpush2.bf16.msra.mxu0 0
    %3560 = vmatprep.subr.bf16.mxu0 0
    %3561 = vmatpush2.bf16.msra.mxu0 0
    %3562 = vmatprep.subr.bf16.mxu0 0
    %3563 = vmatpush2.bf16.msra.mxu0 0
    %3564 = vmatprep.subr.bf16.mxu0 0
    %3565 = vmatpush2.bf16.msra.mxu0 0
    %3566 = vmatprep.mubr.bf16.mxu0 0
    %3567 = vmatmul.mubr.bf16.gmra.mxu0 %v3492
    %v3568 = vpop.f32.mrf.mxu0
    %v3569 = vadd.f32 %v573, %v3568
    %v3570 = vpop.f32.mrf.mxu0
    %v3571 = vpop.f32.mrf.mxu0
    %v3572 = vpop.f32.mrf.mxu0
    %3573 = vdwg.mxu0
    %3574 = vmatprep.subr.bf16.mxu0 0
    %3575 = vmatpush1.bf16.msra.mxu0 0
    %3576 = vmatprep.subr.bf16.mxu0 0
    %3577 = vmatpush1.bf16.msra.mxu0 0
    %3578 = vmatprep.subr.bf16.mxu0 0
    %3579 = vmatpush1.bf16.msra.mxu0 0
    %3580 = vmatprep.subr.bf16.mxu0 0
    %3581 = vmatpush1.bf16.msra.mxu0 0
    %3582 = vmatprep.subr.bf16.mxu0 0
    %3583 = vmatpush1.bf16.msra.mxu0 0
    %3584 = vmatprep.subr.bf16.mxu0 0
    %3585 = vmatpush1.bf16.msra.mxu0 0
    %3586 = vmatprep.subr.bf16.mxu0 0
    %3587 = vmatpush1.bf16.msra.mxu0 %v642
    %3588 = vmatprep.subr.bf16.mxu0 0
    %3589 = vmatpush1.bf16.msra.mxu0 %v641
    %3590 = vmatprep.subr.bf16.mxu0 0
    %3591 = vmatpush2.bf16.msra.mxu0 0
    %3592 = vmatprep.subr.bf16.mxu0 0
    %3593 = vmatpush2.bf16.msra.mxu0 0
    %3594 = vmatprep.subr.bf16.mxu0 0
    %3595 = vmatpush2.bf16.msra.mxu0 0
    %3596 = vmatprep.subr.bf16.mxu0 0
    %3597 = vmatpush2.bf16.msra.mxu0 0
    %3598 = vmatprep.subr.bf16.mxu0 0
    %3599 = vmatpush2.bf16.msra.mxu0 0
    %3600 = vmatprep.subr.bf16.mxu0 0
    %3601 = vmatpush2.bf16.msra.mxu0 0
    %3602 = vmatprep.subr.bf16.mxu0 0
    %3603 = vmatpush2.bf16.msra.mxu0 0
    %3604 = vmatprep.subr.bf16.mxu0 0
    %3605 = vmatpush2.bf16.msra.mxu0 0
    %3606 = vmatprep.mubr.bf16.mxu0 0
    %3607 = vmatmul.mubr.bf16.gmra.mxu0 %v3492
    %v3608 = vpop.f32.mrf.mxu0
    %v3609 = vadd.f32 %v631, %v3608
    %v3610 = vpop.f32.mrf.mxu0
    %v3611 = vpop.f32.mrf.mxu0
    %v3612 = vpop.f32.mrf.mxu0
    %3613 = vdwg.mxu0
    %v3614 = vpack.c.bf16 %v3345, %v3345
    %v3616 = vsel %vm154, %v3614, 0
    %3618 = vmatprep.subr.bf16.mxu0 0
    %3619 = vmatpush1.bf16.msra.mxu0 0
    %3620 = vmatprep.subr.bf16.mxu0 0
    %3621 = vmatpush1.bf16.msra.mxu0 0
    %3622 = vmatprep.subr.bf16.mxu0 0
    %3623 = vmatpush1.bf16.msra.mxu0 0
    %3624 = vmatprep.subr.bf16.mxu0 0
    %3625 = vmatpush1.bf16.msra.mxu0 0
    %3626 = vmatprep.subr.bf16.mxu0 0
    %3627 = vmatpush1.bf16.msra.mxu0 0
    %3628 = vmatprep.subr.bf16.mxu0 0
    %3629 = vmatpush1.bf16.msra.mxu0 0
    %3630 = vmatprep.subr.bf16.mxu0 0
    %3631 = vmatpush1.bf16.msra.mxu0 %v694
    %3632 = vmatprep.subr.bf16.mxu0 0
    %3633 = vmatpush1.bf16.msra.mxu0 %v693
    %3634 = vmatprep.subr.bf16.mxu0 0
    %3635 = vmatpush2.bf16.msra.mxu0 0
    %3636 = vmatprep.subr.bf16.mxu0 0
    %3637 = vmatpush2.bf16.msra.mxu0 0
    %3638 = vmatprep.subr.bf16.mxu0 0
    %3639 = vmatpush2.bf16.msra.mxu0 0
    %3640 = vmatprep.subr.bf16.mxu0 0
    %3641 = vmatpush2.bf16.msra.mxu0 0
    %3642 = vmatprep.subr.bf16.mxu0 0
    %3643 = vmatpush2.bf16.msra.mxu0 0
    %3644 = vmatprep.subr.bf16.mxu0 0
    %3645 = vmatpush2.bf16.msra.mxu0 0
    %3646 = vmatprep.subr.bf16.mxu0 0
    %3647 = vmatpush2.bf16.msra.mxu0 0
    %3648 = vmatprep.subr.bf16.mxu0 0
    %3649 = vmatpush2.bf16.msra.mxu0 0
    %3650 = vmatprep.mubr.bf16.mxu0 0
    %3651 = vmatmul.mubr.bf16.gmra.mxu0 %v3616
    %v3652 = vpop.f32.mrf.mxu0
    %v3653 = vadd.f32 0.0, %v3652
    %v3654 = vpop.f32.mrf.mxu0
    %v3655 = vpop.f32.mrf.mxu0
    %v3656 = vpop.f32.mrf.mxu0
    %3657 = vdwg.mxu0
    %3658 = vmatprep.subr.bf16.mxu0 0
    %3659 = vmatpush1.bf16.msra.mxu0 0
    %3660 = vmatprep.subr.bf16.mxu0 0
    %3661 = vmatpush1.bf16.msra.mxu0 0
    %3662 = vmatprep.subr.bf16.mxu0 0
    %3663 = vmatpush1.bf16.msra.mxu0 0
    %3664 = vmatprep.subr.bf16.mxu0 0
    %3665 = vmatpush1.bf16.msra.mxu0 0
    %3666 = vmatprep.subr.bf16.mxu0 0
    %3667 = vmatpush1.bf16.msra.mxu0 0
    %3668 = vmatprep.subr.bf16.mxu0 0
    %3669 = vmatpush1.bf16.msra.mxu0 0
    %3670 = vmatprep.subr.bf16.mxu0 0
    %3671 = vmatpush1.bf16.msra.mxu0 %v746
    %3672 = vmatprep.subr.bf16.mxu0 0
    %3673 = vmatpush1.bf16.msra.mxu0 %v745
    %3674 = vmatprep.subr.bf16.mxu0 0
    %3675 = vmatpush2.bf16.msra.mxu0 0
    %3676 = vmatprep.subr.bf16.mxu0 0
    %3677 = vmatpush2.bf16.msra.mxu0 0
    %3678 = vmatprep.subr.bf16.mxu0 0
    %3679 = vmatpush2.bf16.msra.mxu0 0
    %3680 = vmatprep.subr.bf16.mxu0 0
    %3681 = vmatpush2.bf16.msra.mxu0 0
    %3682 = vmatprep.subr.bf16.mxu0 0
    %3683 = vmatpush2.bf16.msra.mxu0 0
    %3684 = vmatprep.subr.bf16.mxu0 0
    %3685 = vmatpush2.bf16.msra.mxu0 0
    %3686 = vmatprep.subr.bf16.mxu0 0
    %3687 = vmatpush2.bf16.msra.mxu0 0
    %3688 = vmatprep.subr.bf16.mxu0 0
    %3689 = vmatpush2.bf16.msra.mxu0 0
    %3690 = vmatprep.mubr.bf16.mxu0 0
    %3691 = vmatmul.mubr.bf16.gmra.mxu0 %v3616
    %v3692 = vpop.f32.mrf.mxu0
    %v3693 = vadd.f32 0.0, %v3692
    %v3694 = vpop.f32.mrf.mxu0
    %v3695 = vpop.f32.mrf.mxu0
    %v3696 = vpop.f32.mrf.mxu0
    %3697 = vdwg.mxu0
    %3698 = vmatprep.subr.bf16.mxu0 0
    %3699 = vmatpush1.bf16.msra.mxu0 0
    %3700 = vmatprep.subr.bf16.mxu0 0
    %3701 = vmatpush1.bf16.msra.mxu0 0
    %3702 = vmatprep.subr.bf16.mxu0 0
    %3703 = vmatpush1.bf16.msra.mxu0 0
    %3704 = vmatprep.subr.bf16.mxu0 0
    %3705 = vmatpush1.bf16.msra.mxu0 0
    %3706 = vmatprep.subr.bf16.mxu0 0
    %3707 = vmatpush1.bf16.msra.mxu0 0
    %3708 = vmatprep.subr.bf16.mxu0 0
    %3709 = vmatpush1.bf16.msra.mxu0 0
    %3710 = vmatprep.subr.bf16.mxu0 0
    %3711 = vmatpush1.bf16.msra.mxu0 %v804
    %3712 = vmatprep.subr.bf16.mxu0 0
    %3713 = vmatpush1.bf16.msra.mxu0 %v803
    %3714 = vmatprep.subr.bf16.mxu0 0
    %3715 = vmatpush2.bf16.msra.mxu0 0
    %3716 = vmatprep.subr.bf16.mxu0 0
    %3717 = vmatpush2.bf16.msra.mxu0 0
    %3718 = vmatprep.subr.bf16.mxu0 0
    %3719 = vmatpush2.bf16.msra.mxu0 0
    %3720 = vmatprep.subr.bf16.mxu0 0
    %3721 = vmatpush2.bf16.msra.mxu0 0
    %3722 = vmatprep.subr.bf16.mxu0 0
    %3723 = vmatpush2.bf16.msra.mxu0 0
    %3724 = vmatprep.subr.bf16.mxu0 0
    %3725 = vmatpush2.bf16.msra.mxu0 0
    %3726 = vmatprep.subr.bf16.mxu0 0
    %3727 = vmatpush2.bf16.msra.mxu0 0
    %3728 = vmatprep.subr.bf16.mxu0 0
    %3729 = vmatpush2.bf16.msra.mxu0 0
    %3730 = vmatprep.mubr.bf16.mxu0 0
    %3731 = vmatmul.mubr.bf16.gmra.mxu0 %v3616
    %v3732 = vpop.f32.mrf.mxu0
    %v3733 = vadd.f32 %v793, %v3732
    %v3734 = vpop.f32.mrf.mxu0
    %v3735 = vpop.f32.mrf.mxu0
    %v3736 = vpop.f32.mrf.mxu0
    %3737 = vdwg.mxu0
    %v3738 = vadd.f32 %v3529, %v3653
    %v3739 = vxor.u32 %v3738, 2147483648
    %v3740 = vmul.f32 %v3739, 1.442695
    %v3741 = vpow.pop %v3740
    %v3742 = vadd.f32 %v3741, 1.0
    %v3743 = vrcp.pop %v3742
    %v3744 = vmul.f32 1.0, %v3743
    %v3745 = vadd.f32 %v3569, %v3693
    %v3746 = vxor.u32 %v3745, 2147483648
    %v3747 = vmul.f32 %v3746, 1.442695
    %v3748 = vpow.pop %v3747
    %v3749 = vadd.f32 %v3748, 1.0
    %v3750 = vrcp.pop %v3749
    %v3751 = vmul.f32 1.0, %v3750
    %v3752 = vmul.f32 %v3744, %v3733
    %v3753 = vadd.f32 %v3609, %v3752
    %v3754 = vtanh.pop %v3753
    %v3755 = vsub.f32 1.0, %v3751
    %v3756 = vmul.f32 %v3755, %v3754
    %v3757 = vmul.f32 %v3751, %v3345
    %v3758 = vadd.f32 %v3756, %v3757
    %v3759 = vld [vmem:[%s9] sm:$0xf]
    %v3760 = vld [vmem:[%s9 + $0x4] sm:$0xf]
    %v3761 = vld [vmem:[%s9 + $0x8] sm:$0xf]
    %v3762 = vld [vmem:[%s9 + $0xc] sm:$0xf]
    %v3763 = vpack.c.bf16 %v3758, %v3758
    %v3764 = vld [vmem:[#allocation5] sm:$0x1]
    %v3766 = vlaneseq
    %v3767 = vshrl.u32 %v3766, 7
    %v3768 = vsub.s32 0, %v3767
    %v3769 = vrot.slane %v3764, %v3768
    %v3775 = vunpack.c.l.b16 %v3759
    %v3776 = vunpack.c.l.b16 %v3760
    %v3777 = vunpack.c.l.b16 %v3761
    %v3778 = vunpack.c.l.b16 %v3762
    %v3779 = vpack.c.b16 %v3776, %v3775
    %v3780 = vpack.c.b16 %v3778, %v3777
    %v3784 = vsel %vm154, %v3763, 0
    %3786 = vmatprep.subr.bf16.mxu0 0
    %3787 = vmatpush1.bf16.msra.mxu0 0
    %3788 = vmatprep.subr.bf16.mxu0 0
    %3789 = vmatpush1.bf16.msra.mxu0 0
    %3790 = vmatprep.subr.bf16.mxu0 0
    %3791 = vmatpush1.bf16.msra.mxu0 0
    %3792 = vmatprep.subr.bf16.mxu0 0
    %3793 = vmatpush1.bf16.msra.mxu0 0
    %3794 = vmatprep.subr.bf16.mxu0 0
    %3795 = vmatpush1.bf16.msra.mxu0 0
    %3796 = vmatprep.subr.bf16.mxu0 0
    %3797 = vmatpush1.bf16.msra.mxu0 0
    %3798 = vmatprep.subr.bf16.mxu0 0
    %3799 = vmatpush1.bf16.msra.mxu0 %v3780
    %3800 = vmatprep.subr.bf16.mxu0 0
    %3801 = vmatpush1.bf16.msra.mxu0 %v3779
    %3802 = vmatprep.subr.bf16.mxu0 0
    %3803 = vmatpush2.bf16.msra.mxu0 0
    %3804 = vmatprep.subr.bf16.mxu0 0
    %3805 = vmatpush2.bf16.msra.mxu0 0
    %3806 = vmatprep.subr.bf16.mxu0 0
    %3807 = vmatpush2.bf16.msra.mxu0 0
    %3808 = vmatprep.subr.bf16.mxu0 0
    %3809 = vmatpush2.bf16.msra.mxu0 0
    %3810 = vmatprep.subr.bf16.mxu0 0
    %3811 = vmatpush2.bf16.msra.mxu0 0
    %3812 = vmatprep.subr.bf16.mxu0 0
    %3813 = vmatpush2.bf16.msra.mxu0 0
    %3814 = vmatprep.subr.bf16.mxu0 0
    %3815 = vmatpush2.bf16.msra.mxu0 0
    %3816 = vmatprep.subr.bf16.mxu0 0
    %3817 = vmatpush2.bf16.msra.mxu0 0
    %3818 = vmatprep.mubr.bf16.mxu0 0
    %3819 = vmatmul.mubr.bf16.gmra.mxu0 %v3784
    %v3820 = vpop.f32.mrf.mxu0
    %v3821 = vadd.f32 %v3769, %v3820
    %v3822 = vpop.f32.mrf.mxu0
    %v3823 = vpop.f32.mrf.mxu0
    %v3824 = vpop.f32.mrf.mxu0
    %3825 = vdwg.mxu0
    %vm3826 = vcmask 1024
    %3827 = vst.msk [vmem:[%s11] sm:$0x3] %vm3826, %v3821
    // Predicated region
    $region62: #{forward.1} parent=1 // pred_check
      _
    $region63: #{forward.1} parent=1 // pred_check_branch
      %3829 = sbr.rel (0) target = $region65
    $region64: #{forward.1} parent=1 // pred_region
      _
    $region65: #{forward.1} parent=1 // pred_fallthru
      _
    // Predicated region
    $region66: #{forward.1} parent=1 // pred_check
      _
    $region67: #{forward.1} parent=1 // pred_check_branch
      %3831 = sbr.rel (0) target = $region69
    $region68: #{forward.1} parent=1 // pred_region
      _
    $region69: #{forward.1} parent=1 // pred_fallthru
      _
    %3832 = vsyncpa [#allocation7], 1
    %3833 = vsyncpa [#allocation9], 1
    %3834 = vsyncpa [#allocation12], 1

</llo_original>
